<compile_context>
chip_gen: v5e
topology: v5e:2x2
jax: 0.10.0
libtpu: 0.0.40
codegen_flags: <defaults>
</compile_context>

<pallas_src>
import math
import functools

import jax
import jax.numpy as jnp
from jax.experimental import pallas as pl
from jax.experimental.pallas import tpu as pltpu

_VMEM_LIMIT_BYTES = 48 * 1024 * 1024   # explicit budget; fits v5e/v6e/v7x


# ----------------------------------------------------------------------------
# helpers
# ----------------------------------------------------------------------------
def _round_up(x, m):
    return ((x + m - 1) // m) * m


def _pick_lane_tile(length, channels, max_tile=1024):
    """Lane tile (multiple of 128) keeping a (channels, tile) f32 slab <~2MiB."""
    budget = 2 * 1024 * 1024
    by_budget = max(128, (budget // (4 * max(channels, 1))) // 128 * 128)
    tile = min(max_tile, by_budget)
    tile = min(tile, _round_up(length, 128))
    return max(128, tile)


def _build_halo_tiles(x, tile, halo, num_tiles):
    """x: (B, C, L) -> (B, num_tiles, C, tile + 2*halo) overlapping windows.

    Window i covers columns [i*tile - halo, i*tile + tile + halo) of x with
    zero padding outside [0, L). Built wrapper-side so the kernel BlockSpec's
    last two dims are full-extent (keeps the (8,128) tiling rule satisfied).
    """
    B, C, L = x.shape
    padded_len = num_tiles * tile
    xp = jnp.pad(x, ((0, 0), (0, 0), (halo, halo + padded_len - L)))
    idx = (jnp.arange(num_tiles) * tile)[:, None] + \
        jnp.arange(tile + 2 * halo)[None, :]
    tiles = jnp.take(xp, idx, axis=2)                  # (B, C, nt, tile+2h)
    return jnp.transpose(tiles, (0, 2, 1, 3))          # (B, nt, C, tile+2h)


def _snake(x, alpha, inv_alpha):
    # snake: x + (alpha + 1e-9)^-1 * sin(alpha * x)^2  (inv precomputed)
    return x + inv_alpha * jnp.square(jnp.sin(alpha * x))


# ----------------------------------------------------------------------------
# Kernel 1: snake + polyphase ConvTranspose1d (kernel = 2*stride)
# ----------------------------------------------------------------------------
def _deconv_phase_kernel(x_ref, a_ref, ia_ref, w_ref, b_ref, o_ref, *,
                         stride, padding):
    # x_ref block: (1, 1, Cin, Tm + 2)   (halo of 1 input sample each side)
    # w_ref:       (stride, Cout, 2*Cin) per-phase 2-tap weights
    # o_ref block: (1, stride, Cout, Tm) phase-major output
    x = x_ref[0, 0].astype(jnp.float32)
    xs = _snake(x, a_ref[...], ia_ref[...])
    tm = o_ref.shape[-1]
    bias = b_ref[...]
    for q in range(stride):                            # static unroll, s small
        c = (q + padding) // stride
        # tap j=0 -> x[m + c], tap j=1 -> x[m + c - 1]; single MXU matmul.
        xcol = jnp.concatenate(
            [xs[:, c + 1:c + 1 + tm], xs[:, c:c + tm]], axis=0)
        y_q = jnp.dot(w_ref[q], xcol,
                      preferred_element_type=jnp.float32) + bias
        o_ref[0, q] = y_q.astype(o_ref.dtype)


def transposed_conv_snake(x, alpha, ct_w, ct_b, stride, *, max_tile=1024):
    """snake(x, alpha) followed by ConvTranspose1d(ct_w, ct_b, stride,
    kernel=2*stride, padding=ceil(stride/2)), computed polyphase."""
    B, c_in, T = x.shape
    _, c_out, K = ct_w.shape                           # K == 2*stride
    pad = math.ceil(stride / 2)
    l_out = (T - 1) * stride - 2 * pad + K

    tile = _pick_lane_tile(T, c_in, max_tile)
    nt = pl.cdiv(T, tile)
    t_pad = nt * tile

    x_tiles = _build_halo_tiles(x, tile, 1, nt)        # (B, nt, Cin, tile+2)

    # per-phase weights: phase q uses taps k = r_q and r_q + stride
    w_t = jnp.transpose(ct_w, (1, 0, 2))               # (Cout, Cin, K)
    w_ph = jnp.stack(
        [jnp.concatenate([w_t[:, :, (q + pad) % stride],
                          w_t[:, :, (q + pad) % stride + stride]], axis=1)
         for q in range(stride)], axis=0)              # (s, Cout, 2*Cin)

    a2 = alpha.reshape(c_in, 1).astype(jnp.float32)
    ia2 = 1.0 / (a2 + 1e-9)
    b2 = ct_b.reshape(c_out, 1).astype(jnp.float32)

    kernel = functools.partial(_deconv_phase_kernel, stride=stride,
                               padding=pad)
    y_ph = pl.pallas_call(
        kernel,
        out_shape=jax.ShapeDtypeStruct((B, stride, c_out, t_pad), jnp.float32),
        grid=(B, nt),
        in_specs=[
            pl.BlockSpec((1, 1, c_in, tile + 2), lambda b, t: (b, t, 0, 0)),
            pl.BlockSpec((c_in, 1), lambda b, t: (0, 0)),
            pl.BlockSpec((c_in, 1), lambda b, t: (0, 0)),
            pl.BlockSpec((stride, c_out, 2 * c_in), lambda b, t: (0, 0, 0)),
            pl.BlockSpec((c_out, 1), lambda b, t: (0, 0)),
        ],
        out_specs=pl.BlockSpec((1, stride, c_out, tile),
                               lambda b, t: (b, 0, 0, t)),
        compiler_params=pltpu.CompilerParams(
            dimension_semantics=("parallel", "parallel"),
            vmem_limit_bytes=_VMEM_LIMIT_BYTES),
    )(x_tiles, a2, ia2, w_ph, b2)

    # interleave phases (fused by XLA with the next stage's tile gather)
    y = y_ph[:, :, :, :T]                              # (B, s, Cout, T)
    y = jnp.transpose(y, (0, 2, 3, 1)).reshape(B, c_out, T * stride)
    return y[:, :, :l_out]


# ----------------------------------------------------------------------------
# Kernel 2: fused ResidualUnit
#   snake -> K=7 dilated conv -> snake -> 1x1 conv -> residual add
# ----------------------------------------------------------------------------
def _residual_unit_kernel(x_ref, a1_ref, ia1_ref, w1_ref, b1_ref,
                          a2_ref, ia2_ref, w2_ref, b2_ref, o_ref, *, dilation):
    halo = 3 * dilation
    tl = o_ref.shape[-1]
    x = x_ref[0, 0].astype(jnp.float32)                # (C, TL + 2*halo)
    res = x[:, halo:halo + tl]                         # residual (center)

    xs = _snake(x, a1_ref[...], ia1_ref[...])
    # im2col: (7*C, TL) stack so the K=7 dilated conv is ONE MXU matmul
    xcol = jnp.concatenate(
        [xs[:, k * dilation:k * dilation + tl] for k in range(7)], axis=0)
    y = jnp.dot(w1_ref[...], xcol,
                preferred_element_type=jnp.float32) + b1_ref[...]

    ys = _snake(y, a2_ref[...], ia2_ref[...])
    z = jnp.dot(w2_ref[...], ys,
                preferred_element_type=jnp.float32) + b2_ref[...]

    o_ref[0] = (res + z).astype(o_ref.dtype)


def residual_unit(h, p, dilation, *, max_tile=1024):
    B, C, L = h.shape
    halo = 3 * dilation
    tile = _pick_lane_tile(L, C, max_tile)
    nt = pl.cdiv(L, tile)
    l_pad = nt * tile

    x_tiles = _build_halo_tiles(h, tile, halo, nt)     # (B, nt, C, tile+2h)

    w1_2d = jnp.transpose(p["w1"], (0, 2, 1)).reshape(C, 7 * C)
    w2_2d = p["w2"][:, :, 0]
    a1 = p["alpha1"].reshape(C, 1).astype(jnp.float32)
    ia1 = 1.0 / (a1 + 1e-9)
    a2 = p["alpha2"].reshape(C, 1).astype(jnp.float32)
    ia2 = 1.0 / (a2 + 1e-9)
    b1 = p["b1"].reshape(C, 1).astype(jnp.float32)
    b2 = p["b2"].reshape(C, 1).astype(jnp.float32)

    kernel = functools.partial(_residual_unit_kernel, dilation=dilation)
    out = pl.pallas_call(
        kernel,
        out_shape=jax.ShapeDtypeStruct((B, C, l_pad), jnp.float32),
        grid=(B, nt),
        in_specs=[
            pl.BlockSpec((1, 1, C, tile + 2 * halo), lambda b, t: (b, t, 0, 0)),
            pl.BlockSpec((C, 1), lambda b, t: (0, 0)),
            pl.BlockSpec((C, 1), lambda b, t: (0, 0)),
            pl.BlockSpec((C, 7 * C), lambda b, t: (0, 0)),
            pl.BlockSpec((C, 1), lambda b, t: (0, 0)),
            pl.BlockSpec((C, 1), lambda b, t: (0, 0)),
            pl.BlockSpec((C, 1), lambda b, t: (0, 0)),
            pl.BlockSpec((C, C), lambda b, t: (0, 0)),
            pl.BlockSpec((C, 1), lambda b, t: (0, 0)),
        ],
        out_specs=pl.BlockSpec((1, C, tile), lambda b, t: (b, 0, t)),
        compiler_params=pltpu.CompilerParams(
            dimension_semantics=("parallel", "parallel"),
            vmem_limit_bytes=_VMEM_LIMIT_BYTES),
    )(x_tiles, a1, ia1, w1_2d, b1, a2, ia2, w2_2d, b2)
    return out[:, :, :L]


# ----------------------------------------------------------------------------
# DecoderBlock forward
# ----------------------------------------------------------------------------
def decoder_block_forward(x, params, stride):
    h = transposed_conv_snake(x, params["alpha0"], params["ct_w"],
                              params["ct_b"], stride)
    for d, p in zip((1, 3, 9), params["res_units"]):
        h = residual_unit(h, p, d)
    return h


# ----------------------------------------------------------------------------
# Parameter construction (deterministic, weight-norm folded into weights)
# ----------------------------------------------------------------------------
def _wn_weight(key, shape):
    """weight_norm(dim=0): w = g * v / ||v|| with norm over all dims but dim 0."""
    kv, kg = jax.random.split(key)
    v = jax.random.normal(kv, shape, jnp.float32) * 0.1
    g = jax.random.uniform(kg, (shape[0],) + (1,) * (len(shape) - 1),
                           jnp.float32, minval=0.5, maxval=1.5)
    norm = jnp.sqrt(jnp.sum(v * v, axis=tuple(range(1, len(shape))),
                            keepdims=True))
    return g * v / (norm + 1e-12)


def init_decoder_block_params(key, input_dim, output_dim, stride):
    ks = jax.random.split(key, 16)
    kct = 2 * stride
    params = {
        "alpha0": jnp.ones((input_dim,), jnp.float32),
        # PyTorch ConvTranspose1d weight layout: (Cin, Cout, K)
        "ct_w": _wn_weight(ks[0], (input_dim, output_dim, kct)),
        "ct_b": jax.random.normal(ks[1], (output_dim,), jnp.float32) * 0.01,
        "res_units": [],
    }
    for u in range(3):
        base = 2 + 4 * u
        params["res_units"].append({
            "alpha1": jnp.ones((output_dim,), jnp.float32),
            "w1": _wn_weight(ks[base + 0], (output_dim, output_dim, 7)),
            "b1": jax.random.normal(ks[base + 1], (output_dim,), jnp.float32) * 0.01,
            "alpha2": jnp.ones((output_dim,), jnp.float32),
            "w2": _wn_weight(ks[base + 2], (output_dim, output_dim, 1)),
            "b2": jax.random.normal(ks[base + 3], (output_dim,), jnp.float32) * 0.01,
        })
    return params


# ----------------------------------------------------------------------------
# Pure-JAX reference (for a correctness check of the Pallas path)
# ----------------------------------------------------------------------------
def _snake_ref(x, alpha):
    a = alpha.reshape(1, -1, 1)
    return x + (1.0 / (a + 1e-9)) * jnp.square(jnp.sin(a * x))


def _conv1d_ref(x, w, b, dilation=1, padding=0):
    y = jax.lax.conv_general_dilated(
        x, w, window_strides=(1,), padding=[(padding, padding)],
        rhs_dilation=(dilation,), dimension_numbers=("NCH", "OIH", "NCH"),
        precision=jax.lax.Precision.HIGHEST)
    return y + b.reshape(1, -1, 1)


def _conv_transpose1d_ref(x, w, b, stride, padding):
    K = w.shape[-1]
    w_t = jnp.flip(jnp.transpose(w, (1, 0, 2)), axis=2)    # (Cout, Cin, K)
    y = jax.lax.conv_general_dilated(
        x, w_t, window_strides=(1,),
        padding=[(K - 1 - padding, K - 1 - padding)],
        lhs_dilation=(stride,), dimension_numbers=("NCH", "OIH", "NCH"),
        precision=jax.lax.Precision.HIGHEST)
    return y + b.reshape(1, -1, 1)


def decoder_block_reference(x, params, stride):
    pad = math.ceil(stride / 2)
    h = _conv_transpose1d_ref(_snake_ref(x, params["alpha0"]),
                              params["ct_w"], params["ct_b"], stride, pad)
    for d, u in zip((1, 3, 9), params["res_units"]):
        y = _snake_ref(h, u["alpha1"])
        y = _conv1d_ref(y, u["w1"], u["b1"], dilation=d, padding=3 * d)
        y = _snake_ref(y, u["alpha2"])
        y = _conv1d_ref(y, u["w2"], u["b2"])
        h = h + y
    return h


# ----------------------------------------------------------------------------
if __name__ == "__main__":
    B, INPUT_DIM, OUTPUT_DIM, STRIDE, T = 2, 16, 8, 2, 16

    key = jax.random.PRNGKey(0)
    kx, kp = jax.random.split(key)
    x = jax.random.normal(kx, (B, INPUT_DIM, T), jnp.float32)
    params = init_decoder_block_params(kp, INPUT_DIM, OUTPUT_DIM, STRIDE)

    fwd = jax.jit(decoder_block_forward, static_argnums=(2,))
    out = jax.block_until_ready(fwd(x, params, STRIDE))

    expected_len = (T - 1) * STRIDE - 2 * math.ceil(STRIDE / 2) + 2 * STRIDE
    assert out.shape == (B, OUTPUT_DIM, expected_len), out.shape
    assert bool(jnp.all(jnp.isfinite(out)))

    ref = decoder_block_reference(x, params, STRIDE)
    max_err = float(jnp.max(jnp.abs(out - ref)))
    assert max_err < 2e-2, f"mismatch vs reference: {max_err}"
    print("KERNEL_OK")
</pallas_src>

<mosaic_0001>
module attributes {stable_mosaic.version = 11 : i64} {
  func.func @_deconv_phase_kernel(%arg0: i32, %arg1: i32, %arg2: memref<1x1x16x130xf32, #tpu.memory_space<vmem>>, %arg3: memref<16x1xf32, #tpu.memory_space<vmem>>, %arg4: memref<16x1xf32, #tpu.memory_space<vmem>>, %arg5: memref<2x8x32xf32, #tpu.memory_space<vmem>>, %arg6: memref<8x1xf32, #tpu.memory_space<vmem>>, %arg7: memref<1x2x8x128xf32, #tpu.memory_space<vmem>>) attributes {dimension_semantics = [#tpu.dimension_semantics<parallel>, #tpu.dimension_semantics<parallel>], iteration_bounds = array<i64: 2, 1>, scalar_prefetch = 0 : i64, scratch_operands = 0 : i64, tpu.core_type = #tpu.core_type<tc>, window_params = [{transform_indices = @transform_0, window_bounds = array<i64: 1, 1, 16, 130>}, {pipeline_mode = #tpu.pipeline_mode<synchronous>, transform_indices = @transform_1, window_bounds = array<i64: 16, 1>}, {pipeline_mode = #tpu.pipeline_mode<synchronous>, transform_indices = @transform_2, window_bounds = array<i64: 16, 1>}, {pipeline_mode = #tpu.pipeline_mode<synchronous>, transform_indices = @transform_3, window_bounds = array<i64: 2, 8, 32>}, {pipeline_mode = #tpu.pipeline_mode<synchronous>, transform_indices = @transform_4, window_bounds = array<i64: 8, 1>}, {transform_indices = @transform_5, window_bounds = array<i64: 1, 2, 8, 128>}]} {
    %c0 = arith.constant 0 : index
    %c0_0 = arith.constant 0 : index
    %c0_1 = arith.constant 0 : index
    %c0_2 = arith.constant 0 : index
    %0 = vector.load %arg2[%c0, %c0_0, %c0_1, %c0_2] : memref<1x1x16x130xf32, #tpu.memory_space<vmem>>, vector<1x1x16x130xf32>
    %1 = vector.shape_cast %0 : vector<1x1x16x130xf32> to vector<16x130xf32>
    %c0_3 = arith.constant 0 : index
    %c0_4 = arith.constant 0 : index
    %2 = vector.load %arg3[%c0_3, %c0_4] : memref<16x1xf32, #tpu.memory_space<vmem>>, vector<16x1xf32>
    %c0_5 = arith.constant 0 : index
    %c0_6 = arith.constant 0 : index
    %3 = vector.load %arg4[%c0_5, %c0_6] : memref<16x1xf32, #tpu.memory_space<vmem>>, vector<16x1xf32>
    %4 = vector.broadcast %2 : vector<16x1xf32> to vector<16x130xf32>
    %5 = arith.mulf %4, %1 : vector<16x130xf32>
    %6 = math.sin %5 : vector<16x130xf32>
    %7 = arith.mulf %6, %6 : vector<16x130xf32>
    %8 = vector.broadcast %3 : vector<16x1xf32> to vector<16x130xf32>
    %9 = arith.mulf %8, %7 : vector<16x130xf32>
    %10 = arith.addf %1, %9 : vector<16x130xf32>
    %c0_7 = arith.constant 0 : index
    %c0_8 = arith.constant 0 : index
    %11 = vector.load %arg6[%c0_7, %c0_8] : memref<8x1xf32, #tpu.memory_space<vmem>>, vector<8x1xf32>
    %12 = vector.extract_strided_slice %10 {offsets = [0, 1], sizes = [16, 128], strides = [1, 1]} : vector<16x130xf32> to vector<16x128xf32>
    %13 = vector.extract_strided_slice %10 {offsets = [0, 0], sizes = [16, 128], strides = [1, 1]} : vector<16x130xf32> to vector<16x128xf32>
    %14 = tpu.concatenate %12, %13 in 0 : vector<16x128xf32>, vector<16x128xf32> -> vector<32x128xf32>
    %c0_9 = arith.constant 0 : index
    %c0_10 = arith.constant 0 : index
    %c0_11 = arith.constant 0 : index
    %15 = vector.load %arg5[%c0_9, %c0_10, %c0_11] : memref<2x8x32xf32, #tpu.memory_space<vmem>>, vector<1x8x32xf32>
    %16 = vector.shape_cast %15 : vector<1x8x32xf32> to vector<8x32xf32>
    %cst = arith.constant dense<0.000000e+00> : vector<8x128xf32>
    %17 = tpu.matmul %16, %14, %cst {dimension_numbers = #tpu.dot_dimension_numbers<[1], [0], [0], [1], [0, 0, 1, 1], [], []>} : vector<8x32xf32>, vector<32x128xf32>, vector<8x128xf32> -> vector<8x128xf32>
    %18 = vector.broadcast %11 : vector<8x1xf32> to vector<8x128xf32>
    %19 = arith.addf %17, %18 : vector<8x128xf32>
    %c0_12 = arith.constant 0 : index
    %c0_13 = arith.constant 0 : index
    %c0_14 = arith.constant 0 : index
    %c0_15 = arith.constant 0 : index
    %20 = vector.load %arg7[%c0_12, %c0_13, %c0_14, %c0_15] : memref<1x2x8x128xf32, #tpu.memory_space<vmem>>, vector<1x1x8x128xf32>
    %21 = vector.shape_cast %20 : vector<1x1x8x128xf32> to vector<8x128xf32>
    %22 = vector.shape_cast %19 : vector<8x128xf32> to vector<1x1x8x128xf32>
    tpu.vector_store %arg7[%c0_12, %c0_13, %c0_14, %c0_15], %22 {strides = array<i32>} : memref<1x2x8x128xf32, #tpu.memory_space<vmem>>, vector<1x1x8x128xf32>,
    %23 = vector.extract_strided_slice %10 {offsets = [0, 2], sizes = [16, 128], strides = [1, 1]} : vector<16x130xf32> to vector<16x128xf32>
    %24 = vector.extract_strided_slice %10 {offsets = [0, 1], sizes = [16, 128], strides = [1, 1]} : vector<16x130xf32> to vector<16x128xf32>
    %25 = tpu.concatenate %23, %24 in 0 : vector<16x128xf32>, vector<16x128xf32> -> vector<32x128xf32>
    %c1 = arith.constant 1 : index
    %c0_16 = arith.constant 0 : index
    %c0_17 = arith.constant 0 : index
    %26 = vector.load %arg5[%c1, %c0_16, %c0_17] : memref<2x8x32xf32, #tpu.memory_space<vmem>>, vector<1x8x32xf32>
    %27 = vector.shape_cast %26 : vector<1x8x32xf32> to vector<8x32xf32>
    %cst_18 = arith.constant dense<0.000000e+00> : vector<8x128xf32>
    %28 = tpu.matmul %27, %25, %cst_18 {dimension_numbers = #tpu.dot_dimension_numbers<[1], [0], [0], [1], [0, 0, 1, 1], [], []>} : vector<8x32xf32>, vector<32x128xf32>, vector<8x128xf32> -> vector<8x128xf32>
    %29 = vector.broadcast %11 : vector<8x1xf32> to vector<8x128xf32>
    %30 = arith.addf %28, %29 : vector<8x128xf32>
    %c0_19 = arith.constant 0 : index
    %c1_20 = arith.constant 1 : index
    %c0_21 = arith.constant 0 : index
    %c0_22 = arith.constant 0 : index
    %31 = vector.load %arg7[%c0_19, %c1_20, %c0_21, %c0_22] : memref<1x2x8x128xf32, #tpu.memory_space<vmem>>, vector<1x1x8x128xf32>
    %32 = vector.shape_cast %31 : vector<1x1x8x128xf32> to vector<8x128xf32>
    %33 = vector.shape_cast %30 : vector<8x128xf32> to vector<1x1x8x128xf32>
    tpu.vector_store %arg7[%c0_19, %c1_20, %c0_21, %c0_22], %33 {strides = array<i32>} : memref<1x2x8x128xf32, #tpu.memory_space<vmem>>, vector<1x1x8x128xf32>,
    return
  }
  func.func @transform_0(%arg0: i32, %arg1: i32) -> (i32, i32, i32, i32) {
    %c0_i32 = arith.constant 0 : i32
    %c0_i32_0 = arith.constant 0 : i32
    %c0_i32_1 = arith.constant 0 : i32
    return %arg0, %arg1, %c0_i32, %c0_i32_0 : i32, i32, i32, i32
  }
  func.func @transform_1(%arg0: i32, %arg1: i32) -> (i32, i32) {
    %c0_i32 = arith.constant 0 : i32
    %c0_i32_0 = arith.constant 0 : i32
    %c0_i32_1 = arith.constant 0 : i32
    return %c0_i32, %c0_i32_0 : i32, i32
  }
  func.func @transform_2(%arg0: i32, %arg1: i32) -> (i32, i32) {
    %c0_i32 = arith.constant 0 : i32
    %c0_i32_0 = arith.constant 0 : i32
    %c0_i32_1 = arith.constant 0 : i32
    return %c0_i32, %c0_i32_0 : i32, i32
  }
  func.func @transform_3(%arg0: i32, %arg1: i32) -> (i32, i32, i32) {
    %c0_i32 = arith.constant 0 : i32
    %c0_i32_0 = arith.constant 0 : i32
    %c0_i32_1 = arith.constant 0 : i32
    %c0_i32_2 = arith.constant 0 : i32
    return %c0_i32, %c0_i32_0, %c0_i32_1 : i32, i32, i32
  }
  func.func @transform_4(%arg0: i32, %arg1: i32) -> (i32, i32) {
    %c0_i32 = arith.constant 0 : i32
    %c0_i32_0 = arith.constant 0 : i32
    %c0_i32_1 = arith.constant 0 : i32
    return %c0_i32, %c0_i32_0 : i32, i32
  }
  func.func @transform_5(%arg0: i32, %arg1: i32) -> (i32, i32, i32, i32) {
    %c0_i32 = arith.constant 0 : i32
    %c0_i32_0 = arith.constant 0 : i32
    %c0_i32_1 = arith.constant 0 : i32
    return %arg0, %c0_i32, %c0_i32_0, %arg1 : i32, i32, i32, i32
  }
}

module attributes {stable_mosaic.version = 11 : i64} {
  func.func @_residual_unit_kernel(%arg0: i32, %arg1: i32, %arg2: memref<1x1x8x134xf32, #tpu.memory_space<vmem>>, %arg3: memref<8x1xf32, #tpu.memory_space<vmem>>, %arg4: memref<8x1xf32, #tpu.memory_space<vmem>>, %arg5: memref<8x56xf32, #tpu.memory_space<vmem>>, %arg6: memref<8x1xf32, #tpu.memory_space<vmem>>, %arg7: memref<8x1xf32, #tpu.memory_space<vmem>>, %arg8: memref<8x1xf32, #tpu.memory_space<vmem>>, %arg9: memref<8x8xf32, #tpu.memory_space<vmem>>, %arg10: memref<8x1xf32, #tpu.memory_space<vmem>>, %arg11: memref<1x8x128xf32, #tpu.memory_space<vmem>>) attributes {dimension_semantics = [#tpu.dimension_semantics<parallel>, #tpu.dimension_semantics<parallel>], iteration_bounds = array<i64: 2, 1>, scalar_prefetch = 0 : i64, scratch_operands = 0 : i64, tpu.core_type = #tpu.core_type<tc>, window_params = [{transform_indices = @transform_0, window_bounds = array<i64: 1, 1, 8, 134>}, {pipeline_mode = #tpu.pipeline_mode<synchronous>, transform_indices = @transform_1, window_bounds = array<i64: 8, 1>}, {pipeline_mode = #tpu.pipeline_mode<synchronous>, transform_indices = @transform_2, window_bounds = array<i64: 8, 1>}, {pipeline_mode = #tpu.pipeline_mode<synchronous>, transform_indices = @transform_3, window_bounds = array<i64: 8, 56>}, {pipeline_mode = #tpu.pipeline_mode<synchronous>, transform_indices = @transform_4, window_bounds = array<i64: 8, 1>}, {pipeline_mode = #tpu.pipeline_mode<synchronous>, transform_indices = @transform_5, window_bounds = array<i64: 8, 1>}, {pipeline_mode = #tpu.pipeline_mode<synchronous>, transform_indices = @transform_6, window_bounds = array<i64: 8, 1>}, {pipeline_mode = #tpu.pipeline_mode<synchronous>, transform_indices = @transform_7, window_bounds = array<i64: 8, 8>}, {pipeline_mode = #tpu.pipeline_mode<synchronous>, transform_indices = @transform_8, window_bounds = array<i64: 8, 1>}, {transform_indices = @transform_9, window_bounds = array<i64: 1, 8, 128>}]} {
    %c0 = arith.constant 0 : index
    %c0_0 = arith.constant 0 : index
    %c0_1 = arith.constant 0 : index
    %c0_2 = arith.constant 0 : index
    %0 = vector.load %arg2[%c0, %c0_0, %c0_1, %c0_2] : memref<1x1x8x134xf32, #tpu.memory_space<vmem>>, vector<1x1x8x134xf32>
    %1 = vector.shape_cast %0 : vector<1x1x8x134xf32> to vector<8x134xf32>
    %2 = vector.extract_strided_slice %1 {offsets = [0, 3], sizes = [8, 128], strides = [1, 1]} : vector<8x134xf32> to vector<8x128xf32>
    %c0_3 = arith.constant 0 : index
    %c0_4 = arith.constant 0 : index
    %3 = vector.load %arg3[%c0_3, %c0_4] : memref<8x1xf32, #tpu.memory_space<vmem>>, vector<8x1xf32>
    %c0_5 = arith.constant 0 : index
    %c0_6 = arith.constant 0 : index
    %4 = vector.load %arg4[%c0_5, %c0_6] : memref<8x1xf32, #tpu.memory_space<vmem>>, vector<8x1xf32>
    %5 = vector.broadcast %3 : vector<8x1xf32> to vector<8x134xf32>
    %6 = arith.mulf %5, %1 : vector<8x134xf32>
    %7 = math.sin %6 : vector<8x134xf32>
    %8 = arith.mulf %7, %7 : vector<8x134xf32>
    %9 = vector.broadcast %4 : vector<8x1xf32> to vector<8x134xf32>
    %10 = arith.mulf %9, %8 : vector<8x134xf32>
    %11 = arith.addf %1, %10 : vector<8x134xf32>
    %12 = vector.extract_strided_slice %11 {offsets = [0, 0], sizes = [8, 128], strides = [1, 1]} : vector<8x134xf32> to vector<8x128xf32>
    %13 = vector.extract_strided_slice %11 {offsets = [0, 1], sizes = [8, 128], strides = [1, 1]} : vector<8x134xf32> to vector<8x128xf32>
    %14 = vector.extract_strided_slice %11 {offsets = [0, 2], sizes = [8, 128], strides = [1, 1]} : vector<8x134xf32> to vector<8x128xf32>
    %15 = vector.extract_strided_slice %11 {offsets = [0, 3], sizes = [8, 128], strides = [1, 1]} : vector<8x134xf32> to vector<8x128xf32>
    %16 = vector.extract_strided_slice %11 {offsets = [0, 4], sizes = [8, 128], strides = [1, 1]} : vector<8x134xf32> to vector<8x128xf32>
    %17 = vector.extract_strided_slice %11 {offsets = [0, 5], sizes = [8, 128], strides = [1, 1]} : vector<8x134xf32> to vector<8x128xf32>
    %18 = vector.extract_strided_slice %11 {offsets = [0, 6], sizes = [8, 128], strides = [1, 1]} : vector<8x134xf32> to vector<8x128xf32>
    %19 = tpu.concatenate %12, %13, %14, %15, %16, %17, %18 in 0 : vector<8x128xf32>, vector<8x128xf32>, vector<8x128xf32>, vector<8x128xf32>, vector<8x128xf32>, vector<8x128xf32>, vector<8x128xf32> -> vector<56x128xf32>
    %c0_7 = arith.constant 0 : index
    %c0_8 = arith.constant 0 : index
    %20 = vector.load %arg5[%c0_7, %c0_8] : memref<8x56xf32, #tpu.memory_space<vmem>>, vector<8x56xf32>
    %cst = arith.constant dense<0.000000e+00> : vector<8x128xf32>
    %21 = tpu.matmul %20, %19, %cst {dimension_numbers = #tpu.dot_dimension_numbers<[1], [0], [0], [1], [0, 0, 1, 1], [], []>} : vector<8x56xf32>, vector<56x128xf32>, vector<8x128xf32> -> vector<8x128xf32>
    %c0_9 = arith.constant 0 : index
    %c0_10 = arith.constant 0 : index
    %22 = vector.load %arg6[%c0_9, %c0_10] : memref<8x1xf32, #tpu.memory_space<vmem>>, vector<8x1xf32>
    %23 = vector.broadcast %22 : vector<8x1xf32> to vector<8x128xf32>
    %24 = arith.addf %21, %23 : vector<8x128xf32>
    %c0_11 = arith.constant 0 : index
    %c0_12 = arith.constant 0 : index
    %25 = vector.load %arg7[%c0_11, %c0_12] : memref<8x1xf32, #tpu.memory_space<vmem>>, vector<8x1xf32>
    %c0_13 = arith.constant 0 : index
    %c0_14 = arith.constant 0 : index
    %26 = vector.load %arg8[%c0_13, %c0_14] : memref<8x1xf32, #tpu.memory_space<vmem>>, vector<8x1xf32>
    %27 = vector.broadcast %25 : vector<8x1xf32> to vector<8x128xf32>
    %28 = arith.mulf %27, %24 : vector<8x128xf32>
    %29 = math.sin %28 : vector<8x128xf32>
    %30 = arith.mulf %29, %29 : vector<8x128xf32>
    %31 = vector.broadcast %26 : vector<8x1xf32> to vector<8x128xf32>
    %32 = arith.mulf %31, %30 : vector<8x128xf32>
    %33 = arith.addf %24, %32 : vector<8x128xf32>
    %c0_15 = arith.constant 0 : index
    %c0_16 = arith.constant 0 : index
    %34 = vector.load %arg9[%c0_15, %c0_16] : memref<8x8xf32, #tpu.memory_space<vmem>>, vector<8x8xf32>
    %cst_17 = arith.constant dense<0.000000e+00> : vector<8x128xf32>
    %35 = tpu.matmul %34, %33, %cst_17 {dimension_numbers = #tpu.dot_dimension_numbers<[1], [0], [0], [1], [0, 0, 1, 1], [], []>} : vector<8x8xf32>, vector<8x128xf32>, vector<8x128xf32> -> vector<8x128xf32>
    %c0_18 = arith.constant 0 : index
    %c0_19 = arith.constant 0 : index
    %36 = vector.load %arg10[%c0_18, %c0_19] : memref<8x1xf32, #tpu.memory_space<vmem>>, vector<8x1xf32>
    %37 = vector.broadcast %36 : vector<8x1xf32> to vector<8x128xf32>
    %38 = arith.addf %35, %37 : vector<8x128xf32>
    %39 = arith.addf %2, %38 : vector<8x128xf32>
    %c0_20 = arith.constant 0 : index
    %c0_21 = arith.constant 0 : index
    %c0_22 = arith.constant 0 : index
    %40 = vector.load %arg11[%c0_20, %c0_21, %c0_22] : memref<1x8x128xf32, #tpu.memory_space<vmem>>, vector<1x8x128xf32>
    %41 = vector.shape_cast %40 : vector<1x8x128xf32> to vector<8x128xf32>
    %42 = vector.shape_cast %39 : vector<8x128xf32> to vector<1x8x128xf32>
    tpu.vector_store %arg11[%c0_20, %c0_21, %c0_22], %42 {strides = array<i32>} : memref<1x8x128xf32, #tpu.memory_space<vmem>>, vector<1x8x128xf32>,
    return
  }
  func.func @transform_0(%arg0: i32, %arg1: i32) -> (i32, i32, i32, i32) {
    %c0_i32 = arith.constant 0 : i32
    %c0_i32_0 = arith.constant 0 : i32
    %c0_i32_1 = arith.constant 0 : i32
    return %arg0, %arg1, %c0_i32, %c0_i32_0 : i32, i32, i32, i32
  }
  func.func @transform_1(%arg0: i32, %arg1: i32) -> (i32, i32) {
    %c0_i32 = arith.constant 0 : i32
    %c0_i32_0 = arith.constant 0 : i32
    %c0_i32_1 = arith.constant 0 : i32
    return %c0_i32, %c0_i32_0 : i32, i32
  }
  func.func @transform_2(%arg0: i32, %arg1: i32) -> (i32, i32) {
    %c0_i32 = arith.constant 0 : i32
    %c0_i32_0 = arith.constant 0 : i32
    %c0_i32_1 = arith.constant 0 : i32
    return %c0_i32, %c0_i32_0 : i32, i32
  }
  func.func @transform_3(%arg0: i32, %arg1: i32) -> (i32, i32) {
    %c0_i32 = arith.constant 0 : i32
    %c0_i32_0 = arith.constant 0 : i32
    %c0_i32_1 = arith.constant 0 : i32
    return %c0_i32, %c0_i32_0 : i32, i32
  }
  func.func @transform_4(%arg0: i32, %arg1: i32) -> (i32, i32) {
    %c0_i32 = arith.constant 0 : i32
    %c0_i32_0 = arith.constant 0 : i32
    %c0_i32_1 = arith.constant 0 : i32
    return %c0_i32, %c0_i32_0 : i32, i32
  }
  func.func @transform_5(%arg0: i32, %arg1: i32) -> (i32, i32) {
    %c0_i32 = arith.constant 0 : i32
    %c0_i32_0 = arith.constant 0 : i32
    %c0_i32_1 = arith.constant 0 : i32
    return %c0_i32, %c0_i32_0 : i32, i32
  }
  func.func @transform_6(%arg0: i32, %arg1: i32) -> (i32, i32) {
    %c0_i32 = arith.constant 0 : i32
    %c0_i32_0 = arith.constant 0 : i32
    %c0_i32_1 = arith.constant 0 : i32
    return %c0_i32, %c0_i32_0 : i32, i32
  }
  func.func @transform_7(%arg0: i32, %arg1: i32) -> (i32, i32) {
    %c0_i32 = arith.constant 0 : i32
    %c0_i32_0 = arith.constant 0 : i32
    %c0_i32_1 = arith.constant 0 : i32
    return %c0_i32, %c0_i32_0 : i32, i32
  }
  func.func @transform_8(%arg0: i32, %arg1: i32) -> (i32, i32) {
    %c0_i32 = arith.constant 0 : i32
    %c0_i32_0 = arith.constant 0 : i32
    %c0_i32_1 = arith.constant 0 : i32
    return %c0_i32, %c0_i32_0 : i32, i32
  }
  func.func @transform_9(%arg0: i32, %arg1: i32) -> (i32, i32, i32) {
    %c0_i32 = arith.constant 0 : i32
    %c0_i32_0 = arith.constant 0 : i32
    return %arg0, %c0_i32, %arg1 : i32, i32, i32
  }
}

module attributes {stable_mosaic.version = 11 : i64} {
  func.func @_residual_unit_kernel(%arg0: i32, %arg1: i32, %arg2: memref<1x1x8x146xf32, #tpu.memory_space<vmem>>, %arg3: memref<8x1xf32, #tpu.memory_space<vmem>>, %arg4: memref<8x1xf32, #tpu.memory_space<vmem>>, %arg5: memref<8x56xf32, #tpu.memory_space<vmem>>, %arg6: memref<8x1xf32, #tpu.memory_space<vmem>>, %arg7: memref<8x1xf32, #tpu.memory_space<vmem>>, %arg8: memref<8x1xf32, #tpu.memory_space<vmem>>, %arg9: memref<8x8xf32, #tpu.memory_space<vmem>>, %arg10: memref<8x1xf32, #tpu.memory_space<vmem>>, %arg11: memref<1x8x128xf32, #tpu.memory_space<vmem>>) attributes {dimension_semantics = [#tpu.dimension_semantics<parallel>, #tpu.dimension_semantics<parallel>], iteration_bounds = array<i64: 2, 1>, scalar_prefetch = 0 : i64, scratch_operands = 0 : i64, tpu.core_type = #tpu.core_type<tc>, window_params = [{transform_indices = @transform_0, window_bounds = array<i64: 1, 1, 8, 146>}, {pipeline_mode = #tpu.pipeline_mode<synchronous>, transform_indices = @transform_1, window_bounds = array<i64: 8, 1>}, {pipeline_mode = #tpu.pipeline_mode<synchronous>, transform_indices = @transform_2, window_bounds = array<i64: 8, 1>}, {pipeline_mode = #tpu.pipeline_mode<synchronous>, transform_indices = @transform_3, window_bounds = array<i64: 8, 56>}, {pipeline_mode = #tpu.pipeline_mode<synchronous>, transform_indices = @transform_4, window_bounds = array<i64: 8, 1>}, {pipeline_mode = #tpu.pipeline_mode<synchronous>, transform_indices = @transform_5, window_bounds = array<i64: 8, 1>}, {pipeline_mode = #tpu.pipeline_mode<synchronous>, transform_indices = @transform_6, window_bounds = array<i64: 8, 1>}, {pipeline_mode = #tpu.pipeline_mode<synchronous>, transform_indices = @transform_7, window_bounds = array<i64: 8, 8>}, {pipeline_mode = #tpu.pipeline_mode<synchronous>, transform_indices = @transform_8, window_bounds = array<i64: 8, 1>}, {transform_indices = @transform_9, window_bounds = array<i64: 1, 8, 128>}]} {
    %c0 = arith.constant 0 : index
    %c0_0 = arith.constant 0 : index
    %c0_1 = arith.constant 0 : index
    %c0_2 = arith.constant 0 : index
    %0 = vector.load %arg2[%c0, %c0_0, %c0_1, %c0_2] : memref<1x1x8x146xf32, #tpu.memory_space<vmem>>, vector<1x1x8x146xf32>
    %1 = vector.shape_cast %0 : vector<1x1x8x146xf32> to vector<8x146xf32>
    %2 = vector.extract_strided_slice %1 {offsets = [0, 9], sizes = [8, 128], strides = [1, 1]} : vector<8x146xf32> to vector<8x128xf32>
    %c0_3 = arith.constant 0 : index
    %c0_4 = arith.constant 0 : index
    %3 = vector.load %arg3[%c0_3, %c0_4] : memref<8x1xf32, #tpu.memory_space<vmem>>, vector<8x1xf32>
    %c0_5 = arith.constant 0 : index
    %c0_6 = arith.constant 0 : index
    %4 = vector.load %arg4[%c0_5, %c0_6] : memref<8x1xf32, #tpu.memory_space<vmem>>, vector<8x1xf32>
    %5 = vector.broadcast %3 : vector<8x1xf32> to vector<8x146xf32>
    %6 = arith.mulf %5, %1 : vector<8x146xf32>
    %7 = math.sin %6 : vector<8x146xf32>
    %8 = arith.mulf %7, %7 : vector<8x146xf32>
    %9 = vector.broadcast %4 : vector<8x1xf32> to vector<8x146xf32>
    %10 = arith.mulf %9, %8 : vector<8x146xf32>
    %11 = arith.addf %1, %10 : vector<8x146xf32>
    %12 = vector.extract_strided_slice %11 {offsets = [0, 0], sizes = [8, 128], strides = [1, 1]} : vector<8x146xf32> to vector<8x128xf32>
    %13 = vector.extract_strided_slice %11 {offsets = [0, 3], sizes = [8, 128], strides = [1, 1]} : vector<8x146xf32> to vector<8x128xf32>
    %14 = vector.extract_strided_slice %11 {offsets = [0, 6], sizes = [8, 128], strides = [1, 1]} : vector<8x146xf32> to vector<8x128xf32>
    %15 = vector.extract_strided_slice %11 {offsets = [0, 9], sizes = [8, 128], strides = [1, 1]} : vector<8x146xf32> to vector<8x128xf32>
    %16 = vector.extract_strided_slice %11 {offsets = [0, 12], sizes = [8, 128], strides = [1, 1]} : vector<8x146xf32> to vector<8x128xf32>
    %17 = vector.extract_strided_slice %11 {offsets = [0, 15], sizes = [8, 128], strides = [1, 1]} : vector<8x146xf32> to vector<8x128xf32>
    %18 = vector.extract_strided_slice %11 {offsets = [0, 18], sizes = [8, 128], strides = [1, 1]} : vector<8x146xf32> to vector<8x128xf32>
    %19 = tpu.concatenate %12, %13, %14, %15, %16, %17, %18 in 0 : vector<8x128xf32>, vector<8x128xf32>, vector<8x128xf32>, vector<8x128xf32>, vector<8x128xf32>, vector<8x128xf32>, vector<8x128xf32> -> vector<56x128xf32>
    %c0_7 = arith.constant 0 : index
    %c0_8 = arith.constant 0 : index
    %20 = vector.load %arg5[%c0_7, %c0_8] : memref<8x56xf32, #tpu.memory_space<vmem>>, vector<8x56xf32>
    %cst = arith.constant dense<0.000000e+00> : vector<8x128xf32>
    %21 = tpu.matmul %20, %19, %cst {dimension_numbers = #tpu.dot_dimension_numbers<[1], [0], [0], [1], [0, 0, 1, 1], [], []>} : vector<8x56xf32>, vector<56x128xf32>, vector<8x128xf32> -> vector<8x128xf32>
    %c0_9 = arith.constant 0 : index
    %c0_10 = arith.constant 0 : index
    %22 = vector.load %arg6[%c0_9, %c0_10] : memref<8x1xf32, #tpu.memory_space<vmem>>, vector<8x1xf32>
    %23 = vector.broadcast %22 : vector<8x1xf32> to vector<8x128xf32>
    %24 = arith.addf %21, %23 : vector<8x128xf32>
    %c0_11 = arith.constant 0 : index
    %c0_12 = arith.constant 0 : index
    %25 = vector.load %arg7[%c0_11, %c0_12] : memref<8x1xf32, #tpu.memory_space<vmem>>, vector<8x1xf32>
    %c0_13 = arith.constant 0 : index
    %c0_14 = arith.constant 0 : index
    %26 = vector.load %arg8[%c0_13, %c0_14] : memref<8x1xf32, #tpu.memory_space<vmem>>, vector<8x1xf32>
    %27 = vector.broadcast %25 : vector<8x1xf32> to vector<8x128xf32>
    %28 = arith.mulf %27, %24 : vector<8x128xf32>
    %29 = math.sin %28 : vector<8x128xf32>
    %30 = arith.mulf %29, %29 : vector<8x128xf32>
    %31 = vector.broadcast %26 : vector<8x1xf32> to vector<8x128xf32>
    %32 = arith.mulf %31, %30 : vector<8x128xf32>
    %33 = arith.addf %24, %32 : vector<8x128xf32>
    %c0_15 = arith.constant 0 : index
    %c0_16 = arith.constant 0 : index
    %34 = vector.load %arg9[%c0_15, %c0_16] : memref<8x8xf32, #tpu.memory_space<vmem>>, vector<8x8xf32>
    %cst_17 = arith.constant dense<0.000000e+00> : vector<8x128xf32>
    %35 = tpu.matmul %34, %33, %cst_17 {dimension_numbers = #tpu.dot_dimension_numbers<[1], [0], [0], [1], [0, 0, 1, 1], [], []>} : vector<8x8xf32>, vector<8x128xf32>, vector<8x128xf32> -> vector<8x128xf32>
    %c0_18 = arith.constant 0 : index
    %c0_19 = arith.constant 0 : index
    %36 = vector.load %arg10[%c0_18, %c0_19] : memref<8x1xf32, #tpu.memory_space<vmem>>, vector<8x1xf32>
    %37 = vector.broadcast %36 : vector<8x1xf32> to vector<8x128xf32>
    %38 = arith.addf %35, %37 : vector<8x128xf32>
    %39 = arith.addf %2, %38 : vector<8x128xf32>
    %c0_20 = arith.constant 0 : index
    %c0_21 = arith.constant 0 : index
    %c0_22 = arith.constant 0 : index
    %40 = vector.load %arg11[%c0_20, %c0_21, %c0_22] : memref<1x8x128xf32, #tpu.memory_space<vmem>>, vector<1x8x128xf32>
    %41 = vector.shape_cast %40 : vector<1x8x128xf32> to vector<8x128xf32>
    %42 = vector.shape_cast %39 : vector<8x128xf32> to vector<1x8x128xf32>
    tpu.vector_store %arg11[%c0_20, %c0_21, %c0_22], %42 {strides = array<i32>} : memref<1x8x128xf32, #tpu.memory_space<vmem>>, vector<1x8x128xf32>,
    return
  }
  func.func @transform_0(%arg0: i32, %arg1: i32) -> (i32, i32, i32, i32) {
    %c0_i32 = arith.constant 0 : i32
    %c0_i32_0 = arith.constant 0 : i32
    %c0_i32_1 = arith.constant 0 : i32
    return %arg0, %arg1, %c0_i32, %c0_i32_0 : i32, i32, i32, i32
  }
  func.func @transform_1(%arg0: i32, %arg1: i32) -> (i32, i32) {
    %c0_i32 = arith.constant 0 : i32
    %c0_i32_0 = arith.constant 0 : i32
    %c0_i32_1 = arith.constant 0 : i32
    return %c0_i32, %c0_i32_0 : i32, i32
  }
  func.func @transform_2(%arg0: i32, %arg1: i32) -> (i32, i32) {
    %c0_i32 = arith.constant 0 : i32
    %c0_i32_0 = arith.constant 0 : i32
    %c0_i32_1 = arith.constant 0 : i32
    return %c0_i32, %c0_i32_0 : i32, i32
  }
  func.func @transform_3(%arg0: i32, %arg1: i32) -> (i32, i32) {
    %c0_i32 = arith.constant 0 : i32
    %c0_i32_0 = arith.constant 0 : i32
    %c0_i32_1 = arith.constant 0 : i32
    return %c0_i32, %c0_i32_0 : i32, i32
  }
  func.func @transform_4(%arg0: i32, %arg1: i32) -> (i32, i32) {
    %c0_i32 = arith.constant 0 : i32
    %c0_i32_0 = arith.constant 0 : i32
    %c0_i32_1 = arith.constant 0 : i32
    return %c0_i32, %c0_i32_0 : i32, i32
  }
  func.func @transform_5(%arg0: i32, %arg1: i32) -> (i32, i32) {
    %c0_i32 = arith.constant 0 : i32
    %c0_i32_0 = arith.constant 0 : i32
    %c0_i32_1 = arith.constant 0 : i32
    return %c0_i32, %c0_i32_0 : i32, i32
  }
  func.func @transform_6(%arg0: i32, %arg1: i32) -> (i32, i32) {
    %c0_i32 = arith.constant 0 : i32
    %c0_i32_0 = arith.constant 0 : i32
    %c0_i32_1 = arith.constant 0 : i32
    return %c0_i32, %c0_i32_0 : i32, i32
  }
  func.func @transform_7(%arg0: i32, %arg1: i32) -> (i32, i32) {
    %c0_i32 = arith.constant 0 : i32
    %c0_i32_0 = arith.constant 0 : i32
    %c0_i32_1 = arith.constant 0 : i32
    return %c0_i32, %c0_i32_0 : i32, i32
  }
  func.func @transform_8(%arg0: i32, %arg1: i32) -> (i32, i32) {
    %c0_i32 = arith.constant 0 : i32
    %c0_i32_0 = arith.constant 0 : i32
    %c0_i32_1 = arith.constant 0 : i32
    return %c0_i32, %c0_i32_0 : i32, i32
  }
  func.func @transform_9(%arg0: i32, %arg1: i32) -> (i32, i32, i32) {
    %c0_i32 = arith.constant 0 : i32
    %c0_i32_0 = arith.constant 0 : i32
    return %arg0, %c0_i32, %arg1 : i32, i32, i32
  }
}

module attributes {stable_mosaic.version = 11 : i64} {
  func.func @_residual_unit_kernel(%arg0: i32, %arg1: i32, %arg2: memref<1x1x8x182xf32, #tpu.memory_space<vmem>>, %arg3: memref<8x1xf32, #tpu.memory_space<vmem>>, %arg4: memref<8x1xf32, #tpu.memory_space<vmem>>, %arg5: memref<8x56xf32, #tpu.memory_space<vmem>>, %arg6: memref<8x1xf32, #tpu.memory_space<vmem>>, %arg7: memref<8x1xf32, #tpu.memory_space<vmem>>, %arg8: memref<8x1xf32, #tpu.memory_space<vmem>>, %arg9: memref<8x8xf32, #tpu.memory_space<vmem>>, %arg10: memref<8x1xf32, #tpu.memory_space<vmem>>, %arg11: memref<1x8x128xf32, #tpu.memory_space<vmem>>) attributes {dimension_semantics = [#tpu.dimension_semantics<parallel>, #tpu.dimension_semantics<parallel>], iteration_bounds = array<i64: 2, 1>, scalar_prefetch = 0 : i64, scratch_operands = 0 : i64, tpu.core_type = #tpu.core_type<tc>, window_params = [{transform_indices = @transform_0, window_bounds = array<i64: 1, 1, 8, 182>}, {pipeline_mode = #tpu.pipeline_mode<synchronous>, transform_indices = @transform_1, window_bounds = array<i64: 8, 1>}, {pipeline_mode = #tpu.pipeline_mode<synchronous>, transform_indices = @transform_2, window_bounds = array<i64: 8, 1>}, {pipeline_mode = #tpu.pipeline_mode<synchronous>, transform_indices = @transform_3, window_bounds = array<i64: 8, 56>}, {pipeline_mode = #tpu.pipeline_mode<synchronous>, transform_indices = @transform_4, window_bounds = array<i64: 8, 1>}, {pipeline_mode = #tpu.pipeline_mode<synchronous>, transform_indices = @transform_5, window_bounds = array<i64: 8, 1>}, {pipeline_mode = #tpu.pipeline_mode<synchronous>, transform_indices = @transform_6, window_bounds = array<i64: 8, 1>}, {pipeline_mode = #tpu.pipeline_mode<synchronous>, transform_indices = @transform_7, window_bounds = array<i64: 8, 8>}, {pipeline_mode = #tpu.pipeline_mode<synchronous>, transform_indices = @transform_8, window_bounds = array<i64: 8, 1>}, {transform_indices = @transform_9, window_bounds = array<i64: 1, 8, 128>}]} {
    %c0 = arith.constant 0 : index
    %c0_0 = arith.constant 0 : index
    %c0_1 = arith.constant 0 : index
    %c0_2 = arith.constant 0 : index
    %0 = vector.load %arg2[%c0, %c0_0, %c0_1, %c0_2] : memref<1x1x8x182xf32, #tpu.memory_space<vmem>>, vector<1x1x8x182xf32>
    %1 = vector.shape_cast %0 : vector<1x1x8x182xf32> to vector<8x182xf32>
    %2 = vector.extract_strided_slice %1 {offsets = [0, 27], sizes = [8, 128], strides = [1, 1]} : vector<8x182xf32> to vector<8x128xf32>
    %c0_3 = arith.constant 0 : index
    %c0_4 = arith.constant 0 : index
    %3 = vector.load %arg3[%c0_3, %c0_4] : memref<8x1xf32, #tpu.memory_space<vmem>>, vector<8x1xf32>
    %c0_5 = arith.constant 0 : index
    %c0_6 = arith.constant 0 : index
    %4 = vector.load %arg4[%c0_5, %c0_6] : memref<8x1xf32, #tpu.memory_space<vmem>>, vector<8x1xf32>
    %5 = vector.broadcast %3 : vector<8x1xf32> to vector<8x182xf32>
    %6 = arith.mulf %5, %1 : vector<8x182xf32>
    %7 = math.sin %6 : vector<8x182xf32>
    %8 = arith.mulf %7, %7 : vector<8x182xf32>
    %9 = vector.broadcast %4 : vector<8x1xf32> to vector<8x182xf32>
    %10 = arith.mulf %9, %8 : vector<8x182xf32>
    %11 = arith.addf %1, %10 : vector<8x182xf32>
    %12 = vector.extract_strided_slice %11 {offsets = [0, 0], sizes = [8, 128], strides = [1, 1]} : vector<8x182xf32> to vector<8x128xf32>
    %13 = vector.extract_strided_slice %11 {offsets = [0, 9], sizes = [8, 128], strides = [1, 1]} : vector<8x182xf32> to vector<8x128xf32>
    %14 = vector.extract_strided_slice %11 {offsets = [0, 18], sizes = [8, 128], strides = [1, 1]} : vector<8x182xf32> to vector<8x128xf32>
    %15 = vector.extract_strided_slice %11 {offsets = [0, 27], sizes = [8, 128], strides = [1, 1]} : vector<8x182xf32> to vector<8x128xf32>
    %16 = vector.extract_strided_slice %11 {offsets = [0, 36], sizes = [8, 128], strides = [1, 1]} : vector<8x182xf32> to vector<8x128xf32>
    %17 = vector.extract_strided_slice %11 {offsets = [0, 45], sizes = [8, 128], strides = [1, 1]} : vector<8x182xf32> to vector<8x128xf32>
    %18 = vector.extract_strided_slice %11 {offsets = [0, 54], sizes = [8, 128], strides = [1, 1]} : vector<8x182xf32> to vector<8x128xf32>
    %19 = tpu.concatenate %12, %13, %14, %15, %16, %17, %18 in 0 : vector<8x128xf32>, vector<8x128xf32>, vector<8x128xf32>, vector<8x128xf32>, vector<8x128xf32>, vector<8x128xf32>, vector<8x128xf32> -> vector<56x128xf32>
    %c0_7 = arith.constant 0 : index
    %c0_8 = arith.constant 0 : index
    %20 = vector.load %arg5[%c0_7, %c0_8] : memref<8x56xf32, #tpu.memory_space<vmem>>, vector<8x56xf32>
    %cst = arith.constant dense<0.000000e+00> : vector<8x128xf32>
    %21 = tpu.matmul %20, %19, %cst {dimension_numbers = #tpu.dot_dimension_numbers<[1], [0], [0], [1], [0, 0, 1, 1], [], []>} : vector<8x56xf32>, vector<56x128xf32>, vector<8x128xf32> -> vector<8x128xf32>
    %c0_9 = arith.constant 0 : index
    %c0_10 = arith.constant 0 : index
    %22 = vector.load %arg6[%c0_9, %c0_10] : memref<8x1xf32, #tpu.memory_space<vmem>>, vector<8x1xf32>
    %23 = vector.broadcast %22 : vector<8x1xf32> to vector<8x128xf32>
    %24 = arith.addf %21, %23 : vector<8x128xf32>
    %c0_11 = arith.constant 0 : index
    %c0_12 = arith.constant 0 : index
    %25 = vector.load %arg7[%c0_11, %c0_12] : memref<8x1xf32, #tpu.memory_space<vmem>>, vector<8x1xf32>
    %c0_13 = arith.constant 0 : index
    %c0_14 = arith.constant 0 : index
    %26 = vector.load %arg8[%c0_13, %c0_14] : memref<8x1xf32, #tpu.memory_space<vmem>>, vector<8x1xf32>
    %27 = vector.broadcast %25 : vector<8x1xf32> to vector<8x128xf32>
    %28 = arith.mulf %27, %24 : vector<8x128xf32>
    %29 = math.sin %28 : vector<8x128xf32>
    %30 = arith.mulf %29, %29 : vector<8x128xf32>
    %31 = vector.broadcast %26 : vector<8x1xf32> to vector<8x128xf32>
    %32 = arith.mulf %31, %30 : vector<8x128xf32>
    %33 = arith.addf %24, %32 : vector<8x128xf32>
    %c0_15 = arith.constant 0 : index
    %c0_16 = arith.constant 0 : index
    %34 = vector.load %arg9[%c0_15, %c0_16] : memref<8x8xf32, #tpu.memory_space<vmem>>, vector<8x8xf32>
    %cst_17 = arith.constant dense<0.000000e+00> : vector<8x128xf32>
    %35 = tpu.matmul %34, %33, %cst_17 {dimension_numbers = #tpu.dot_dimension_numbers<[1], [0], [0], [1], [0, 0, 1, 1], [], []>} : vector<8x8xf32>, vector<8x128xf32>, vector<8x128xf32> -> vector<8x128xf32>
    %c0_18 = arith.constant 0 : index
    %c0_19 = arith.constant 0 : index
    %36 = vector.load %arg10[%c0_18, %c0_19] : memref<8x1xf32, #tpu.memory_space<vmem>>, vector<8x1xf32>
    %37 = vector.broadcast %36 : vector<8x1xf32> to vector<8x128xf32>
    %38 = arith.addf %35, %37 : vector<8x128xf32>
    %39 = arith.addf %2, %38 : vector<8x128xf32>
    %c0_20 = arith.constant 0 : index
    %c0_21 = arith.constant 0 : index
    %c0_22 = arith.constant 0 : index
    %40 = vector.load %arg11[%c0_20, %c0_21, %c0_22] : memref<1x8x128xf32, #tpu.memory_space<vmem>>, vector<1x8x128xf32>
    %41 = vector.shape_cast %40 : vector<1x8x128xf32> to vector<8x128xf32>
    %42 = vector.shape_cast %39 : vector<8x128xf32> to vector<1x8x128xf32>
    tpu.vector_store %arg11[%c0_20, %c0_21, %c0_22], %42 {strides = array<i32>} : memref<1x8x128xf32, #tpu.memory_space<vmem>>, vector<1x8x128xf32>,
    return
  }
  func.func @transform_0(%arg0: i32, %arg1: i32) -> (i32, i32, i32, i32) {
    %c0_i32 = arith.constant 0 : i32
    %c0_i32_0 = arith.constant 0 : i32
    %c0_i32_1 = arith.constant 0 : i32
    return %arg0, %arg1, %c0_i32, %c0_i32_0 : i32, i32, i32, i32
  }
  func.func @transform_1(%arg0: i32, %arg1: i32) -> (i32, i32) {
    %c0_i32 = arith.constant 0 : i32
    %c0_i32_0 = arith.constant 0 : i32
    %c0_i32_1 = arith.constant 0 : i32
    return %c0_i32, %c0_i32_0 : i32, i32
  }
  func.func @transform_2(%arg0: i32, %arg1: i32) -> (i32, i32) {
    %c0_i32 = arith.constant 0 : i32
    %c0_i32_0 = arith.constant 0 : i32
    %c0_i32_1 = arith.constant 0 : i32
    return %c0_i32, %c0_i32_0 : i32, i32
  }
  func.func @transform_3(%arg0: i32, %arg1: i32) -> (i32, i32) {
    %c0_i32 = arith.constant 0 : i32
    %c0_i32_0 = arith.constant 0 : i32
    %c0_i32_1 = arith.constant 0 : i32
    return %c0_i32, %c0_i32_0 : i32, i32
  }
  func.func @transform_4(%arg0: i32, %arg1: i32) -> (i32, i32) {
    %c0_i32 = arith.constant 0 : i32
    %c0_i32_0 = arith.constant 0 : i32
    %c0_i32_1 = arith.constant 0 : i32
    return %c0_i32, %c0_i32_0 : i32, i32
  }
  func.func @transform_5(%arg0: i32, %arg1: i32) -> (i32, i32) {
    %c0_i32 = arith.constant 0 : i32
    %c0_i32_0 = arith.constant 0 : i32
    %c0_i32_1 = arith.constant 0 : i32
    return %c0_i32, %c0_i32_0 : i32, i32
  }
  func.func @transform_6(%arg0: i32, %arg1: i32) -> (i32, i32) {
    %c0_i32 = arith.constant 0 : i32
    %c0_i32_0 = arith.constant 0 : i32
    %c0_i32_1 = arith.constant 0 : i32
    return %c0_i32, %c0_i32_0 : i32, i32
  }
  func.func @transform_7(%arg0: i32, %arg1: i32) -> (i32, i32) {
    %c0_i32 = arith.constant 0 : i32
    %c0_i32_0 = arith.constant 0 : i32
    %c0_i32_1 = arith.constant 0 : i32
    return %c0_i32, %c0_i32_0 : i32, i32
  }
  func.func @transform_8(%arg0: i32, %arg1: i32) -> (i32, i32) {
    %c0_i32 = arith.constant 0 : i32
    %c0_i32_0 = arith.constant 0 : i32
    %c0_i32_1 = arith.constant 0 : i32
    return %c0_i32, %c0_i32_0 : i32, i32
  }
  func.func @transform_9(%arg0: i32, %arg1: i32) -> (i32, i32, i32) {
    %c0_i32 = arith.constant 0 : i32
    %c0_i32_0 = arith.constant 0 : i32
    return %arg0, %c0_i32, %arg1 : i32, i32, i32
  }
}

</mosaic_0001>

<llo_original>
// kernel: decoder_block_forward.4
$region0: #{decoder_block_forward.4}
  #allocation0 [shape = 'u32[]', space=smem, size = 0x4, offset = 0x4, fixed_abs, tag = 'smem constant byte address 0x4 - core index']
  #allocation1 [shape = 'u32[72,128]{1,0:T(1,128)}', space=vmem, size = 0x9000, scoped, tag = 'internal scratch']
  %s0 = inlined_call_operand.vmem [shape: f32[2,1,16,130], index: 0, kind: input, shape index: {}]
  %s1 = inlined_call_operand.vmem [shape: f32[16,1], index: 1, kind: input, shape index: {}]
  %s2 = inlined_call_operand.vmem [shape: f32[16,1], index: 2, kind: input, shape index: {}]
  %s3 = inlined_call_operand.vmem [shape: f32[2,8,32], index: 3, kind: input, shape index: {}]
  %s4 = inlined_call_operand.vmem [shape: f32[8,1], index: 4, kind: input, shape index: {}]
  %s5 = inlined_call_operand.vmem [shape: f32[2,2,8,128], index: 5, kind: output, shape index: {}]
  %s6 = sld [smem:[#allocation0]]
  $region53: #{decoder_block_forward.4} parent=0
    _
  %s8 = ssub.s32 1, %s6
  %s9 = scalar_select 0, %s8, %s6
  loop: start=0, step=1, limit=4
  $region2: #{decoder_block_forward.4} parent=0 // loop_pre_header
    _
  $region3: #{decoder_block_forward.4} parent=0 // loop_header
    %s11 = sphi 0, %s15
    %p12 = scmp.ge.s32.totalorder %s11, 4
    %s18 = sphi 0, %s30
    %s19 = sphi 0, %s26
    %s20 = sphi 0, %s18
    %s21 = sphi 0, %s19
    %s22 = sphi 0, %s20
    %s23 = sphi 0, %s21
    %s35 = sphi 0, %s37
    %s38 = sphi 0, %s35
    %s39 = sphi 0, %s38
    %s55 = sphi 0, %s39
    %s59 = sphi 0, %s59
    %s61 = sphi 0, %s59
    %s62 = sphi 0, %s61
    %s76 = sphi 0, %s62
    %s80 = sphi 0, %s80
    %s82 = sphi 0, %s80
    %s83 = sphi 0, %s82
    %s97 = sphi 0, %s83
    %s101 = sphi 0, %s101
    %s103 = sphi 0, %s101
    %s104 = sphi 0, %s103
    %s118 = sphi 0, %s104
    %s122 = sphi 0, %s122
    %s124 = sphi 0, %s122
    %s125 = sphi 0, %s124
    %s139 = sphi 0, %s125
    %s147 = sphi 0, %s149
    %s150 = sphi 0, %s147
    %s151 = sphi 0, %s150
    %s167 = sphi 0, %s151
  $region4: #{decoder_block_forward.4} parent=0 // loop_header_branch
    %14 = sbr.rel (%p12) target = $region8
  $region5: #{decoder_block_forward.4} parent=0 // loop_body
    %s16 = ssub.s32 %s11, 1
    %s17 = ssub.s32 %s11, 2
    %s24 = sadd.s32 1, %s19
    %p25 = scmp.ge.s32.totalorder %s24, 1
    %s26 = scalar_select %p25, 0, %s24
    %s27 = sadd.s32 1, %s18
    %s28 = scalar_select %p25, %s27, %s18
    %p29 = scmp.ge.s32.totalorder %s28, 2
    %s30 = scalar_select %p29, 0, %s28
    %s31 = ssub.s32 %s18, %s30
    %s32 = ssub.s32 %s19, %s26
    %s33 = sor.u32 %s31, %s32
    %p34 = scmp.eq.s32.totalorder %s33, 0
    %s36 = sadd.s32 %s35, 1
    %s37 = scalar_select %p34, %s35, %s36
    %p40 = pneg %p34
    %p41 = scmp.eq.s32.totalorder %s11, 1
    %p42 = por %p40, %p41
    %p43 = scmp.ne.s32.totalorder %s35, %s38
    %p44 = scmp.eq.s32.totalorder %s11, 0
    %p45 = por %p43, %p44
    %p46 = scmp.ne.s32.totalorder %s35, %s38
    %p47 = scmp.eq.s32.totalorder %s16, 1
    %p48 = por %p46, %p47
    %p49 = scmp.ne.s32.totalorder %s38, %s39
    %p50 = scmp.eq.s32.totalorder %s16, 0
    %p51 = por %p49, %p50
    %p52 = scmp.ne.s32.totalorder %s38, %s39
    %p53 = scmp.eq.s32.totalorder %s17, 1
    %p54 = por %p52, %p53
    %p56 = scmp.ne.s32.totalorder %s39, %s55
    %p57 = scmp.eq.s32.totalorder %s17, 0
    %p58 = por %p56, %p57
    %s60 = sadd.s32 %s59, 1
    %p63 = scmp.eq.s32.totalorder %s11, 1
    %p64 = scmp.ne.s32.totalorder %s59, %s61
    %p65 = scmp.eq.s32.totalorder %s11, 0
    %p66 = por %p64, %p65
    %p67 = scmp.ne.s32.totalorder %s59, %s61
    %p68 = scmp.eq.s32.totalorder %s16, 1
    %p69 = por %p67, %p68
    %p70 = scmp.ne.s32.totalorder %s61, %s62
    %p71 = scmp.eq.s32.totalorder %s16, 0
    %p72 = por %p70, %p71
    %p73 = scmp.ne.s32.totalorder %s61, %s62
    %p74 = scmp.eq.s32.totalorder %s17, 1
    %p75 = por %p73, %p74
    %p77 = scmp.ne.s32.totalorder %s62, %s76
    %p78 = scmp.eq.s32.totalorder %s17, 0
    %p79 = por %p77, %p78
    %s81 = sadd.s32 %s80, 1
    %p84 = scmp.eq.s32.totalorder %s11, 1
    %p85 = scmp.ne.s32.totalorder %s80, %s82
    %p86 = scmp.eq.s32.totalorder %s11, 0
    %p87 = por %p85, %p86
    %p88 = scmp.ne.s32.totalorder %s80, %s82
    %p89 = scmp.eq.s32.totalorder %s16, 1
    %p90 = por %p88, %p89
    %p91 = scmp.ne.s32.totalorder %s82, %s83
    %p92 = scmp.eq.s32.totalorder %s16, 0
    %p93 = por %p91, %p92
    %p94 = scmp.ne.s32.totalorder %s82, %s83
    %p95 = scmp.eq.s32.totalorder %s17, 1
    %p96 = por %p94, %p95
    %p98 = scmp.ne.s32.totalorder %s83, %s97
    %p99 = scmp.eq.s32.totalorder %s17, 0
    %p100 = por %p98, %p99
    %s102 = sadd.s32 %s101, 1
    %p105 = scmp.eq.s32.totalorder %s11, 1
    %p106 = scmp.ne.s32.totalorder %s101, %s103
    %p107 = scmp.eq.s32.totalorder %s11, 0
    %p108 = por %p106, %p107
    %p109 = scmp.ne.s32.totalorder %s101, %s103
    %p110 = scmp.eq.s32.totalorder %s16, 1
    %p111 = por %p109, %p110
    %p112 = scmp.ne.s32.totalorder %s103, %s104
    %p113 = scmp.eq.s32.totalorder %s16, 0
    %p114 = por %p112, %p113
    %p115 = scmp.ne.s32.totalorder %s103, %s104
    %p116 = scmp.eq.s32.totalorder %s17, 1
    %p117 = por %p115, %p116
    %p119 = scmp.ne.s32.totalorder %s104, %s118
    %p120 = scmp.eq.s32.totalorder %s17, 0
    %p121 = por %p119, %p120
    %s123 = sadd.s32 %s122, 1
    %p126 = scmp.eq.s32.totalorder %s11, 1
    %p127 = scmp.ne.s32.totalorder %s122, %s124
    %p128 = scmp.eq.s32.totalorder %s11, 0
    %p129 = por %p127, %p128
    %p130 = scmp.ne.s32.totalorder %s122, %s124
    %p131 = scmp.eq.s32.totalorder %s16, 1
    %p132 = por %p130, %p131
    %p133 = scmp.ne.s32.totalorder %s124, %s125
    %p134 = scmp.eq.s32.totalorder %s16, 0
    %p135 = por %p133, %p134
    %p136 = scmp.ne.s32.totalorder %s124, %s125
    %p137 = scmp.eq.s32.totalorder %s17, 1
    %p138 = por %p136, %p137
    %p140 = scmp.ne.s32.totalorder %s125, %s139
    %p141 = scmp.eq.s32.totalorder %s17, 0
    %p142 = por %p140, %p141
    %s143 = ssub.s32 %s18, %s30
    %s144 = ssub.s32 %s19, %s26
    %s145 = sor.u32 %s143, %s144
    %p146 = scmp.eq.s32.totalorder %s145, 0
    %s148 = sadd.s32 %s147, 1
    %s149 = scalar_select %p146, %s147, %s148
    %p152 = pneg %p146
    %p153 = scmp.eq.s32.totalorder %s11, 1
    %p154 = por %p152, %p153
    %p155 = scmp.ne.s32.totalorder %s147, %s150
    %p156 = scmp.eq.s32.totalorder %s11, 0
    %p157 = por %p155, %p156
    %p158 = scmp.ne.s32.totalorder %s147, %s150
    %p159 = scmp.eq.s32.totalorder %s16, 1
    %p160 = por %p158, %p159
    %p161 = scmp.ne.s32.totalorder %s150, %s151
    %p162 = scmp.eq.s32.totalorder %s16, 0
    %p163 = por %p161, %p162
    %p164 = scmp.ne.s32.totalorder %s150, %s151
    %p165 = scmp.eq.s32.totalorder %s17, 1
    %p166 = por %p164, %p165
    %p168 = scmp.ne.s32.totalorder %s151, %s167
    %p169 = scmp.eq.s32.totalorder %s17, 0
    %p170 = por %p168, %p169
    %p171 = scmp.le.s32.totalorder 1, %s11
    %p172 = scmp.lt.s32.totalorder %s11, 3
    %p173 = pnand %p171, %p172
    %p174 = pneg %p173
    // Predicated region
    $region9: #{decoder_block_forward.4} parent=5 // pred_check
      _
    $region10: #{decoder_block_forward.4} parent=5 // pred_check_branch
      %176 = sbr.rel (%p173) target = $region12
    $region11: #{decoder_block_forward.4} parent=5 // pred_region
      %s177 = ssub.s32 %s11, 1
      // Predicated region
      $region13: #{decoder_block_forward.4} parent=11 // pred_check
        %p178 = pneg %p72
      $region14: #{decoder_block_forward.4} parent=11 // pred_check_branch
        %180 = sbr.rel (%p178) target = $region16
      $region15: #{decoder_block_forward.4} parent=11 // pred_region
        _
      $region16: #{decoder_block_forward.4} parent=11 // pred_fallthru
        _
      // Predicated region
      $region17: #{decoder_block_forward.4} parent=11 // pred_check
        %p181 = pneg %p93
      $region18: #{decoder_block_forward.4} parent=11 // pred_check_branch
        %183 = sbr.rel (%p181) target = $region20
      $region19: #{decoder_block_forward.4} parent=11 // pred_region
        _
      $region20: #{decoder_block_forward.4} parent=11 // pred_fallthru
        _
      // Predicated region
      $region21: #{decoder_block_forward.4} parent=11 // pred_check
        %p184 = pneg %p114
      $region22: #{decoder_block_forward.4} parent=11 // pred_check_branch
        %186 = sbr.rel (%p184) target = $region24
      $region23: #{decoder_block_forward.4} parent=11 // pred_region
        _
      $region24: #{decoder_block_forward.4} parent=11 // pred_fallthru
        _
      // Predicated region
      $region25: #{decoder_block_forward.4} parent=11 // pred_check
        %p187 = pneg %p135
      $region26: #{decoder_block_forward.4} parent=11 // pred_check_branch
        %189 = sbr.rel (%p187) target = $region28
      $region27: #{decoder_block_forward.4} parent=11 // pred_region
        _
      $region28: #{decoder_block_forward.4} parent=11 // pred_fallthru
        _
    $region12: #{decoder_block_forward.4} parent=5 // pred_fallthru
      _
    %p190 = scmp.lt.s32.totalorder %s11, 2
    // Predicated region
    $region29: #{decoder_block_forward.4} parent=5 // pred_check
      %p191 = pneg %p190
    $region30: #{decoder_block_forward.4} parent=5 // pred_check_branch
      %193 = sbr.rel (%p191) target = $region32
    $region31: #{decoder_block_forward.4} parent=5 // pred_region
      // Predicated region
      $region33: #{decoder_block_forward.4} parent=31 // pred_check
        %p194 = pneg %p45
      $region34: #{decoder_block_forward.4} parent=31 // pred_check_branch
        %196 = sbr.rel (%p194) target = $region36
      $region35: #{decoder_block_forward.4} parent=31 // pred_region
        %p197 = scmp.lt.s32.totalorder %s18, 1
        %s198 = scalar_select %p197, %s18, 1
        %p199 = scmp.lt.s32.totalorder %s19, 0
        %s200 = scalar_select %p199, %s19, 0
        %s201 = smul.addr %s200, 4
        %s202 = smul.addr %s198, 4
        %s203 = sadd.s32 %s201, %s202
        %s204 = smul.addr %s203, 8
        %s205 = scalar_lea.vmem %s0, %s204
      $region36: #{decoder_block_forward.4} parent=31 // pred_fallthru
        _
    $region32: #{decoder_block_forward.4} parent=5 // pred_fallthru
      _
    %p206 = scmp.le.s32.totalorder 1, %s11
    %p207 = scmp.lt.s32.totalorder %s11, 3
    %p208 = pnand %p206, %p207
    %p209 = pneg %p208
    // Predicated region
    $region37: #{decoder_block_forward.4} parent=5 // pred_check
      _
    $region38: #{decoder_block_forward.4} parent=5 // pred_check_branch
      %211 = sbr.rel (%p208) target = $region40
    $region39: #{decoder_block_forward.4} parent=5 // pred_region
      %s212 = ssub.s32 %s11, 1
      %p213 = scmp.lt.s32.totalorder %s20, 1
      %s214 = scalar_select %p213, %s20, 1
      %p215 = scmp.lt.s32.totalorder %s21, 0
      %s216 = scalar_select %p215, %s21, 0
      %s217 = smul.addr %s216, 4
      %s218 = smul.addr %s214, 4
      %s219 = sadd.s32 %s217, %s218
      %s220 = smul.addr %s219, 8
      %s221 = scalar_lea.vmem %s0, %s220
      %p222 = pneg %p51
      %p223 = pneg %p48
      %p224 = pneg %p72
      %p225 = pneg %p69
      %p226 = pneg %p93
      %p227 = pneg %p90
      %p228 = pneg %p114
      %p229 = pneg %p111
      %p230 = pneg %p135
      %p231 = pneg %p132
      %p232 = pneg %p163
      %p233 = pneg %p160
      %p234 = scmp.lt.s32.totalorder %s20, 1
      %s235 = scalar_select %p234, %s20, 1
      %p236 = scmp.lt.s32.totalorder %s21, 0
      %s237 = scalar_select %p236, %s21, 0
      %s238 = smul.addr %s235, 2
      %s239 = sadd.s32 %s237, %s238
      %s240 = smul.addr %s239, 8
      %s241 = scalar_lea.vmem %s5, %s240
      %p242 = scmp.lt.s32.totalorder %s20, 1
      %s243 = scalar_select %p242, %s20, 1
      %p244 = scmp.lt.s32.totalorder %s21, 0
      %s245 = scalar_select %p244, %s21, 0
      %s246 = smul.addr %s245, 4
      %s247 = smul.addr %s243, 4
      %s248 = sadd.s32 %s246, %s247
      %s249 = smul.addr %s248, 8
      %s250 = scalar_lea.vmem %s0, %s249
      %p251 = scmp.lt.s32.totalorder %s20, 1
      %s252 = scalar_select %p251, %s20, 1
      %p253 = scmp.lt.s32.totalorder %s21, 0
      %s254 = scalar_select %p253, %s21, 0
      %s255 = smul.addr %s252, 2
      %s256 = sadd.s32 %s254, %s255
      %s257 = smul.addr %s256, 8
      %s258 = scalar_lea.vmem %s5, %s257
      %v259 = vld [vmem:[%s250] sm:$0xff]
      %v260 = vld [vmem:[%s250 + $0x8] sm:$0xff]
      %v261 = vld [vmem:[%s250 + $0x10] sm:$0xff]
      %v262 = vld [vmem:[%s250 + $0x18] sm:$0xff]
      %v263 = vld [vmem:[%s1] sm:$0xff]
      %v264 = vld [vmem:[%s1 + $0x8] sm:$0xff]
      %v265 = vld [vmem:[%s2] sm:$0xff]
      %v266 = vld [vmem:[%s2 + $0x8] sm:$0xff]
      %268 = vset.pattern.permute.xlu0 0
      %269 = vperm.xlu0 %268, %v263
      %v270 = vpop.permute.xlu0 %269
      %273 = vset.pattern.permute.xlu0 0
      %274 = vperm.xlu0 %273, %v264
      %v275 = vpop.permute.xlu0 %274
      %v277 = vmul.f32 %v270, %v259
      %v278 = vmul.f32 %v270, %v260
      %v279 = vmul.f32 %v275, %v261
      %v280 = vmul.f32 %v275, %v262
      %v281 = vand.u32 2147483647, %v277
      %vm282 = vcmp.le.f32.partialorder %v281, 0.7853982
      %vm283 = vcmp.lt.s32.totalorder %v277, 0
      %v284 = vand.u32 %v277, 2139095040
      %v285 = vshrl.u32 %v284, 23
      %v286 = vsub.s32 %v285, 127
      %v287 = vand.u32 2147483647, %v277
      %v288 = vand.u32 %v287, 8388607
      %v289 = vor.u32 %v288, 8388608
      %v290 = vsub.s32 0, %v289
      %v291 = vadd.s32 %v286, 1
      %vm292 = vcmp.gt.s32.totalorder %v291, 0
      %v293 = vsel %vm292, %v291, 0
      %v294 = vshrl.u32 %v293, 5
      %v295 = vand.u32 %v293, 31
      %v296 = vsub.s32 32, %v295
      %v297 = vshrl.u32 683565275, %v296
      %v298 = vshll.u32 683565275, %v295
      %v299 = vshrl.u32 2475754826, %v296
      %v300 = vor.u32 %v298, %v299
      %v301 = vshll.u32 2475754826, %v295
      %v302 = vshrl.u32 2131351028, %v296
      %v303 = vor.u32 %v301, %v302
      %v304 = vshll.u32 2131351028, %v295
      %v305 = vshrl.u32 2102212464, %v296
      %v306 = vor.u32 %v304, %v305
      %v307 = vshll.u32 2102212464, %v295
      %v308 = vshrl.u32 920167782, %v296
      %v309 = vor.u32 %v307, %v308
      %v310 = vshll.u32 920167782, %v295
      %v311 = vshrl.u32 1326507024, %v296
      %v312 = vor.u32 %v310, %v311
      %vm313 = vcmp.lt.s32.totalorder %v294, 1
      %vm314 = vcmp.lt.s32.totalorder %v294, 2
      %vm315 = vcmp.lt.s32.totalorder %v294, 3
      %vm316 = vcmp.lt.s32.totalorder %v294, 4
      %v317 = vsel %vm313, %v297, %v300
      %v318 = vsel %vm316, %v306, 2102212464
      %v319 = vsel %vm315, %v303, %v318
      %v320 = vsel %vm314, %v317, %v319
      %v321 = vsel %vm313, %v300, %v303
      %v322 = vsel %vm316, %v309, 920167782
      %v323 = vsel %vm315, %v306, %v322
      %v324 = vsel %vm314, %v321, %v323
      %v325 = vsel %vm313, %v303, %v306
      %v326 = vsel %vm316, %v312, 1326507024
      %v327 = vsel %vm315, %v309, %v326
      %v328 = vsel %vm314, %v325, %v327
      %v329 = vshll.u32 %v289, 8
      %v330 = vand.u32 %v329, 65535
      %v331 = vshrl.u32 %v329, 16
      %v332 = vand.u32 %v328, 65535
      %v333 = vshrl.u32 %v328, 16
      %v334 = vmul.u32 %v330, %v332
      %v335 = vmul.u32 %v330, %v333
      %v336 = vmul.u32 %v331, %v332
      %v337 = vmul.u32 %v331, %v333
      %v338 = vshll.u32 %v335, 16
      %v339 = vshrl.u32 %v335, 16
      %v340 = vshll.u32 %v336, 16
      %v341 = vshrl.u32 %v336, 16
      %vm342 = vc.u32 %v334, %v338
      %v343 = vsel %vm342, 1, 0
      %v344 = vadd.s32 %v334, %v338
      %v345 = vadd.s32 %v337, %v343
      %vm346 = vc.u32 %v344, %v340
      %v347 = vsel %vm346, 1, 0
      %v348 = vadd.s32 %v344, %v340
      %v349 = vadd.s32 %v345, %v347
      %v350 = vadd.s32 %v349, %v339
      %v351 = vadd.s32 %v350, %v341
      %v352 = vand.u32 %v329, 65535
      %v353 = vshrl.u32 %v329, 16
      %v354 = vand.u32 %v324, 65535
      %v355 = vshrl.u32 %v324, 16
      %v356 = vmul.u32 %v352, %v354
      %v357 = vmul.u32 %v352, %v355
      %v358 = vmul.u32 %v353, %v354
      %v359 = vmul.u32 %v353, %v355
      %v360 = vshll.u32 %v357, 16
      %v361 = vshrl.u32 %v357, 16
      %v362 = vshll.u32 %v358, 16
      %v363 = vshrl.u32 %v358, 16
      %vm364 = vc.u32 %v356, %v360
      %v365 = vsel %vm364, 1, 0
      %v366 = vadd.s32 %v356, %v360
      %v367 = vadd.s32 %v359, %v365
      %vm368 = vc.u32 %v366, %v362
      %v369 = vsel %vm368, 1, 0
      %v370 = vadd.s32 %v366, %v362
      %v371 = vadd.s32 %v367, %v369
      %v372 = vadd.s32 %v371, %v361
      %v373 = vadd.s32 %v372, %v363
      %v374 = vmul.u32 %v329, %v320
      %v375 = vadd.s32 %v351, %v370
      %vm376 = vc.u32 %v351, %v370
      %v377 = vadd.s32 %v373, 1
      %v378 = vsel %vm376, %v377, %v373
      %v379 = vadd.s32 %v374, %v378
      %v380 = vadd.s32 %v379, 536870912
      %v381 = vshrl.u32 %v380, 30
      %v382 = vshll.u32 %v381, 30
      %v383 = vsub.s32 %v379, %v382
      %vm384 = vcmp.lt.s32.totalorder %v383, 0
      %v385 = vsub.s32 0, %v383
      %v386 = vsel %vm384, %v385, %v383
      %v387 = vclz %v386
      %v388 = vsub.s32 %v387, 2
      %vm389 = vcmp.gt.s32.totalorder 0, %v388
      %v390 = vsel %vm389, 0, %v388
      %v391 = vsub.s32 32, %v390
      %v392 = vshll.u32 %v383, %v390
      %v393 = vshrl.u32 %v375, %v391
      %v394 = vor.u32 %v392, %v393
      %v395 = vsub.s32 4294967266, %v390
      %v396 = vadd.s32 %v395, 127
      %v397 = vshll.u32 %v396, 23
      %v398 = vor.u32 4788187, %v397
      %v399 = vand.u32 2147483647, %v398
      %v401 = vcvt.s32.f32 %v394
      %v402 = vmul.f32 %v401, %v399
      %v403 = vxor.u32 %v402, 2147483648
      %v404 = vsel %vm283, %v403, %v402
      %v405 = vsub.s32 4, %v381
      %v406 = vsel %vm283, %v405, %v381
      %v407 = vsel %vm282, %v277, %v404
      %v408 = vsel %vm282, 0, %v406
      %v409 = vmul.f32 %v407, %v407
      %v410 = vmul.f32 %v409, -0.001358992
      %v411 = vadd.f32 %v410, 0.041655596
      %v412 = vmul.f32 %v409, %v411
      %v413 = vadd.f32 %v412, -0.4999988
      %v414 = vmul.f32 %v409, %v413
      %v415 = vadd.f32 1.0, %v414
      %v416 = vmul.f32 %v407, %v407
      %v417 = vmul.f32 %v416, -0.00019511016
      %v418 = vadd.f32 %v417, 0.008332121
      %v419 = vmul.f32 %v416, %v418
      %v420 = vadd.f32 %v419, -0.16666654
      %v421 = vmul.f32 %v416, %v420
      %v422 = vadd.f32 %v421, 1.0
      %v423 = vmul.f32 %v422, %v407
      %vm424 = vweird.f32 %v277
      %v425 = vadd.s32 %v408, 3
      %v426 = vand.u32 %v425, 3
      %vm427 = vcmp.lt.s32.totalorder %v426, 2
      %vm428 = vcmp.eq.s32.totalorder %v426, 0
      %v429 = vxor.u32 %v423, 2147483648
      %v430 = vsel %vm428, %v415, %v429
      %vm431 = vcmp.eq.s32.totalorder %v426, 2
      %v432 = vxor.u32 %v415, 2147483648
      %v433 = vsel %vm431, %v432, %v423
      %v434 = vsel %vm427, %v430, %v433
      %v435 = vsel %vm424, nan, %v434
      %v436 = vand.u32 2147483647, %v278
      %vm437 = vcmp.le.f32.partialorder %v436, 0.7853982
      %vm438 = vcmp.lt.s32.totalorder %v278, 0
      %v439 = vand.u32 %v278, 2139095040
      %v440 = vshrl.u32 %v439, 23
      %v441 = vsub.s32 %v440, 127
      %v442 = vand.u32 2147483647, %v278
      %v443 = vand.u32 %v442, 8388607
      %v444 = vor.u32 %v443, 8388608
      %v445 = vsub.s32 0, %v444
      %v446 = vadd.s32 %v441, 1
      %vm447 = vcmp.gt.s32.totalorder %v446, 0
      %v448 = vsel %vm447, %v446, 0
      %v449 = vshrl.u32 %v448, 5
      %v450 = vand.u32 %v448, 31
      %v451 = vsub.s32 32, %v450
      %v452 = vshrl.u32 683565275, %v451
      %v453 = vshll.u32 683565275, %v450
      %v454 = vshrl.u32 2475754826, %v451
      %v455 = vor.u32 %v453, %v454
      %v456 = vshll.u32 2475754826, %v450
      %v457 = vshrl.u32 2131351028, %v451
      %v458 = vor.u32 %v456, %v457
      %v459 = vshll.u32 2131351028, %v450
      %v460 = vshrl.u32 2102212464, %v451
      %v461 = vor.u32 %v459, %v460
      %v462 = vshll.u32 2102212464, %v450
      %v463 = vshrl.u32 920167782, %v451
      %v464 = vor.u32 %v462, %v463
      %v465 = vshll.u32 920167782, %v450
      %v466 = vshrl.u32 1326507024, %v451
      %v467 = vor.u32 %v465, %v466
      %vm468 = vcmp.lt.s32.totalorder %v449, 1
      %vm469 = vcmp.lt.s32.totalorder %v449, 2
      %vm470 = vcmp.lt.s32.totalorder %v449, 3
      %vm471 = vcmp.lt.s32.totalorder %v449, 4
      %v472 = vsel %vm468, %v452, %v455
      %v473 = vsel %vm471, %v461, 2102212464
      %v474 = vsel %vm470, %v458, %v473
      %v475 = vsel %vm469, %v472, %v474
      %v476 = vsel %vm468, %v455, %v458
      %v477 = vsel %vm471, %v464, 920167782
      %v478 = vsel %vm470, %v461, %v477
      %v479 = vsel %vm469, %v476, %v478
      %v480 = vsel %vm468, %v458, %v461
      %v481 = vsel %vm471, %v467, 1326507024
      %v482 = vsel %vm470, %v464, %v481
      %v483 = vsel %vm469, %v480, %v482
      %v484 = vshll.u32 %v444, 8
      %v485 = vand.u32 %v484, 65535
      %v486 = vshrl.u32 %v484, 16
      %v487 = vand.u32 %v483, 65535
      %v488 = vshrl.u32 %v483, 16
      %v489 = vmul.u32 %v485, %v487
      %v490 = vmul.u32 %v485, %v488
      %v491 = vmul.u32 %v486, %v487
      %v492 = vmul.u32 %v486, %v488
      %v493 = vshll.u32 %v490, 16
      %v494 = vshrl.u32 %v490, 16
      %v495 = vshll.u32 %v491, 16
      %v496 = vshrl.u32 %v491, 16
      %vm497 = vc.u32 %v489, %v493
      %v498 = vsel %vm497, 1, 0
      %v499 = vadd.s32 %v489, %v493
      %v500 = vadd.s32 %v492, %v498
      %vm501 = vc.u32 %v499, %v495
      %v502 = vsel %vm501, 1, 0
      %v503 = vadd.s32 %v499, %v495
      %v504 = vadd.s32 %v500, %v502
      %v505 = vadd.s32 %v504, %v494
      %v506 = vadd.s32 %v505, %v496
      %v507 = vand.u32 %v484, 65535
      %v508 = vshrl.u32 %v484, 16
      %v509 = vand.u32 %v479, 65535
      %v510 = vshrl.u32 %v479, 16
      %v511 = vmul.u32 %v507, %v509
      %v512 = vmul.u32 %v507, %v510
      %v513 = vmul.u32 %v508, %v509
      %v514 = vmul.u32 %v508, %v510
      %v515 = vshll.u32 %v512, 16
      %v516 = vshrl.u32 %v512, 16
      %v517 = vshll.u32 %v513, 16
      %v518 = vshrl.u32 %v513, 16
      %vm519 = vc.u32 %v511, %v515
      %v520 = vsel %vm519, 1, 0
      %v521 = vadd.s32 %v511, %v515
      %v522 = vadd.s32 %v514, %v520
      %vm523 = vc.u32 %v521, %v517
      %v524 = vsel %vm523, 1, 0
      %v525 = vadd.s32 %v521, %v517
      %v526 = vadd.s32 %v522, %v524
      %v527 = vadd.s32 %v526, %v516
      %v528 = vadd.s32 %v527, %v518
      %v529 = vmul.u32 %v484, %v475
      %v530 = vadd.s32 %v506, %v525
      %vm531 = vc.u32 %v506, %v525
      %v532 = vadd.s32 %v528, 1
      %v533 = vsel %vm531, %v532, %v528
      %v534 = vadd.s32 %v529, %v533
      %v535 = vadd.s32 %v534, 536870912
      %v536 = vshrl.u32 %v535, 30
      %v537 = vshll.u32 %v536, 30
      %v538 = vsub.s32 %v534, %v537
      %vm539 = vcmp.lt.s32.totalorder %v538, 0
      %v540 = vsub.s32 0, %v538
      %v541 = vsel %vm539, %v540, %v538
      %v542 = vclz %v541
      %v543 = vsub.s32 %v542, 2
      %vm544 = vcmp.gt.s32.totalorder 0, %v543
      %v545 = vsel %vm544, 0, %v543
      %v546 = vsub.s32 32, %v545
      %v547 = vshll.u32 %v538, %v545
      %v548 = vshrl.u32 %v530, %v546
      %v549 = vor.u32 %v547, %v548
      %v550 = vsub.s32 4294967266, %v545
      %v551 = vadd.s32 %v550, 127
      %v552 = vshll.u32 %v551, 23
      %v553 = vor.u32 4788187, %v552
      %v554 = vand.u32 2147483647, %v553
      %v556 = vcvt.s32.f32 %v549
      %v557 = vmul.f32 %v556, %v554
      %v558 = vxor.u32 %v557, 2147483648
      %v559 = vsel %vm438, %v558, %v557
      %v560 = vsub.s32 4, %v536
      %v561 = vsel %vm438, %v560, %v536
      %v562 = vsel %vm437, %v278, %v559
      %v563 = vsel %vm437, 0, %v561
      %v564 = vmul.f32 %v562, %v562
      %v565 = vmul.f32 %v564, -0.001358992
      %v566 = vadd.f32 %v565, 0.041655596
      %v567 = vmul.f32 %v564, %v566
      %v568 = vadd.f32 %v567, -0.4999988
      %v569 = vmul.f32 %v564, %v568
      %v570 = vadd.f32 1.0, %v569
      %v571 = vmul.f32 %v562, %v562
      %v572 = vmul.f32 %v571, -0.00019511016
      %v573 = vadd.f32 %v572, 0.008332121
      %v574 = vmul.f32 %v571, %v573
      %v575 = vadd.f32 %v574, -0.16666654
      %v576 = vmul.f32 %v571, %v575
      %v577 = vadd.f32 %v576, 1.0
      %v578 = vmul.f32 %v577, %v562
      %vm579 = vweird.f32 %v278
      %v580 = vadd.s32 %v563, 3
      %v581 = vand.u32 %v580, 3
      %vm582 = vcmp.lt.s32.totalorder %v581, 2
      %vm583 = vcmp.eq.s32.totalorder %v581, 0
      %v584 = vxor.u32 %v578, 2147483648
      %v585 = vsel %vm583, %v570, %v584
      %vm586 = vcmp.eq.s32.totalorder %v581, 2
      %v587 = vxor.u32 %v570, 2147483648
      %v588 = vsel %vm586, %v587, %v578
      %v589 = vsel %vm582, %v585, %v588
      %v590 = vsel %vm579, nan, %v589
      %v591 = vand.u32 2147483647, %v279
      %vm592 = vcmp.le.f32.partialorder %v591, 0.7853982
      %vm593 = vcmp.lt.s32.totalorder %v279, 0
      %v594 = vand.u32 %v279, 2139095040
      %v595 = vshrl.u32 %v594, 23
      %v596 = vsub.s32 %v595, 127
      %v597 = vand.u32 2147483647, %v279
      %v598 = vand.u32 %v597, 8388607
      %v599 = vor.u32 %v598, 8388608
      %v600 = vsub.s32 0, %v599
      %v601 = vadd.s32 %v596, 1
      %vm602 = vcmp.gt.s32.totalorder %v601, 0
      %v603 = vsel %vm602, %v601, 0
      %v604 = vshrl.u32 %v603, 5
      %v605 = vand.u32 %v603, 31
      %v606 = vsub.s32 32, %v605
      %v607 = vshrl.u32 683565275, %v606
      %v608 = vshll.u32 683565275, %v605
      %v609 = vshrl.u32 2475754826, %v606
      %v610 = vor.u32 %v608, %v609
      %v611 = vshll.u32 2475754826, %v605
      %v612 = vshrl.u32 2131351028, %v606
      %v613 = vor.u32 %v611, %v612
      %v614 = vshll.u32 2131351028, %v605
      %v615 = vshrl.u32 2102212464, %v606
      %v616 = vor.u32 %v614, %v615
      %v617 = vshll.u32 2102212464, %v605
      %v618 = vshrl.u32 920167782, %v606
      %v619 = vor.u32 %v617, %v618
      %v620 = vshll.u32 920167782, %v605
      %v621 = vshrl.u32 1326507024, %v606
      %v622 = vor.u32 %v620, %v621
      %vm623 = vcmp.lt.s32.totalorder %v604, 1
      %vm624 = vcmp.lt.s32.totalorder %v604, 2
      %vm625 = vcmp.lt.s32.totalorder %v604, 3
      %vm626 = vcmp.lt.s32.totalorder %v604, 4
      %v627 = vsel %vm623, %v607, %v610
      %v628 = vsel %vm626, %v616, 2102212464
      %v629 = vsel %vm625, %v613, %v628
      %v630 = vsel %vm624, %v627, %v629
      %v631 = vsel %vm623, %v610, %v613
      %v632 = vsel %vm626, %v619, 920167782
      %v633 = vsel %vm625, %v616, %v632
      %v634 = vsel %vm624, %v631, %v633
      %v635 = vsel %vm623, %v613, %v616
      %v636 = vsel %vm626, %v622, 1326507024
      %v637 = vsel %vm625, %v619, %v636
      %v638 = vsel %vm624, %v635, %v637
      %v639 = vshll.u32 %v599, 8
      %v640 = vand.u32 %v639, 65535
      %v641 = vshrl.u32 %v639, 16
      %v642 = vand.u32 %v638, 65535
      %v643 = vshrl.u32 %v638, 16
      %v644 = vmul.u32 %v640, %v642
      %v645 = vmul.u32 %v640, %v643
      %v646 = vmul.u32 %v641, %v642
      %v647 = vmul.u32 %v641, %v643
      %v648 = vshll.u32 %v645, 16
      %v649 = vshrl.u32 %v645, 16
      %v650 = vshll.u32 %v646, 16
      %v651 = vshrl.u32 %v646, 16
      %vm652 = vc.u32 %v644, %v648
      %v653 = vsel %vm652, 1, 0
      %v654 = vadd.s32 %v644, %v648
      %v655 = vadd.s32 %v647, %v653
      %vm656 = vc.u32 %v654, %v650
      %v657 = vsel %vm656, 1, 0
      %v658 = vadd.s32 %v654, %v650
      %v659 = vadd.s32 %v655, %v657
      %v660 = vadd.s32 %v659, %v649
      %v661 = vadd.s32 %v660, %v651
      %v662 = vand.u32 %v639, 65535
      %v663 = vshrl.u32 %v639, 16
      %v664 = vand.u32 %v634, 65535
      %v665 = vshrl.u32 %v634, 16
      %v666 = vmul.u32 %v662, %v664
      %v667 = vmul.u32 %v662, %v665
      %v668 = vmul.u32 %v663, %v664
      %v669 = vmul.u32 %v663, %v665
      %v670 = vshll.u32 %v667, 16
      %v671 = vshrl.u32 %v667, 16
      %v672 = vshll.u32 %v668, 16
      %v673 = vshrl.u32 %v668, 16
      %vm674 = vc.u32 %v666, %v670
      %v675 = vsel %vm674, 1, 0
      %v676 = vadd.s32 %v666, %v670
      %v677 = vadd.s32 %v669, %v675
      %vm678 = vc.u32 %v676, %v672
      %v679 = vsel %vm678, 1, 0
      %v680 = vadd.s32 %v676, %v672
      %v681 = vadd.s32 %v677, %v679
      %v682 = vadd.s32 %v681, %v671
      %v683 = vadd.s32 %v682, %v673
      %v684 = vmul.u32 %v639, %v630
      %v685 = vadd.s32 %v661, %v680
      %vm686 = vc.u32 %v661, %v680
      %v687 = vadd.s32 %v683, 1
      %v688 = vsel %vm686, %v687, %v683
      %v689 = vadd.s32 %v684, %v688
      %v690 = vadd.s32 %v689, 536870912
      %v691 = vshrl.u32 %v690, 30
      %v692 = vshll.u32 %v691, 30
      %v693 = vsub.s32 %v689, %v692
      %vm694 = vcmp.lt.s32.totalorder %v693, 0
      %v695 = vsub.s32 0, %v693
      %v696 = vsel %vm694, %v695, %v693
      %v697 = vclz %v696
      %v698 = vsub.s32 %v697, 2
      %vm699 = vcmp.gt.s32.totalorder 0, %v698
      %v700 = vsel %vm699, 0, %v698
      %v701 = vsub.s32 32, %v700
      %v702 = vshll.u32 %v693, %v700
      %v703 = vshrl.u32 %v685, %v701
      %v704 = vor.u32 %v702, %v703
      %v705 = vsub.s32 4294967266, %v700
      %v706 = vadd.s32 %v705, 127
      %v707 = vshll.u32 %v706, 23
      %v708 = vor.u32 4788187, %v707
      %v709 = vand.u32 2147483647, %v708
      %v711 = vcvt.s32.f32 %v704
      %v712 = vmul.f32 %v711, %v709
      %v713 = vxor.u32 %v712, 2147483648
      %v714 = vsel %vm593, %v713, %v712
      %v715 = vsub.s32 4, %v691
      %v716 = vsel %vm593, %v715, %v691
      %v717 = vsel %vm592, %v279, %v714
      %v718 = vsel %vm592, 0, %v716
      %v719 = vmul.f32 %v717, %v717
      %v720 = vmul.f32 %v719, -0.001358992
      %v721 = vadd.f32 %v720, 0.041655596
      %v722 = vmul.f32 %v719, %v721
      %v723 = vadd.f32 %v722, -0.4999988
      %v724 = vmul.f32 %v719, %v723
      %v725 = vadd.f32 1.0, %v724
      %v726 = vmul.f32 %v717, %v717
      %v727 = vmul.f32 %v726, -0.00019511016
      %v728 = vadd.f32 %v727, 0.008332121
      %v729 = vmul.f32 %v726, %v728
      %v730 = vadd.f32 %v729, -0.16666654
      %v731 = vmul.f32 %v726, %v730
      %v732 = vadd.f32 %v731, 1.0
      %v733 = vmul.f32 %v732, %v717
      %vm734 = vweird.f32 %v279
      %v735 = vadd.s32 %v718, 3
      %v736 = vand.u32 %v735, 3
      %vm737 = vcmp.lt.s32.totalorder %v736, 2
      %vm738 = vcmp.eq.s32.totalorder %v736, 0
      %v739 = vxor.u32 %v733, 2147483648
      %v740 = vsel %vm738, %v725, %v739
      %vm741 = vcmp.eq.s32.totalorder %v736, 2
      %v742 = vxor.u32 %v725, 2147483648
      %v743 = vsel %vm741, %v742, %v733
      %v744 = vsel %vm737, %v740, %v743
      %v745 = vsel %vm734, nan, %v744
      %v746 = vand.u32 2147483647, %v280
      %vm747 = vcmp.le.f32.partialorder %v746, 0.7853982
      %vm748 = vcmp.lt.s32.totalorder %v280, 0
      %v749 = vand.u32 %v280, 2139095040
      %v750 = vshrl.u32 %v749, 23
      %v751 = vsub.s32 %v750, 127
      %v752 = vand.u32 2147483647, %v280
      %v753 = vand.u32 %v752, 8388607
      %v754 = vor.u32 %v753, 8388608
      %v755 = vsub.s32 0, %v754
      %v756 = vadd.s32 %v751, 1
      %vm757 = vcmp.gt.s32.totalorder %v756, 0
      %v758 = vsel %vm757, %v756, 0
      %v759 = vshrl.u32 %v758, 5
      %v760 = vand.u32 %v758, 31
      %v761 = vsub.s32 32, %v760
      %v762 = vshrl.u32 683565275, %v761
      %v763 = vshll.u32 683565275, %v760
      %v764 = vshrl.u32 2475754826, %v761
      %v765 = vor.u32 %v763, %v764
      %v766 = vshll.u32 2475754826, %v760
      %v767 = vshrl.u32 2131351028, %v761
      %v768 = vor.u32 %v766, %v767
      %v769 = vshll.u32 2131351028, %v760
      %v770 = vshrl.u32 2102212464, %v761
      %v771 = vor.u32 %v769, %v770
      %v772 = vshll.u32 2102212464, %v760
      %v773 = vshrl.u32 920167782, %v761
      %v774 = vor.u32 %v772, %v773
      %v775 = vshll.u32 920167782, %v760
      %v776 = vshrl.u32 1326507024, %v761
      %v777 = vor.u32 %v775, %v776
      %vm778 = vcmp.lt.s32.totalorder %v759, 1
      %vm779 = vcmp.lt.s32.totalorder %v759, 2
      %vm780 = vcmp.lt.s32.totalorder %v759, 3
      %vm781 = vcmp.lt.s32.totalorder %v759, 4
      %v782 = vsel %vm778, %v762, %v765
      %v783 = vsel %vm781, %v771, 2102212464
      %v784 = vsel %vm780, %v768, %v783
      %v785 = vsel %vm779, %v782, %v784
      %v786 = vsel %vm778, %v765, %v768
      %v787 = vsel %vm781, %v774, 920167782
      %v788 = vsel %vm780, %v771, %v787
      %v789 = vsel %vm779, %v786, %v788
      %v790 = vsel %vm778, %v768, %v771
      %v791 = vsel %vm781, %v777, 1326507024
      %v792 = vsel %vm780, %v774, %v791
      %v793 = vsel %vm779, %v790, %v792
      %v794 = vshll.u32 %v754, 8
      %v795 = vand.u32 %v794, 65535
      %v796 = vshrl.u32 %v794, 16
      %v797 = vand.u32 %v793, 65535
      %v798 = vshrl.u32 %v793, 16
      %v799 = vmul.u32 %v795, %v797
      %v800 = vmul.u32 %v795, %v798
      %v801 = vmul.u32 %v796, %v797
      %v802 = vmul.u32 %v796, %v798
      %v803 = vshll.u32 %v800, 16
      %v804 = vshrl.u32 %v800, 16
      %v805 = vshll.u32 %v801, 16
      %v806 = vshrl.u32 %v801, 16
      %vm807 = vc.u32 %v799, %v803
      %v808 = vsel %vm807, 1, 0
      %v809 = vadd.s32 %v799, %v803
      %v810 = vadd.s32 %v802, %v808
      %vm811 = vc.u32 %v809, %v805
      %v812 = vsel %vm811, 1, 0
      %v813 = vadd.s32 %v809, %v805
      %v814 = vadd.s32 %v810, %v812
      %v815 = vadd.s32 %v814, %v804
      %v816 = vadd.s32 %v815, %v806
      %v817 = vand.u32 %v794, 65535
      %v818 = vshrl.u32 %v794, 16
      %v819 = vand.u32 %v789, 65535
      %v820 = vshrl.u32 %v789, 16
      %v821 = vmul.u32 %v817, %v819
      %v822 = vmul.u32 %v817, %v820
      %v823 = vmul.u32 %v818, %v819
      %v824 = vmul.u32 %v818, %v820
      %v825 = vshll.u32 %v822, 16
      %v826 = vshrl.u32 %v822, 16
      %v827 = vshll.u32 %v823, 16
      %v828 = vshrl.u32 %v823, 16
      %vm829 = vc.u32 %v821, %v825
      %v830 = vsel %vm829, 1, 0
      %v831 = vadd.s32 %v821, %v825
      %v832 = vadd.s32 %v824, %v830
      %vm833 = vc.u32 %v831, %v827
      %v834 = vsel %vm833, 1, 0
      %v835 = vadd.s32 %v831, %v827
      %v836 = vadd.s32 %v832, %v834
      %v837 = vadd.s32 %v836, %v826
      %v838 = vadd.s32 %v837, %v828
      %v839 = vmul.u32 %v794, %v785
      %v840 = vadd.s32 %v816, %v835
      %vm841 = vc.u32 %v816, %v835
      %v842 = vadd.s32 %v838, 1
      %v843 = vsel %vm841, %v842, %v838
      %v844 = vadd.s32 %v839, %v843
      %v845 = vadd.s32 %v844, 536870912
      %v846 = vshrl.u32 %v845, 30
      %v847 = vshll.u32 %v846, 30
      %v848 = vsub.s32 %v844, %v847
      %vm849 = vcmp.lt.s32.totalorder %v848, 0
      %v850 = vsub.s32 0, %v848
      %v851 = vsel %vm849, %v850, %v848
      %v852 = vclz %v851
      %v853 = vsub.s32 %v852, 2
      %vm854 = vcmp.gt.s32.totalorder 0, %v853
      %v855 = vsel %vm854, 0, %v853
      %v856 = vsub.s32 32, %v855
      %v857 = vshll.u32 %v848, %v855
      %v858 = vshrl.u32 %v840, %v856
      %v859 = vor.u32 %v857, %v858
      %v860 = vsub.s32 4294967266, %v855
      %v861 = vadd.s32 %v860, 127
      %v862 = vshll.u32 %v861, 23
      %v863 = vor.u32 4788187, %v862
      %v864 = vand.u32 2147483647, %v863
      %v866 = vcvt.s32.f32 %v859
      %v867 = vmul.f32 %v866, %v864
      %v868 = vxor.u32 %v867, 2147483648
      %v869 = vsel %vm748, %v868, %v867
      %v870 = vsub.s32 4, %v846
      %v871 = vsel %vm748, %v870, %v846
      %v872 = vsel %vm747, %v280, %v869
      %v873 = vsel %vm747, 0, %v871
      %v874 = vmul.f32 %v872, %v872
      %v875 = vmul.f32 %v874, -0.001358992
      %v876 = vadd.f32 %v875, 0.041655596
      %v877 = vmul.f32 %v874, %v876
      %v878 = vadd.f32 %v877, -0.4999988
      %v879 = vmul.f32 %v874, %v878
      %v880 = vadd.f32 1.0, %v879
      %v881 = vmul.f32 %v872, %v872
      %v882 = vmul.f32 %v881, -0.00019511016
      %v883 = vadd.f32 %v882, 0.008332121
      %v884 = vmul.f32 %v881, %v883
      %v885 = vadd.f32 %v884, -0.16666654
      %v886 = vmul.f32 %v881, %v885
      %v887 = vadd.f32 %v886, 1.0
      %v888 = vmul.f32 %v887, %v872
      %vm889 = vweird.f32 %v280
      %v890 = vadd.s32 %v873, 3
      %v891 = vand.u32 %v890, 3
      %vm892 = vcmp.lt.s32.totalorder %v891, 2
      %vm893 = vcmp.eq.s32.totalorder %v891, 0
      %v894 = vxor.u32 %v888, 2147483648
      %v895 = vsel %vm893, %v880, %v894
      %vm896 = vcmp.eq.s32.totalorder %v891, 2
      %v897 = vxor.u32 %v880, 2147483648
      %v898 = vsel %vm896, %v897, %v888
      %v899 = vsel %vm892, %v895, %v898
      %v900 = vsel %vm889, nan, %v899
      %v901 = vmul.f32 %v435, %v435
      %v902 = vmul.f32 %v590, %v590
      %v903 = vmul.f32 %v745, %v745
      %v904 = vmul.f32 %v900, %v900
      %906 = vset.pattern.permute.xlu0 0
      %907 = vperm.xlu0 %906, %v265
      %v908 = vpop.permute.xlu0 %907
      %911 = vset.pattern.permute.xlu0 0
      %912 = vperm.xlu0 %911, %v266
      %v913 = vpop.permute.xlu0 %912
      %v915 = vmul.f32 %v908, %v901
      %v916 = vmul.f32 %v908, %v902
      %v917 = vmul.f32 %v913, %v903
      %v918 = vmul.f32 %v913, %v904
      %v919 = vadd.f32 %v259, %v915
      %v920 = vadd.f32 %v260, %v916
      %v921 = vadd.f32 %v261, %v917
      %v922 = vadd.f32 %v262, %v918
      %v923 = vld [vmem:[%s4] sm:$0xff]
      %926 = vrot.lane.b32.xlu0 %v919, 1
      %v927 = vpop.permute.xlu0 %926
      %928 = vrot.lane.b32.xlu0 %v921, 1
      %v929 = vpop.permute.xlu0 %928
      %v930 = vld [vmem:[%s3] sm:$0xff]
      %932 = vset.pattern.permute.xlu0 0
      %933 = vperm.xlu0 %932, %v923
      %v934 = vpop.permute.xlu0 %933
      %938 = vrot.lane.b32.xlu0 %v919, 127
      %v939 = vpop.permute.xlu0 %938
      %940 = vrot.lane.b32.xlu0 %v920, 127
      %v941 = vpop.permute.xlu0 %940
      %942 = vrot.lane.b32.xlu0 %v921, 127
      %v943 = vpop.permute.xlu0 %942
      %944 = vrot.lane.b32.xlu0 %v922, 127
      %v945 = vpop.permute.xlu0 %944
      %946 = vrot.lane.b32.xlu0 %v927, 127
      %v947 = vpop.permute.xlu0 %946
      %948 = vrot.lane.b32.xlu0 %v929, 127
      %v949 = vpop.permute.xlu0 %948
      %vm950 = vcmask 1039360
      %v951 = vsel %vm950, %v939, %v941
      %v952 = vsel %vm950, %v943, %v945
      %vm957 = vcmask 261120
      %v959 = vsel %vm957, %v930, 0
      %961 = vmatpush.msra.mxu0 0.0
      %962 = vmatpush.msra.mxu0 0.0
      %963 = vmatpush.msra.mxu0 0.0
      %964 = vmatpush.msra.mxu0 0.0
      %965 = vmatpush.msra.mxu0 0.0
      %966 = vmatpush.msra.mxu0 0.0
      %967 = vmatpush.msra.mxu0 0.0
      %968 = vmatpush.msra.mxu0 0.0
      %969 = vmatpush.msra.mxu0 0.0
      %970 = vmatpush.msra.mxu0 0.0
      %971 = vmatpush.msra.mxu0 0.0
      %972 = vmatpush.msra.mxu0 0.0
      %973 = vmatpush.msra.mxu0 %v949
      %974 = vmatpush.msra.mxu0 %v947
      %975 = vmatpush.msra.mxu0 %v952
      %976 = vmatpush.msra.mxu0 %v951
      %977 = vmatmul.f32.gmra.mxu0 %v959
      %v978 = vpop.f32.mrf.mxu0
      %v979 = vadd.f32 %v934, %v978
      %980 = vdwg.mxu0
      %981 = vst [vmem:[%s258] sm:$0xff] %v979
      %982 = vrot.lane.b32.xlu0 %v920, 1
      %v983 = vpop.permute.xlu0 %982
      %984 = vrot.lane.b32.xlu0 %v922, 1
      %v985 = vpop.permute.xlu0 %984
      %vm986 = vcmask 7168
      %v987 = vsel %vm986, %v927, %v983
      %v988 = vsel %vm986, %v929, %v985
      %s989 = scalar_lea.vmem %s3, 8
      %v990 = vld [vmem:[%s989] sm:$0xff]
      %991 = vrot.lane.b32.xlu0 %v919, 126
      %v992 = vpop.permute.xlu0 %991
      %993 = vrot.lane.b32.xlu0 %v920, 126
      %v994 = vpop.permute.xlu0 %993
      %995 = vrot.lane.b32.xlu0 %v921, 126
      %v996 = vpop.permute.xlu0 %995
      %997 = vrot.lane.b32.xlu0 %v922, 126
      %v998 = vpop.permute.xlu0 %997
      %999 = vrot.lane.b32.xlu0 %v927, 126
      %v1000 = vpop.permute.xlu0 %999
      %1001 = vrot.lane.b32.xlu0 %v987, 126
      %v1002 = vpop.permute.xlu0 %1001
      %1003 = vrot.lane.b32.xlu0 %v929, 126
      %v1004 = vpop.permute.xlu0 %1003
      %1005 = vrot.lane.b32.xlu0 %v988, 126
      %v1006 = vpop.permute.xlu0 %1005
      %vm1007 = vcmask 1031168
      %v1008 = vsel %vm1007, %v992, %v994
      %v1009 = vsel %vm1007, %v996, %v998
      %v1010 = vsel %vm1007, %v1000, %v1002
      %v1011 = vsel %vm1007, %v1004, %v1006
      %v1017 = vsel %vm957, %v990, 0
      %1019 = vmatpush.msra.mxu0 0.0
      %1020 = vmatpush.msra.mxu0 0.0
      %1021 = vmatpush.msra.mxu0 0.0
      %1022 = vmatpush.msra.mxu0 0.0
      %1023 = vmatpush.msra.mxu0 0.0
      %1024 = vmatpush.msra.mxu0 0.0
      %1025 = vmatpush.msra.mxu0 0.0
      %1026 = vmatpush.msra.mxu0 0.0
      %1027 = vmatpush.msra.mxu0 0.0
      %1028 = vmatpush.msra.mxu0 0.0
      %1029 = vmatpush.msra.mxu0 0.0
      %1030 = vmatpush.msra.mxu0 0.0
      %1031 = vmatpush.msra.mxu0 %v1011
      %1032 = vmatpush.msra.mxu0 %v1010
      %1033 = vmatpush.msra.mxu0 %v1009
      %1034 = vmatpush.msra.mxu0 %v1008
      %1035 = vmatmul.f32.gmra.mxu0 %v1017
      %v1036 = vpop.f32.mrf.mxu0
      %v1037 = vadd.f32 %v934, %v1036
      %1038 = vdwg.mxu0
      %s1039 = scalar_lea.vmem %s258, 8
      %1040 = vst [vmem:[%s1039] sm:$0xff] %v1037
      %p1041 = scmp.lt.s32.totalorder %s20, 1
      %s1042 = scalar_select %p1041, %s20, 1
      %p1043 = scmp.lt.s32.totalorder %s21, 0
      %s1044 = scalar_select %p1043, %s21, 0
      %s1045 = smul.addr %s1042, 2
      %s1046 = sadd.s32 %s1044, %s1045
      %s1047 = smul.addr %s1046, 8
      %s1048 = scalar_lea.vmem %s5, %s1047
      // Predicated region
      $region41: #{decoder_block_forward.4} parent=39 // pred_check
        %p1049 = pneg %p160
      $region42: #{decoder_block_forward.4} parent=39 // pred_check_branch
        %1051 = sbr.rel (%p1049) target = $region44
      $region43: #{decoder_block_forward.4} parent=39 // pred_region
        _
      $region44: #{decoder_block_forward.4} parent=39 // pred_fallthru
        _
    $region40: #{decoder_block_forward.4} parent=5 // pred_fallthru
      _
    %p1052 = scmp.le.s32.totalorder 2, %s11
    // Predicated region
    $region45: #{decoder_block_forward.4} parent=5 // pred_check
      %p1053 = pneg %p1052
    $region46: #{decoder_block_forward.4} parent=5 // pred_check_branch
      %1055 = sbr.rel (%p1053) target = $region48
    $region47: #{decoder_block_forward.4} parent=5 // pred_region
      %s1056 = ssub.s32 %s11, 2
      // Predicated region
      $region49: #{decoder_block_forward.4} parent=47 // pred_check
        %p1057 = pneg %p166
      $region50: #{decoder_block_forward.4} parent=47 // pred_check_branch
        %1059 = sbr.rel (%p1057) target = $region52
      $region51: #{decoder_block_forward.4} parent=47 // pred_region
        %p1060 = scmp.lt.s32.totalorder %s22, 1
        %s1061 = scalar_select %p1060, %s22, 1
        %p1062 = scmp.lt.s32.totalorder %s23, 0
        %s1063 = scalar_select %p1062, %s23, 0
        %s1064 = smul.addr %s1061, 2
        %s1065 = sadd.s32 %s1063, %s1064
        %s1066 = smul.addr %s1065, 8
        %s1067 = scalar_lea.vmem %s5, %s1066
      $region52: #{decoder_block_forward.4} parent=47 // pred_fallthru
        _
    $region48: #{decoder_block_forward.4} parent=5 // pred_fallthru
      _
  $region6: #{decoder_block_forward.4} parent=0 // loop_footer
    %s15 = sadd.s32 1, %s11
  $region7: #{decoder_block_forward.4} parent=0 // loop_footer_branch
    %10 = sbr.rel target = $region3
  $region8: #{decoder_block_forward.4} parent=0 // loop_exit
    _

// kernel: decoder_block_forward.5
$region0: #{decoder_block_forward.5}
  #allocation0 [shape = 'u32[]', space=smem, size = 0x4, offset = 0x4, fixed_abs, tag = 'smem constant byte address 0x4 - core index']
  #allocation1 [shape = 'u32[72,128]{1,0:T(1,128)}', space=vmem, size = 0x9000, scoped, tag = 'internal scratch']
  %s0 = inlined_call_operand.vmem [shape: f32[2,1,8,134], index: 0, kind: input, shape index: {}]
  %s1 = inlined_call_operand.vmem [shape: f32[8,1], index: 1, kind: input, shape index: {}]
  %s2 = inlined_call_operand.vmem [shape: f32[8,1], index: 2, kind: input, shape index: {}]
  %s3 = inlined_call_operand.vmem [shape: f32[8,56], index: 3, kind: input, shape index: {}]
  %s4 = inlined_call_operand.vmem [shape: f32[8,1], index: 4, kind: input, shape index: {}]
  %s5 = inlined_call_operand.vmem [shape: f32[8,1], index: 5, kind: input, shape index: {}]
  %s6 = inlined_call_operand.vmem [shape: f32[8,1], index: 6, kind: input, shape index: {}]
  %s7 = inlined_call_operand.vmem [shape: f32[8,8], index: 7, kind: input, shape index: {}]
  %s8 = inlined_call_operand.vmem [shape: f32[8,1], index: 8, kind: input, shape index: {}]
  %s9 = inlined_call_operand.vmem [shape: f32[2,8,128], index: 9, kind: output, shape index: {}]
  %s10 = sld [smem:[#allocation0]]
  $region69: #{decoder_block_forward.5} parent=0
    _
  %s12 = ssub.s32 1, %s10
  %s13 = scalar_select 0, %s12, %s10
  loop: start=0, step=1, limit=4
  $region2: #{decoder_block_forward.5} parent=0 // loop_pre_header
    _
  $region3: #{decoder_block_forward.5} parent=0 // loop_header
    %s15 = sphi 0, %s19
    %p16 = scmp.ge.s32.totalorder %s15, 4
    %s22 = sphi 0, %s34
    %s23 = sphi 0, %s30
    %s24 = sphi 0, %s22
    %s25 = sphi 0, %s23
    %s26 = sphi 0, %s24
    %s27 = sphi 0, %s25
    %s39 = sphi 0, %s41
    %s42 = sphi 0, %s39
    %s43 = sphi 0, %s42
    %s59 = sphi 0, %s43
    %s63 = sphi 0, %s63
    %s65 = sphi 0, %s63
    %s66 = sphi 0, %s65
    %s80 = sphi 0, %s66
    %s84 = sphi 0, %s84
    %s86 = sphi 0, %s84
    %s87 = sphi 0, %s86
    %s101 = sphi 0, %s87
    %s105 = sphi 0, %s105
    %s107 = sphi 0, %s105
    %s108 = sphi 0, %s107
    %s122 = sphi 0, %s108
    %s126 = sphi 0, %s126
    %s128 = sphi 0, %s126
    %s129 = sphi 0, %s128
    %s143 = sphi 0, %s129
    %s147 = sphi 0, %s147
    %s149 = sphi 0, %s147
    %s150 = sphi 0, %s149
    %s164 = sphi 0, %s150
    %s168 = sphi 0, %s168
    %s170 = sphi 0, %s168
    %s171 = sphi 0, %s170
    %s185 = sphi 0, %s171
    %s189 = sphi 0, %s189
    %s191 = sphi 0, %s189
    %s192 = sphi 0, %s191
    %s206 = sphi 0, %s192
    %s210 = sphi 0, %s210
    %s212 = sphi 0, %s210
    %s213 = sphi 0, %s212
    %s227 = sphi 0, %s213
    %s235 = sphi 0, %s237
    %s238 = sphi 0, %s235
    %s239 = sphi 0, %s238
    %s255 = sphi 0, %s239
  $region4: #{decoder_block_forward.5} parent=0 // loop_header_branch
    %18 = sbr.rel (%p16) target = $region8
  $region5: #{decoder_block_forward.5} parent=0 // loop_body
    %s20 = ssub.s32 %s15, 1
    %s21 = ssub.s32 %s15, 2
    %s28 = sadd.s32 1, %s23
    %p29 = scmp.ge.s32.totalorder %s28, 1
    %s30 = scalar_select %p29, 0, %s28
    %s31 = sadd.s32 1, %s22
    %s32 = scalar_select %p29, %s31, %s22
    %p33 = scmp.ge.s32.totalorder %s32, 2
    %s34 = scalar_select %p33, 0, %s32
    %s35 = ssub.s32 %s22, %s34
    %s36 = ssub.s32 %s23, %s30
    %s37 = sor.u32 %s35, %s36
    %p38 = scmp.eq.s32.totalorder %s37, 0
    %s40 = sadd.s32 %s39, 1
    %s41 = scalar_select %p38, %s39, %s40
    %p44 = pneg %p38
    %p45 = scmp.eq.s32.totalorder %s15, 1
    %p46 = por %p44, %p45
    %p47 = scmp.ne.s32.totalorder %s39, %s42
    %p48 = scmp.eq.s32.totalorder %s15, 0
    %p49 = por %p47, %p48
    %p50 = scmp.ne.s32.totalorder %s39, %s42
    %p51 = scmp.eq.s32.totalorder %s20, 1
    %p52 = por %p50, %p51
    %p53 = scmp.ne.s32.totalorder %s42, %s43
    %p54 = scmp.eq.s32.totalorder %s20, 0
    %p55 = por %p53, %p54
    %p56 = scmp.ne.s32.totalorder %s42, %s43
    %p57 = scmp.eq.s32.totalorder %s21, 1
    %p58 = por %p56, %p57
    %p60 = scmp.ne.s32.totalorder %s43, %s59
    %p61 = scmp.eq.s32.totalorder %s21, 0
    %p62 = por %p60, %p61
    %s64 = sadd.s32 %s63, 1
    %p67 = scmp.eq.s32.totalorder %s15, 1
    %p68 = scmp.ne.s32.totalorder %s63, %s65
    %p69 = scmp.eq.s32.totalorder %s15, 0
    %p70 = por %p68, %p69
    %p71 = scmp.ne.s32.totalorder %s63, %s65
    %p72 = scmp.eq.s32.totalorder %s20, 1
    %p73 = por %p71, %p72
    %p74 = scmp.ne.s32.totalorder %s65, %s66
    %p75 = scmp.eq.s32.totalorder %s20, 0
    %p76 = por %p74, %p75
    %p77 = scmp.ne.s32.totalorder %s65, %s66
    %p78 = scmp.eq.s32.totalorder %s21, 1
    %p79 = por %p77, %p78
    %p81 = scmp.ne.s32.totalorder %s66, %s80
    %p82 = scmp.eq.s32.totalorder %s21, 0
    %p83 = por %p81, %p82
    %s85 = sadd.s32 %s84, 1
    %p88 = scmp.eq.s32.totalorder %s15, 1
    %p89 = scmp.ne.s32.totalorder %s84, %s86
    %p90 = scmp.eq.s32.totalorder %s15, 0
    %p91 = por %p89, %p90
    %p92 = scmp.ne.s32.totalorder %s84, %s86
    %p93 = scmp.eq.s32.totalorder %s20, 1
    %p94 = por %p92, %p93
    %p95 = scmp.ne.s32.totalorder %s86, %s87
    %p96 = scmp.eq.s32.totalorder %s20, 0
    %p97 = por %p95, %p96
    %p98 = scmp.ne.s32.totalorder %s86, %s87
    %p99 = scmp.eq.s32.totalorder %s21, 1
    %p100 = por %p98, %p99
    %p102 = scmp.ne.s32.totalorder %s87, %s101
    %p103 = scmp.eq.s32.totalorder %s21, 0
    %p104 = por %p102, %p103
    %s106 = sadd.s32 %s105, 1
    %p109 = scmp.eq.s32.totalorder %s15, 1
    %p110 = scmp.ne.s32.totalorder %s105, %s107
    %p111 = scmp.eq.s32.totalorder %s15, 0
    %p112 = por %p110, %p111
    %p113 = scmp.ne.s32.totalorder %s105, %s107
    %p114 = scmp.eq.s32.totalorder %s20, 1
    %p115 = por %p113, %p114
    %p116 = scmp.ne.s32.totalorder %s107, %s108
    %p117 = scmp.eq.s32.totalorder %s20, 0
    %p118 = por %p116, %p117
    %p119 = scmp.ne.s32.totalorder %s107, %s108
    %p120 = scmp.eq.s32.totalorder %s21, 1
    %p121 = por %p119, %p120
    %p123 = scmp.ne.s32.totalorder %s108, %s122
    %p124 = scmp.eq.s32.totalorder %s21, 0
    %p125 = por %p123, %p124
    %s127 = sadd.s32 %s126, 1
    %p130 = scmp.eq.s32.totalorder %s15, 1
    %p131 = scmp.ne.s32.totalorder %s126, %s128
    %p132 = scmp.eq.s32.totalorder %s15, 0
    %p133 = por %p131, %p132
    %p134 = scmp.ne.s32.totalorder %s126, %s128
    %p135 = scmp.eq.s32.totalorder %s20, 1
    %p136 = por %p134, %p135
    %p137 = scmp.ne.s32.totalorder %s128, %s129
    %p138 = scmp.eq.s32.totalorder %s20, 0
    %p139 = por %p137, %p138
    %p140 = scmp.ne.s32.totalorder %s128, %s129
    %p141 = scmp.eq.s32.totalorder %s21, 1
    %p142 = por %p140, %p141
    %p144 = scmp.ne.s32.totalorder %s129, %s143
    %p145 = scmp.eq.s32.totalorder %s21, 0
    %p146 = por %p144, %p145
    %s148 = sadd.s32 %s147, 1
    %p151 = scmp.eq.s32.totalorder %s15, 1
    %p152 = scmp.ne.s32.totalorder %s147, %s149
    %p153 = scmp.eq.s32.totalorder %s15, 0
    %p154 = por %p152, %p153
    %p155 = scmp.ne.s32.totalorder %s147, %s149
    %p156 = scmp.eq.s32.totalorder %s20, 1
    %p157 = por %p155, %p156
    %p158 = scmp.ne.s32.totalorder %s149, %s150
    %p159 = scmp.eq.s32.totalorder %s20, 0
    %p160 = por %p158, %p159
    %p161 = scmp.ne.s32.totalorder %s149, %s150
    %p162 = scmp.eq.s32.totalorder %s21, 1
    %p163 = por %p161, %p162
    %p165 = scmp.ne.s32.totalorder %s150, %s164
    %p166 = scmp.eq.s32.totalorder %s21, 0
    %p167 = por %p165, %p166
    %s169 = sadd.s32 %s168, 1
    %p172 = scmp.eq.s32.totalorder %s15, 1
    %p173 = scmp.ne.s32.totalorder %s168, %s170
    %p174 = scmp.eq.s32.totalorder %s15, 0
    %p175 = por %p173, %p174
    %p176 = scmp.ne.s32.totalorder %s168, %s170
    %p177 = scmp.eq.s32.totalorder %s20, 1
    %p178 = por %p176, %p177
    %p179 = scmp.ne.s32.totalorder %s170, %s171
    %p180 = scmp.eq.s32.totalorder %s20, 0
    %p181 = por %p179, %p180
    %p182 = scmp.ne.s32.totalorder %s170, %s171
    %p183 = scmp.eq.s32.totalorder %s21, 1
    %p184 = por %p182, %p183
    %p186 = scmp.ne.s32.totalorder %s171, %s185
    %p187 = scmp.eq.s32.totalorder %s21, 0
    %p188 = por %p186, %p187
    %s190 = sadd.s32 %s189, 1
    %p193 = scmp.eq.s32.totalorder %s15, 1
    %p194 = scmp.ne.s32.totalorder %s189, %s191
    %p195 = scmp.eq.s32.totalorder %s15, 0
    %p196 = por %p194, %p195
    %p197 = scmp.ne.s32.totalorder %s189, %s191
    %p198 = scmp.eq.s32.totalorder %s20, 1
    %p199 = por %p197, %p198
    %p200 = scmp.ne.s32.totalorder %s191, %s192
    %p201 = scmp.eq.s32.totalorder %s20, 0
    %p202 = por %p200, %p201
    %p203 = scmp.ne.s32.totalorder %s191, %s192
    %p204 = scmp.eq.s32.totalorder %s21, 1
    %p205 = por %p203, %p204
    %p207 = scmp.ne.s32.totalorder %s192, %s206
    %p208 = scmp.eq.s32.totalorder %s21, 0
    %p209 = por %p207, %p208
    %s211 = sadd.s32 %s210, 1
    %p214 = scmp.eq.s32.totalorder %s15, 1
    %p215 = scmp.ne.s32.totalorder %s210, %s212
    %p216 = scmp.eq.s32.totalorder %s15, 0
    %p217 = por %p215, %p216
    %p218 = scmp.ne.s32.totalorder %s210, %s212
    %p219 = scmp.eq.s32.totalorder %s20, 1
    %p220 = por %p218, %p219
    %p221 = scmp.ne.s32.totalorder %s212, %s213
    %p222 = scmp.eq.s32.totalorder %s20, 0
    %p223 = por %p221, %p222
    %p224 = scmp.ne.s32.totalorder %s212, %s213
    %p225 = scmp.eq.s32.totalorder %s21, 1
    %p226 = por %p224, %p225
    %p228 = scmp.ne.s32.totalorder %s213, %s227
    %p229 = scmp.eq.s32.totalorder %s21, 0
    %p230 = por %p228, %p229
    %s231 = ssub.s32 %s22, %s34
    %s232 = ssub.s32 %s23, %s30
    %s233 = sor.u32 %s231, %s232
    %p234 = scmp.eq.s32.totalorder %s233, 0
    %s236 = sadd.s32 %s235, 1
    %s237 = scalar_select %p234, %s235, %s236
    %p240 = pneg %p234
    %p241 = scmp.eq.s32.totalorder %s15, 1
    %p242 = por %p240, %p241
    %p243 = scmp.ne.s32.totalorder %s235, %s238
    %p244 = scmp.eq.s32.totalorder %s15, 0
    %p245 = por %p243, %p244
    %p246 = scmp.ne.s32.totalorder %s235, %s238
    %p247 = scmp.eq.s32.totalorder %s20, 1
    %p248 = por %p246, %p247
    %p249 = scmp.ne.s32.totalorder %s238, %s239
    %p250 = scmp.eq.s32.totalorder %s20, 0
    %p251 = por %p249, %p250
    %p252 = scmp.ne.s32.totalorder %s238, %s239
    %p253 = scmp.eq.s32.totalorder %s21, 1
    %p254 = por %p252, %p253
    %p256 = scmp.ne.s32.totalorder %s239, %s255
    %p257 = scmp.eq.s32.totalorder %s21, 0
    %p258 = por %p256, %p257
    %p259 = scmp.le.s32.totalorder 1, %s15
    %p260 = scmp.lt.s32.totalorder %s15, 3
    %p261 = pnand %p259, %p260
    %p262 = pneg %p261
    // Predicated region
    $region9: #{decoder_block_forward.5} parent=5 // pred_check
      _
    $region10: #{decoder_block_forward.5} parent=5 // pred_check_branch
      %264 = sbr.rel (%p261) target = $region12
    $region11: #{decoder_block_forward.5} parent=5 // pred_region
      %s265 = ssub.s32 %s15, 1
      // Predicated region
      $region13: #{decoder_block_forward.5} parent=11 // pred_check
        %p266 = pneg %p76
      $region14: #{decoder_block_forward.5} parent=11 // pred_check_branch
        %268 = sbr.rel (%p266) target = $region16
      $region15: #{decoder_block_forward.5} parent=11 // pred_region
        _
      $region16: #{decoder_block_forward.5} parent=11 // pred_fallthru
        _
      // Predicated region
      $region17: #{decoder_block_forward.5} parent=11 // pred_check
        %p269 = pneg %p97
      $region18: #{decoder_block_forward.5} parent=11 // pred_check_branch
        %271 = sbr.rel (%p269) target = $region20
      $region19: #{decoder_block_forward.5} parent=11 // pred_region
        _
      $region20: #{decoder_block_forward.5} parent=11 // pred_fallthru
        _
      // Predicated region
      $region21: #{decoder_block_forward.5} parent=11 // pred_check
        %p272 = pneg %p118
      $region22: #{decoder_block_forward.5} parent=11 // pred_check_branch
        %274 = sbr.rel (%p272) target = $region24
      $region23: #{decoder_block_forward.5} parent=11 // pred_region
        _
      $region24: #{decoder_block_forward.5} parent=11 // pred_fallthru
        _
      // Predicated region
      $region25: #{decoder_block_forward.5} parent=11 // pred_check
        %p275 = pneg %p139
      $region26: #{decoder_block_forward.5} parent=11 // pred_check_branch
        %277 = sbr.rel (%p275) target = $region28
      $region27: #{decoder_block_forward.5} parent=11 // pred_region
        _
      $region28: #{decoder_block_forward.5} parent=11 // pred_fallthru
        _
      // Predicated region
      $region29: #{decoder_block_forward.5} parent=11 // pred_check
        %p278 = pneg %p160
      $region30: #{decoder_block_forward.5} parent=11 // pred_check_branch
        %280 = sbr.rel (%p278) target = $region32
      $region31: #{decoder_block_forward.5} parent=11 // pred_region
        _
      $region32: #{decoder_block_forward.5} parent=11 // pred_fallthru
        _
      // Predicated region
      $region33: #{decoder_block_forward.5} parent=11 // pred_check
        %p281 = pneg %p181
      $region34: #{decoder_block_forward.5} parent=11 // pred_check_branch
        %283 = sbr.rel (%p281) target = $region36
      $region35: #{decoder_block_forward.5} parent=11 // pred_region
        _
      $region36: #{decoder_block_forward.5} parent=11 // pred_fallthru
        _
      // Predicated region
      $region37: #{decoder_block_forward.5} parent=11 // pred_check
        %p284 = pneg %p202
      $region38: #{decoder_block_forward.5} parent=11 // pred_check_branch
        %286 = sbr.rel (%p284) target = $region40
      $region39: #{decoder_block_forward.5} parent=11 // pred_region
        _
      $region40: #{decoder_block_forward.5} parent=11 // pred_fallthru
        _
      // Predicated region
      $region41: #{decoder_block_forward.5} parent=11 // pred_check
        %p287 = pneg %p223
      $region42: #{decoder_block_forward.5} parent=11 // pred_check_branch
        %289 = sbr.rel (%p287) target = $region44
      $region43: #{decoder_block_forward.5} parent=11 // pred_region
        _
      $region44: #{decoder_block_forward.5} parent=11 // pred_fallthru
        _
    $region12: #{decoder_block_forward.5} parent=5 // pred_fallthru
      _
    %p290 = scmp.lt.s32.totalorder %s15, 2
    // Predicated region
    $region45: #{decoder_block_forward.5} parent=5 // pred_check
      %p291 = pneg %p290
    $region46: #{decoder_block_forward.5} parent=5 // pred_check_branch
      %293 = sbr.rel (%p291) target = $region48
    $region47: #{decoder_block_forward.5} parent=5 // pred_region
      // Predicated region
      $region49: #{decoder_block_forward.5} parent=47 // pred_check
        %p294 = pneg %p49
      $region50: #{decoder_block_forward.5} parent=47 // pred_check_branch
        %296 = sbr.rel (%p294) target = $region52
      $region51: #{decoder_block_forward.5} parent=47 // pred_region
        %p297 = scmp.lt.s32.totalorder %s22, 1
        %s298 = scalar_select %p297, %s22, 1
        %p299 = scmp.lt.s32.totalorder %s23, 0
        %s300 = scalar_select %p299, %s23, 0
        %s301 = smul.addr %s300, 2
        %s302 = smul.addr %s298, 2
        %s303 = sadd.s32 %s301, %s302
        %s304 = smul.addr %s303, 8
        %s305 = scalar_lea.vmem %s0, %s304
      $region52: #{decoder_block_forward.5} parent=47 // pred_fallthru
        _
    $region48: #{decoder_block_forward.5} parent=5 // pred_fallthru
      _
    %p306 = scmp.le.s32.totalorder 1, %s15
    %p307 = scmp.lt.s32.totalorder %s15, 3
    %p308 = pnand %p306, %p307
    %p309 = pneg %p308
    // Predicated region
    $region53: #{decoder_block_forward.5} parent=5 // pred_check
      _
    $region54: #{decoder_block_forward.5} parent=5 // pred_check_branch
      %311 = sbr.rel (%p308) target = $region56
    $region55: #{decoder_block_forward.5} parent=5 // pred_region
      %s312 = ssub.s32 %s15, 1
      %p313 = scmp.lt.s32.totalorder %s24, 1
      %s314 = scalar_select %p313, %s24, 1
      %p315 = scmp.lt.s32.totalorder %s25, 0
      %s316 = scalar_select %p315, %s25, 0
      %s317 = smul.addr %s316, 2
      %s318 = smul.addr %s314, 2
      %s319 = sadd.s32 %s317, %s318
      %s320 = smul.addr %s319, 8
      %s321 = scalar_lea.vmem %s0, %s320
      %p322 = pneg %p55
      %p323 = pneg %p52
      %p324 = pneg %p76
      %p325 = pneg %p73
      %p326 = pneg %p97
      %p327 = pneg %p94
      %p328 = pneg %p118
      %p329 = pneg %p115
      %p330 = pneg %p139
      %p331 = pneg %p136
      %p332 = pneg %p160
      %p333 = pneg %p157
      %p334 = pneg %p181
      %p335 = pneg %p178
      %p336 = pneg %p202
      %p337 = pneg %p199
      %p338 = pneg %p223
      %p339 = pneg %p220
      %p340 = pneg %p251
      %p341 = pneg %p248
      %p342 = scmp.lt.s32.totalorder %s24, 1
      %s343 = scalar_select %p342, %s24, 1
      %p344 = scmp.lt.s32.totalorder %s25, 0
      %s345 = scalar_select %p344, %s25, 0
      %s346 = sadd.s32 %s345, %s343
      %s347 = smul.addr %s346, 8
      %s348 = scalar_lea.vmem %s9, %s347
      %p349 = scmp.lt.s32.totalorder %s24, 1
      %s350 = scalar_select %p349, %s24, 1
      %p351 = scmp.lt.s32.totalorder %s25, 0
      %s352 = scalar_select %p351, %s25, 0
      %s353 = smul.addr %s352, 2
      %s354 = smul.addr %s350, 2
      %s355 = sadd.s32 %s353, %s354
      %s356 = smul.addr %s355, 8
      %s357 = scalar_lea.vmem %s0, %s356
      %p358 = scmp.lt.s32.totalorder %s24, 1
      %s359 = scalar_select %p358, %s24, 1
      %p360 = scmp.lt.s32.totalorder %s25, 0
      %s361 = scalar_select %p360, %s25, 0
      %s362 = sadd.s32 %s361, %s359
      %s363 = smul.addr %s362, 8
      %s364 = scalar_lea.vmem %s9, %s363
      %v365 = vld [vmem:[%s357] sm:$0xff]
      %v366 = vld [vmem:[%s357 + $0x8] sm:$0xff]
      %v367 = vld [vmem:[%s1] sm:$0xff]
      %v368 = vld [vmem:[%s2] sm:$0xff]
      %370 = vset.pattern.permute.xlu0 0
      %371 = vperm.xlu0 %370, %v367
      %v372 = vpop.permute.xlu0 %371
      %v374 = vmul.f32 %v372, %v365
      %v375 = vmul.f32 %v372, %v366
      %v376 = vand.u32 2147483647, %v374
      %vm377 = vcmp.le.f32.partialorder %v376, 0.7853982
      %vm378 = vcmp.lt.s32.totalorder %v374, 0
      %v379 = vand.u32 %v374, 2139095040
      %v380 = vshrl.u32 %v379, 23
      %v381 = vsub.s32 %v380, 127
      %v382 = vand.u32 2147483647, %v374
      %v383 = vand.u32 %v382, 8388607
      %v384 = vor.u32 %v383, 8388608
      %v385 = vsub.s32 0, %v384
      %v386 = vadd.s32 %v381, 1
      %vm387 = vcmp.gt.s32.totalorder %v386, 0
      %v388 = vsel %vm387, %v386, 0
      %v389 = vshrl.u32 %v388, 5
      %v390 = vand.u32 %v388, 31
      %v391 = vsub.s32 32, %v390
      %v392 = vshrl.u32 683565275, %v391
      %v393 = vshll.u32 683565275, %v390
      %v394 = vshrl.u32 2475754826, %v391
      %v395 = vor.u32 %v393, %v394
      %v396 = vshll.u32 2475754826, %v390
      %v397 = vshrl.u32 2131351028, %v391
      %v398 = vor.u32 %v396, %v397
      %v399 = vshll.u32 2131351028, %v390
      %v400 = vshrl.u32 2102212464, %v391
      %v401 = vor.u32 %v399, %v400
      %v402 = vshll.u32 2102212464, %v390
      %v403 = vshrl.u32 920167782, %v391
      %v404 = vor.u32 %v402, %v403
      %v405 = vshll.u32 920167782, %v390
      %v406 = vshrl.u32 1326507024, %v391
      %v407 = vor.u32 %v405, %v406
      %vm408 = vcmp.lt.s32.totalorder %v389, 1
      %vm409 = vcmp.lt.s32.totalorder %v389, 2
      %vm410 = vcmp.lt.s32.totalorder %v389, 3
      %vm411 = vcmp.lt.s32.totalorder %v389, 4
      %v412 = vsel %vm408, %v392, %v395
      %v413 = vsel %vm411, %v401, 2102212464
      %v414 = vsel %vm410, %v398, %v413
      %v415 = vsel %vm409, %v412, %v414
      %v416 = vsel %vm408, %v395, %v398
      %v417 = vsel %vm411, %v404, 920167782
      %v418 = vsel %vm410, %v401, %v417
      %v419 = vsel %vm409, %v416, %v418
      %v420 = vsel %vm408, %v398, %v401
      %v421 = vsel %vm411, %v407, 1326507024
      %v422 = vsel %vm410, %v404, %v421
      %v423 = vsel %vm409, %v420, %v422
      %v424 = vshll.u32 %v384, 8
      %v425 = vand.u32 %v424, 65535
      %v426 = vshrl.u32 %v424, 16
      %v427 = vand.u32 %v423, 65535
      %v428 = vshrl.u32 %v423, 16
      %v429 = vmul.u32 %v425, %v427
      %v430 = vmul.u32 %v425, %v428
      %v431 = vmul.u32 %v426, %v427
      %v432 = vmul.u32 %v426, %v428
      %v433 = vshll.u32 %v430, 16
      %v434 = vshrl.u32 %v430, 16
      %v435 = vshll.u32 %v431, 16
      %v436 = vshrl.u32 %v431, 16
      %vm437 = vc.u32 %v429, %v433
      %v438 = vsel %vm437, 1, 0
      %v439 = vadd.s32 %v429, %v433
      %v440 = vadd.s32 %v432, %v438
      %vm441 = vc.u32 %v439, %v435
      %v442 = vsel %vm441, 1, 0
      %v443 = vadd.s32 %v439, %v435
      %v444 = vadd.s32 %v440, %v442
      %v445 = vadd.s32 %v444, %v434
      %v446 = vadd.s32 %v445, %v436
      %v447 = vand.u32 %v424, 65535
      %v448 = vshrl.u32 %v424, 16
      %v449 = vand.u32 %v419, 65535
      %v450 = vshrl.u32 %v419, 16
      %v451 = vmul.u32 %v447, %v449
      %v452 = vmul.u32 %v447, %v450
      %v453 = vmul.u32 %v448, %v449
      %v454 = vmul.u32 %v448, %v450
      %v455 = vshll.u32 %v452, 16
      %v456 = vshrl.u32 %v452, 16
      %v457 = vshll.u32 %v453, 16
      %v458 = vshrl.u32 %v453, 16
      %vm459 = vc.u32 %v451, %v455
      %v460 = vsel %vm459, 1, 0
      %v461 = vadd.s32 %v451, %v455
      %v462 = vadd.s32 %v454, %v460
      %vm463 = vc.u32 %v461, %v457
      %v464 = vsel %vm463, 1, 0
      %v465 = vadd.s32 %v461, %v457
      %v466 = vadd.s32 %v462, %v464
      %v467 = vadd.s32 %v466, %v456
      %v468 = vadd.s32 %v467, %v458
      %v469 = vmul.u32 %v424, %v415
      %v470 = vadd.s32 %v446, %v465
      %vm471 = vc.u32 %v446, %v465
      %v472 = vadd.s32 %v468, 1
      %v473 = vsel %vm471, %v472, %v468
      %v474 = vadd.s32 %v469, %v473
      %v475 = vadd.s32 %v474, 536870912
      %v476 = vshrl.u32 %v475, 30
      %v477 = vshll.u32 %v476, 30
      %v478 = vsub.s32 %v474, %v477
      %vm479 = vcmp.lt.s32.totalorder %v478, 0
      %v480 = vsub.s32 0, %v478
      %v481 = vsel %vm479, %v480, %v478
      %v482 = vclz %v481
      %v483 = vsub.s32 %v482, 2
      %vm484 = vcmp.gt.s32.totalorder 0, %v483
      %v485 = vsel %vm484, 0, %v483
      %v486 = vsub.s32 32, %v485
      %v487 = vshll.u32 %v478, %v485
      %v488 = vshrl.u32 %v470, %v486
      %v489 = vor.u32 %v487, %v488
      %v490 = vsub.s32 4294967266, %v485
      %v491 = vadd.s32 %v490, 127
      %v492 = vshll.u32 %v491, 23
      %v493 = vor.u32 4788187, %v492
      %v494 = vand.u32 2147483647, %v493
      %v496 = vcvt.s32.f32 %v489
      %v497 = vmul.f32 %v496, %v494
      %v498 = vxor.u32 %v497, 2147483648
      %v499 = vsel %vm378, %v498, %v497
      %v500 = vsub.s32 4, %v476
      %v501 = vsel %vm378, %v500, %v476
      %v502 = vsel %vm377, %v374, %v499
      %v503 = vsel %vm377, 0, %v501
      %v504 = vmul.f32 %v502, %v502
      %v505 = vmul.f32 %v504, -0.001358992
      %v506 = vadd.f32 %v505, 0.041655596
      %v507 = vmul.f32 %v504, %v506
      %v508 = vadd.f32 %v507, -0.4999988
      %v509 = vmul.f32 %v504, %v508
      %v510 = vadd.f32 1.0, %v509
      %v511 = vmul.f32 %v502, %v502
      %v512 = vmul.f32 %v511, -0.00019511016
      %v513 = vadd.f32 %v512, 0.008332121
      %v514 = vmul.f32 %v511, %v513
      %v515 = vadd.f32 %v514, -0.16666654
      %v516 = vmul.f32 %v511, %v515
      %v517 = vadd.f32 %v516, 1.0
      %v518 = vmul.f32 %v517, %v502
      %vm519 = vweird.f32 %v374
      %v520 = vadd.s32 %v503, 3
      %v521 = vand.u32 %v520, 3
      %vm522 = vcmp.lt.s32.totalorder %v521, 2
      %vm523 = vcmp.eq.s32.totalorder %v521, 0
      %v524 = vxor.u32 %v518, 2147483648
      %v525 = vsel %vm523, %v510, %v524
      %vm526 = vcmp.eq.s32.totalorder %v521, 2
      %v527 = vxor.u32 %v510, 2147483648
      %v528 = vsel %vm526, %v527, %v518
      %v529 = vsel %vm522, %v525, %v528
      %v530 = vsel %vm519, nan, %v529
      %v531 = vand.u32 2147483647, %v375
      %vm532 = vcmp.le.f32.partialorder %v531, 0.7853982
      %vm533 = vcmp.lt.s32.totalorder %v375, 0
      %v534 = vand.u32 %v375, 2139095040
      %v535 = vshrl.u32 %v534, 23
      %v536 = vsub.s32 %v535, 127
      %v537 = vand.u32 2147483647, %v375
      %v538 = vand.u32 %v537, 8388607
      %v539 = vor.u32 %v538, 8388608
      %v540 = vsub.s32 0, %v539
      %v541 = vadd.s32 %v536, 1
      %vm542 = vcmp.gt.s32.totalorder %v541, 0
      %v543 = vsel %vm542, %v541, 0
      %v544 = vshrl.u32 %v543, 5
      %v545 = vand.u32 %v543, 31
      %v546 = vsub.s32 32, %v545
      %v547 = vshrl.u32 683565275, %v546
      %v548 = vshll.u32 683565275, %v545
      %v549 = vshrl.u32 2475754826, %v546
      %v550 = vor.u32 %v548, %v549
      %v551 = vshll.u32 2475754826, %v545
      %v552 = vshrl.u32 2131351028, %v546
      %v553 = vor.u32 %v551, %v552
      %v554 = vshll.u32 2131351028, %v545
      %v555 = vshrl.u32 2102212464, %v546
      %v556 = vor.u32 %v554, %v555
      %v557 = vshll.u32 2102212464, %v545
      %v558 = vshrl.u32 920167782, %v546
      %v559 = vor.u32 %v557, %v558
      %v560 = vshll.u32 920167782, %v545
      %v561 = vshrl.u32 1326507024, %v546
      %v562 = vor.u32 %v560, %v561
      %vm563 = vcmp.lt.s32.totalorder %v544, 1
      %vm564 = vcmp.lt.s32.totalorder %v544, 2
      %vm565 = vcmp.lt.s32.totalorder %v544, 3
      %vm566 = vcmp.lt.s32.totalorder %v544, 4
      %v567 = vsel %vm563, %v547, %v550
      %v568 = vsel %vm566, %v556, 2102212464
      %v569 = vsel %vm565, %v553, %v568
      %v570 = vsel %vm564, %v567, %v569
      %v571 = vsel %vm563, %v550, %v553
      %v572 = vsel %vm566, %v559, 920167782
      %v573 = vsel %vm565, %v556, %v572
      %v574 = vsel %vm564, %v571, %v573
      %v575 = vsel %vm563, %v553, %v556
      %v576 = vsel %vm566, %v562, 1326507024
      %v577 = vsel %vm565, %v559, %v576
      %v578 = vsel %vm564, %v575, %v577
      %v579 = vshll.u32 %v539, 8
      %v580 = vand.u32 %v579, 65535
      %v581 = vshrl.u32 %v579, 16
      %v582 = vand.u32 %v578, 65535
      %v583 = vshrl.u32 %v578, 16
      %v584 = vmul.u32 %v580, %v582
      %v585 = vmul.u32 %v580, %v583
      %v586 = vmul.u32 %v581, %v582
      %v587 = vmul.u32 %v581, %v583
      %v588 = vshll.u32 %v585, 16
      %v589 = vshrl.u32 %v585, 16
      %v590 = vshll.u32 %v586, 16
      %v591 = vshrl.u32 %v586, 16
      %vm592 = vc.u32 %v584, %v588
      %v593 = vsel %vm592, 1, 0
      %v594 = vadd.s32 %v584, %v588
      %v595 = vadd.s32 %v587, %v593
      %vm596 = vc.u32 %v594, %v590
      %v597 = vsel %vm596, 1, 0
      %v598 = vadd.s32 %v594, %v590
      %v599 = vadd.s32 %v595, %v597
      %v600 = vadd.s32 %v599, %v589
      %v601 = vadd.s32 %v600, %v591
      %v602 = vand.u32 %v579, 65535
      %v603 = vshrl.u32 %v579, 16
      %v604 = vand.u32 %v574, 65535
      %v605 = vshrl.u32 %v574, 16
      %v606 = vmul.u32 %v602, %v604
      %v607 = vmul.u32 %v602, %v605
      %v608 = vmul.u32 %v603, %v604
      %v609 = vmul.u32 %v603, %v605
      %v610 = vshll.u32 %v607, 16
      %v611 = vshrl.u32 %v607, 16
      %v612 = vshll.u32 %v608, 16
      %v613 = vshrl.u32 %v608, 16
      %vm614 = vc.u32 %v606, %v610
      %v615 = vsel %vm614, 1, 0
      %v616 = vadd.s32 %v606, %v610
      %v617 = vadd.s32 %v609, %v615
      %vm618 = vc.u32 %v616, %v612
      %v619 = vsel %vm618, 1, 0
      %v620 = vadd.s32 %v616, %v612
      %v621 = vadd.s32 %v617, %v619
      %v622 = vadd.s32 %v621, %v611
      %v623 = vadd.s32 %v622, %v613
      %v624 = vmul.u32 %v579, %v570
      %v625 = vadd.s32 %v601, %v620
      %vm626 = vc.u32 %v601, %v620
      %v627 = vadd.s32 %v623, 1
      %v628 = vsel %vm626, %v627, %v623
      %v629 = vadd.s32 %v624, %v628
      %v630 = vadd.s32 %v629, 536870912
      %v631 = vshrl.u32 %v630, 30
      %v632 = vshll.u32 %v631, 30
      %v633 = vsub.s32 %v629, %v632
      %vm634 = vcmp.lt.s32.totalorder %v633, 0
      %v635 = vsub.s32 0, %v633
      %v636 = vsel %vm634, %v635, %v633
      %v637 = vclz %v636
      %v638 = vsub.s32 %v637, 2
      %vm639 = vcmp.gt.s32.totalorder 0, %v638
      %v640 = vsel %vm639, 0, %v638
      %v641 = vsub.s32 32, %v640
      %v642 = vshll.u32 %v633, %v640
      %v643 = vshrl.u32 %v625, %v641
      %v644 = vor.u32 %v642, %v643
      %v645 = vsub.s32 4294967266, %v640
      %v646 = vadd.s32 %v645, 127
      %v647 = vshll.u32 %v646, 23
      %v648 = vor.u32 4788187, %v647
      %v649 = vand.u32 2147483647, %v648
      %v651 = vcvt.s32.f32 %v644
      %v652 = vmul.f32 %v651, %v649
      %v653 = vxor.u32 %v652, 2147483648
      %v654 = vsel %vm533, %v653, %v652
      %v655 = vsub.s32 4, %v631
      %v656 = vsel %vm533, %v655, %v631
      %v657 = vsel %vm532, %v375, %v654
      %v658 = vsel %vm532, 0, %v656
      %v659 = vmul.f32 %v657, %v657
      %v660 = vmul.f32 %v659, -0.001358992
      %v661 = vadd.f32 %v660, 0.041655596
      %v662 = vmul.f32 %v659, %v661
      %v663 = vadd.f32 %v662, -0.4999988
      %v664 = vmul.f32 %v659, %v663
      %v665 = vadd.f32 1.0, %v664
      %v666 = vmul.f32 %v657, %v657
      %v667 = vmul.f32 %v666, -0.00019511016
      %v668 = vadd.f32 %v667, 0.008332121
      %v669 = vmul.f32 %v666, %v668
      %v670 = vadd.f32 %v669, -0.16666654
      %v671 = vmul.f32 %v666, %v670
      %v672 = vadd.f32 %v671, 1.0
      %v673 = vmul.f32 %v672, %v657
      %vm674 = vweird.f32 %v375
      %v675 = vadd.s32 %v658, 3
      %v676 = vand.u32 %v675, 3
      %vm677 = vcmp.lt.s32.totalorder %v676, 2
      %vm678 = vcmp.eq.s32.totalorder %v676, 0
      %v679 = vxor.u32 %v673, 2147483648
      %v680 = vsel %vm678, %v665, %v679
      %vm681 = vcmp.eq.s32.totalorder %v676, 2
      %v682 = vxor.u32 %v665, 2147483648
      %v683 = vsel %vm681, %v682, %v673
      %v684 = vsel %vm677, %v680, %v683
      %v685 = vsel %vm674, nan, %v684
      %v686 = vmul.f32 %v530, %v530
      %v687 = vmul.f32 %v685, %v685
      %689 = vset.pattern.permute.xlu0 0
      %690 = vperm.xlu0 %689, %v368
      %v691 = vpop.permute.xlu0 %690
      %v693 = vmul.f32 %v691, %v686
      %v694 = vmul.f32 %v691, %v687
      %v695 = vadd.f32 %v365, %v693
      %v696 = vadd.f32 %v366, %v694
      %699 = vrot.lane.b32.xlu0 %v695, 127
      %v700 = vpop.permute.xlu0 %699
      %701 = vrot.lane.b32.xlu0 %v696, 127
      %v702 = vpop.permute.xlu0 %701
      %vm703 = vcmask 1039360
      %v704 = vsel %vm703, %v700, %v702
      %706 = vrot.lane.b32.xlu0 %v695, 126
      %v707 = vpop.permute.xlu0 %706
      %708 = vrot.lane.b32.xlu0 %v696, 126
      %v709 = vpop.permute.xlu0 %708
      %vm710 = vcmask 1031168
      %v711 = vsel %vm710, %v707, %v709
      %713 = vrot.lane.b32.xlu0 %v695, 125
      %v714 = vpop.permute.xlu0 %713
      %715 = vrot.lane.b32.xlu0 %v696, 125
      %v716 = vpop.permute.xlu0 %715
      %vm717 = vcmask 1022976
      %v718 = vsel %vm717, %v714, %v716
      %720 = vrot.lane.b32.xlu0 %v695, 124
      %v721 = vpop.permute.xlu0 %720
      %722 = vrot.lane.b32.xlu0 %v696, 124
      %v723 = vpop.permute.xlu0 %722
      %vm724 = vcmask 1014784
      %v725 = vsel %vm724, %v721, %v723
      %727 = vrot.lane.b32.xlu0 %v695, 123
      %v728 = vpop.permute.xlu0 %727
      %729 = vrot.lane.b32.xlu0 %v696, 123
      %v730 = vpop.permute.xlu0 %729
      %vm731 = vcmask 1006592
      %v732 = vsel %vm731, %v728, %v730
      %734 = vrot.lane.b32.xlu0 %v695, 122
      %v735 = vpop.permute.xlu0 %734
      %736 = vrot.lane.b32.xlu0 %v696, 122
      %v737 = vpop.permute.xlu0 %736
      %vm738 = vcmask 998400
      %v739 = vsel %vm738, %v735, %v737
      %v741 = vld [vmem:[%s3] sm:$0xff]
      %v742 = vld [vmem:[%s4] sm:$0xff]
      %744 = vset.pattern.permute.xlu0 0
      %745 = vperm.xlu0 %744, %v742
      %v746 = vpop.permute.xlu0 %745
      %vm748 = vcmask 457728
      %v750 = vsel %vm748, %v741, 0
      %752 = vmatpush.msra.mxu0 0.0
      %753 = vmatpush.msra.mxu0 0.0
      %754 = vmatpush.msra.mxu0 0.0
      %755 = vmatpush.msra.mxu0 0.0
      %756 = vmatpush.msra.mxu0 0.0
      %757 = vmatpush.msra.mxu0 0.0
      %758 = vmatpush.msra.mxu0 0.0
      %759 = vmatpush.msra.mxu0 0.0
      %760 = vmatpush.msra.mxu0 0.0
      %761 = vmatpush.msra.mxu0 %v739
      %762 = vmatpush.msra.mxu0 %v732
      %763 = vmatpush.msra.mxu0 %v725
      %764 = vmatpush.msra.mxu0 %v718
      %765 = vmatpush.msra.mxu0 %v711
      %766 = vmatpush.msra.mxu0 %v704
      %767 = vmatpush.msra.mxu0 %v695
      %768 = vmatmul.f32.gmra.mxu0 %v750
      %v769 = vpop.f32.mrf.mxu0
      %v770 = vadd.f32 %v746, %v769
      %771 = vdwg.mxu0
      %v772 = vld [vmem:[%s5] sm:$0xff]
      %v773 = vld [vmem:[%s6] sm:$0xff]
      %775 = vset.pattern.permute.xlu0 0
      %776 = vperm.xlu0 %775, %v772
      %v777 = vpop.permute.xlu0 %776
      %v779 = vmul.f32 %v777, %v770
      %v780 = vand.u32 2147483647, %v779
      %vm781 = vcmp.le.f32.partialorder %v780, 0.7853982
      %vm782 = vcmp.lt.s32.totalorder %v779, 0
      %v783 = vand.u32 %v779, 2139095040
      %v784 = vshrl.u32 %v783, 23
      %v785 = vsub.s32 %v784, 127
      %v786 = vand.u32 2147483647, %v779
      %v787 = vand.u32 %v786, 8388607
      %v788 = vor.u32 %v787, 8388608
      %v789 = vsub.s32 0, %v788
      %v790 = vadd.s32 %v785, 1
      %vm791 = vcmp.gt.s32.totalorder %v790, 0
      %v792 = vsel %vm791, %v790, 0
      %v793 = vshrl.u32 %v792, 5
      %v794 = vand.u32 %v792, 31
      %v795 = vsub.s32 32, %v794
      %v796 = vshrl.u32 683565275, %v795
      %v797 = vshll.u32 683565275, %v794
      %v798 = vshrl.u32 2475754826, %v795
      %v799 = vor.u32 %v797, %v798
      %v800 = vshll.u32 2475754826, %v794
      %v801 = vshrl.u32 2131351028, %v795
      %v802 = vor.u32 %v800, %v801
      %v803 = vshll.u32 2131351028, %v794
      %v804 = vshrl.u32 2102212464, %v795
      %v805 = vor.u32 %v803, %v804
      %v806 = vshll.u32 2102212464, %v794
      %v807 = vshrl.u32 920167782, %v795
      %v808 = vor.u32 %v806, %v807
      %v809 = vshll.u32 920167782, %v794
      %v810 = vshrl.u32 1326507024, %v795
      %v811 = vor.u32 %v809, %v810
      %vm812 = vcmp.lt.s32.totalorder %v793, 1
      %vm813 = vcmp.lt.s32.totalorder %v793, 2
      %vm814 = vcmp.lt.s32.totalorder %v793, 3
      %vm815 = vcmp.lt.s32.totalorder %v793, 4
      %v816 = vsel %vm812, %v796, %v799
      %v817 = vsel %vm815, %v805, 2102212464
      %v818 = vsel %vm814, %v802, %v817
      %v819 = vsel %vm813, %v816, %v818
      %v820 = vsel %vm812, %v799, %v802
      %v821 = vsel %vm815, %v808, 920167782
      %v822 = vsel %vm814, %v805, %v821
      %v823 = vsel %vm813, %v820, %v822
      %v824 = vsel %vm812, %v802, %v805
      %v825 = vsel %vm815, %v811, 1326507024
      %v826 = vsel %vm814, %v808, %v825
      %v827 = vsel %vm813, %v824, %v826
      %v828 = vshll.u32 %v788, 8
      %v829 = vand.u32 %v828, 65535
      %v830 = vshrl.u32 %v828, 16
      %v831 = vand.u32 %v827, 65535
      %v832 = vshrl.u32 %v827, 16
      %v833 = vmul.u32 %v829, %v831
      %v834 = vmul.u32 %v829, %v832
      %v835 = vmul.u32 %v830, %v831
      %v836 = vmul.u32 %v830, %v832
      %v837 = vshll.u32 %v834, 16
      %v838 = vshrl.u32 %v834, 16
      %v839 = vshll.u32 %v835, 16
      %v840 = vshrl.u32 %v835, 16
      %vm841 = vc.u32 %v833, %v837
      %v842 = vsel %vm841, 1, 0
      %v843 = vadd.s32 %v833, %v837
      %v844 = vadd.s32 %v836, %v842
      %vm845 = vc.u32 %v843, %v839
      %v846 = vsel %vm845, 1, 0
      %v847 = vadd.s32 %v843, %v839
      %v848 = vadd.s32 %v844, %v846
      %v849 = vadd.s32 %v848, %v838
      %v850 = vadd.s32 %v849, %v840
      %v851 = vand.u32 %v828, 65535
      %v852 = vshrl.u32 %v828, 16
      %v853 = vand.u32 %v823, 65535
      %v854 = vshrl.u32 %v823, 16
      %v855 = vmul.u32 %v851, %v853
      %v856 = vmul.u32 %v851, %v854
      %v857 = vmul.u32 %v852, %v853
      %v858 = vmul.u32 %v852, %v854
      %v859 = vshll.u32 %v856, 16
      %v860 = vshrl.u32 %v856, 16
      %v861 = vshll.u32 %v857, 16
      %v862 = vshrl.u32 %v857, 16
      %vm863 = vc.u32 %v855, %v859
      %v864 = vsel %vm863, 1, 0
      %v865 = vadd.s32 %v855, %v859
      %v866 = vadd.s32 %v858, %v864
      %vm867 = vc.u32 %v865, %v861
      %v868 = vsel %vm867, 1, 0
      %v869 = vadd.s32 %v865, %v861
      %v870 = vadd.s32 %v866, %v868
      %v871 = vadd.s32 %v870, %v860
      %v872 = vadd.s32 %v871, %v862
      %v873 = vmul.u32 %v828, %v819
      %v874 = vadd.s32 %v850, %v869
      %vm875 = vc.u32 %v850, %v869
      %v876 = vadd.s32 %v872, 1
      %v877 = vsel %vm875, %v876, %v872
      %v878 = vadd.s32 %v873, %v877
      %v879 = vadd.s32 %v878, 536870912
      %v880 = vshrl.u32 %v879, 30
      %v881 = vshll.u32 %v880, 30
      %v882 = vsub.s32 %v878, %v881
      %vm883 = vcmp.lt.s32.totalorder %v882, 0
      %v884 = vsub.s32 0, %v882
      %v885 = vsel %vm883, %v884, %v882
      %v886 = vclz %v885
      %v887 = vsub.s32 %v886, 2
      %vm888 = vcmp.gt.s32.totalorder 0, %v887
      %v889 = vsel %vm888, 0, %v887
      %v890 = vsub.s32 32, %v889
      %v891 = vshll.u32 %v882, %v889
      %v892 = vshrl.u32 %v874, %v890
      %v893 = vor.u32 %v891, %v892
      %v894 = vsub.s32 4294967266, %v889
      %v895 = vadd.s32 %v894, 127
      %v896 = vshll.u32 %v895, 23
      %v897 = vor.u32 4788187, %v896
      %v898 = vand.u32 2147483647, %v897
      %v900 = vcvt.s32.f32 %v893
      %v901 = vmul.f32 %v900, %v898
      %v902 = vxor.u32 %v901, 2147483648
      %v903 = vsel %vm782, %v902, %v901
      %v904 = vsub.s32 4, %v880
      %v905 = vsel %vm782, %v904, %v880
      %v906 = vsel %vm781, %v779, %v903
      %v907 = vsel %vm781, 0, %v905
      %v908 = vmul.f32 %v906, %v906
      %v909 = vmul.f32 %v908, -0.001358992
      %v910 = vadd.f32 %v909, 0.041655596
      %v911 = vmul.f32 %v908, %v910
      %v912 = vadd.f32 %v911, -0.4999988
      %v913 = vmul.f32 %v908, %v912
      %v914 = vadd.f32 1.0, %v913
      %v915 = vmul.f32 %v906, %v906
      %v916 = vmul.f32 %v915, -0.00019511016
      %v917 = vadd.f32 %v916, 0.008332121
      %v918 = vmul.f32 %v915, %v917
      %v919 = vadd.f32 %v918, -0.16666654
      %v920 = vmul.f32 %v915, %v919
      %v921 = vadd.f32 %v920, 1.0
      %v922 = vmul.f32 %v921, %v906
      %vm923 = vweird.f32 %v779
      %v924 = vadd.s32 %v907, 3
      %v925 = vand.u32 %v924, 3
      %vm926 = vcmp.lt.s32.totalorder %v925, 2
      %vm927 = vcmp.eq.s32.totalorder %v925, 0
      %v928 = vxor.u32 %v922, 2147483648
      %v929 = vsel %vm927, %v914, %v928
      %vm930 = vcmp.eq.s32.totalorder %v925, 2
      %v931 = vxor.u32 %v914, 2147483648
      %v932 = vsel %vm930, %v931, %v922
      %v933 = vsel %vm926, %v929, %v932
      %v934 = vsel %vm923, nan, %v933
      %v935 = vmul.f32 %v934, %v934
      %937 = vset.pattern.permute.xlu0 0
      %938 = vperm.xlu0 %937, %v773
      %v939 = vpop.permute.xlu0 %938
      %v941 = vmul.f32 %v939, %v935
      %v942 = vadd.f32 %v770, %v941
      %v943 = vld [vmem:[%s7] sm:$0xff]
      %v944 = vld [vmem:[%s8] sm:$0xff]
      %946 = vset.pattern.permute.xlu0 0
      %947 = vperm.xlu0 %946, %v944
      %v948 = vpop.permute.xlu0 %947
      %vm950 = vcmask 64512
      %v952 = vsel %vm950, %v943, 0
      %954 = vmatpush.msra.mxu0 0.0
      %955 = vmatpush.msra.mxu0 0.0
      %956 = vmatpush.msra.mxu0 0.0
      %957 = vmatpush.msra.mxu0 0.0
      %958 = vmatpush.msra.mxu0 0.0
      %959 = vmatpush.msra.mxu0 0.0
      %960 = vmatpush.msra.mxu0 0.0
      %961 = vmatpush.msra.mxu0 0.0
      %962 = vmatpush.msra.mxu0 0.0
      %963 = vmatpush.msra.mxu0 0.0
      %964 = vmatpush.msra.mxu0 0.0
      %965 = vmatpush.msra.mxu0 0.0
      %966 = vmatpush.msra.mxu0 0.0
      %967 = vmatpush.msra.mxu0 0.0
      %968 = vmatpush.msra.mxu0 0.0
      %969 = vmatpush.msra.mxu0 %v942
      %970 = vmatmul.f32.gmra.mxu0 %v952
      %v971 = vpop.f32.mrf.mxu0
      %v972 = vadd.f32 %v948, %v971
      %973 = vdwg.mxu0
      %975 = vrot.lane.b32.xlu0 %v972, 3
      %v976 = vpop.permute.xlu0 %975
      %v978 = vadd.f32 %v365, %v976
      %v979 = vadd.f32 %v366, %v976
      %982 = vrot.lane.b32.xlu0 %v978, 125
      %v983 = vpop.permute.xlu0 %982
      %984 = vrot.lane.b32.xlu0 %v979, 125
      %v985 = vpop.permute.xlu0 %984
      %v986 = vsel %vm717, %v983, %v985
      %988 = vst [vmem:[%s364] sm:$0xff] %v986
      %p989 = scmp.lt.s32.totalorder %s24, 1
      %s990 = scalar_select %p989, %s24, 1
      %p991 = scmp.lt.s32.totalorder %s25, 0
      %s992 = scalar_select %p991, %s25, 0
      %s993 = sadd.s32 %s992, %s990
      %s994 = smul.addr %s993, 8
      %s995 = scalar_lea.vmem %s9, %s994
      // Predicated region
      $region57: #{decoder_block_forward.5} parent=55 // pred_check
        %p996 = pneg %p248
      $region58: #{decoder_block_forward.5} parent=55 // pred_check_branch
        %998 = sbr.rel (%p996) target = $region60
      $region59: #{decoder_block_forward.5} parent=55 // pred_region
        _
      $region60: #{decoder_block_forward.5} parent=55 // pred_fallthru
        _
    $region56: #{decoder_block_forward.5} parent=5 // pred_fallthru
      _
    %p999 = scmp.le.s32.totalorder 2, %s15
    // Predicated region
    $region61: #{decoder_block_forward.5} parent=5 // pred_check
      %p1000 = pneg %p999
    $region62: #{decoder_block_forward.5} parent=5 // pred_check_branch
      %1002 = sbr.rel (%p1000) target = $region64
    $region63: #{decoder_block_forward.5} parent=5 // pred_region
      %s1003 = ssub.s32 %s15, 2
      // Predicated region
      $region65: #{decoder_block_forward.5} parent=63 // pred_check
        %p1004 = pneg %p254
      $region66: #{decoder_block_forward.5} parent=63 // pred_check_branch
        %1006 = sbr.rel (%p1004) target = $region68
      $region67: #{decoder_block_forward.5} parent=63 // pred_region
        %p1007 = scmp.lt.s32.totalorder %s26, 1
        %s1008 = scalar_select %p1007, %s26, 1
        %p1009 = scmp.lt.s32.totalorder %s27, 0
        %s1010 = scalar_select %p1009, %s27, 0
        %s1011 = sadd.s32 %s1010, %s1008
        %s1012 = smul.addr %s1011, 8
        %s1013 = scalar_lea.vmem %s9, %s1012
      $region68: #{decoder_block_forward.5} parent=63 // pred_fallthru
        _
    $region64: #{decoder_block_forward.5} parent=5 // pred_fallthru
      _
  $region6: #{decoder_block_forward.5} parent=0 // loop_footer
    %s19 = sadd.s32 1, %s15
  $region7: #{decoder_block_forward.5} parent=0 // loop_footer_branch
    %14 = sbr.rel target = $region3
  $region8: #{decoder_block_forward.5} parent=0 // loop_exit
    _

// kernel: decoder_block_forward.6
$region0: #{decoder_block_forward.6}
  #allocation0 [shape = 'u32[]', space=smem, size = 0x4, offset = 0x4, fixed_abs, tag = 'smem constant byte address 0x4 - core index']
  #allocation1 [shape = 'u32[72,128]{1,0:T(1,128)}', space=vmem, size = 0x9000, scoped, tag = 'internal scratch']
  %s0 = inlined_call_operand.vmem [shape: f32[2,1,8,146], index: 0, kind: input, shape index: {}]
  %s1 = inlined_call_operand.vmem [shape: f32[8,1], index: 1, kind: input, shape index: {}]
  %s2 = inlined_call_operand.vmem [shape: f32[8,1], index: 2, kind: input, shape index: {}]
  %s3 = inlined_call_operand.vmem [shape: f32[8,56], index: 3, kind: input, shape index: {}]
  %s4 = inlined_call_operand.vmem [shape: f32[8,1], index: 4, kind: input, shape index: {}]
  %s5 = inlined_call_operand.vmem [shape: f32[8,1], index: 5, kind: input, shape index: {}]
  %s6 = inlined_call_operand.vmem [shape: f32[8,1], index: 6, kind: input, shape index: {}]
  %s7 = inlined_call_operand.vmem [shape: f32[8,8], index: 7, kind: input, shape index: {}]
  %s8 = inlined_call_operand.vmem [shape: f32[8,1], index: 8, kind: input, shape index: {}]
  %s9 = inlined_call_operand.vmem [shape: f32[2,8,128], index: 9, kind: output, shape index: {}]
  %s10 = sld [smem:[#allocation0]]
  $region69: #{decoder_block_forward.6} parent=0
    _
  %s12 = ssub.s32 1, %s10
  %s13 = scalar_select 0, %s12, %s10
  loop: start=0, step=1, limit=4
  $region2: #{decoder_block_forward.6} parent=0 // loop_pre_header
    _
  $region3: #{decoder_block_forward.6} parent=0 // loop_header
    %s15 = sphi 0, %s19
    %p16 = scmp.ge.s32.totalorder %s15, 4
    %s22 = sphi 0, %s34
    %s23 = sphi 0, %s30
    %s24 = sphi 0, %s22
    %s25 = sphi 0, %s23
    %s26 = sphi 0, %s24
    %s27 = sphi 0, %s25
    %s39 = sphi 0, %s41
    %s42 = sphi 0, %s39
    %s43 = sphi 0, %s42
    %s59 = sphi 0, %s43
    %s63 = sphi 0, %s63
    %s65 = sphi 0, %s63
    %s66 = sphi 0, %s65
    %s80 = sphi 0, %s66
    %s84 = sphi 0, %s84
    %s86 = sphi 0, %s84
    %s87 = sphi 0, %s86
    %s101 = sphi 0, %s87
    %s105 = sphi 0, %s105
    %s107 = sphi 0, %s105
    %s108 = sphi 0, %s107
    %s122 = sphi 0, %s108
    %s126 = sphi 0, %s126
    %s128 = sphi 0, %s126
    %s129 = sphi 0, %s128
    %s143 = sphi 0, %s129
    %s147 = sphi 0, %s147
    %s149 = sphi 0, %s147
    %s150 = sphi 0, %s149
    %s164 = sphi 0, %s150
    %s168 = sphi 0, %s168
    %s170 = sphi 0, %s168
    %s171 = sphi 0, %s170
    %s185 = sphi 0, %s171
    %s189 = sphi 0, %s189
    %s191 = sphi 0, %s189
    %s192 = sphi 0, %s191
    %s206 = sphi 0, %s192
    %s210 = sphi 0, %s210
    %s212 = sphi 0, %s210
    %s213 = sphi 0, %s212
    %s227 = sphi 0, %s213
    %s235 = sphi 0, %s237
    %s238 = sphi 0, %s235
    %s239 = sphi 0, %s238
    %s255 = sphi 0, %s239
  $region4: #{decoder_block_forward.6} parent=0 // loop_header_branch
    %18 = sbr.rel (%p16) target = $region8
  $region5: #{decoder_block_forward.6} parent=0 // loop_body
    %s20 = ssub.s32 %s15, 1
    %s21 = ssub.s32 %s15, 2
    %s28 = sadd.s32 1, %s23
    %p29 = scmp.ge.s32.totalorder %s28, 1
    %s30 = scalar_select %p29, 0, %s28
    %s31 = sadd.s32 1, %s22
    %s32 = scalar_select %p29, %s31, %s22
    %p33 = scmp.ge.s32.totalorder %s32, 2
    %s34 = scalar_select %p33, 0, %s32
    %s35 = ssub.s32 %s22, %s34
    %s36 = ssub.s32 %s23, %s30
    %s37 = sor.u32 %s35, %s36
    %p38 = scmp.eq.s32.totalorder %s37, 0
    %s40 = sadd.s32 %s39, 1
    %s41 = scalar_select %p38, %s39, %s40
    %p44 = pneg %p38
    %p45 = scmp.eq.s32.totalorder %s15, 1
    %p46 = por %p44, %p45
    %p47 = scmp.ne.s32.totalorder %s39, %s42
    %p48 = scmp.eq.s32.totalorder %s15, 0
    %p49 = por %p47, %p48
    %p50 = scmp.ne.s32.totalorder %s39, %s42
    %p51 = scmp.eq.s32.totalorder %s20, 1
    %p52 = por %p50, %p51
    %p53 = scmp.ne.s32.totalorder %s42, %s43
    %p54 = scmp.eq.s32.totalorder %s20, 0
    %p55 = por %p53, %p54
    %p56 = scmp.ne.s32.totalorder %s42, %s43
    %p57 = scmp.eq.s32.totalorder %s21, 1
    %p58 = por %p56, %p57
    %p60 = scmp.ne.s32.totalorder %s43, %s59
    %p61 = scmp.eq.s32.totalorder %s21, 0
    %p62 = por %p60, %p61
    %s64 = sadd.s32 %s63, 1
    %p67 = scmp.eq.s32.totalorder %s15, 1
    %p68 = scmp.ne.s32.totalorder %s63, %s65
    %p69 = scmp.eq.s32.totalorder %s15, 0
    %p70 = por %p68, %p69
    %p71 = scmp.ne.s32.totalorder %s63, %s65
    %p72 = scmp.eq.s32.totalorder %s20, 1
    %p73 = por %p71, %p72
    %p74 = scmp.ne.s32.totalorder %s65, %s66
    %p75 = scmp.eq.s32.totalorder %s20, 0
    %p76 = por %p74, %p75
    %p77 = scmp.ne.s32.totalorder %s65, %s66
    %p78 = scmp.eq.s32.totalorder %s21, 1
    %p79 = por %p77, %p78
    %p81 = scmp.ne.s32.totalorder %s66, %s80
    %p82 = scmp.eq.s32.totalorder %s21, 0
    %p83 = por %p81, %p82
    %s85 = sadd.s32 %s84, 1
    %p88 = scmp.eq.s32.totalorder %s15, 1
    %p89 = scmp.ne.s32.totalorder %s84, %s86
    %p90 = scmp.eq.s32.totalorder %s15, 0
    %p91 = por %p89, %p90
    %p92 = scmp.ne.s32.totalorder %s84, %s86
    %p93 = scmp.eq.s32.totalorder %s20, 1
    %p94 = por %p92, %p93
    %p95 = scmp.ne.s32.totalorder %s86, %s87
    %p96 = scmp.eq.s32.totalorder %s20, 0
    %p97 = por %p95, %p96
    %p98 = scmp.ne.s32.totalorder %s86, %s87
    %p99 = scmp.eq.s32.totalorder %s21, 1
    %p100 = por %p98, %p99
    %p102 = scmp.ne.s32.totalorder %s87, %s101
    %p103 = scmp.eq.s32.totalorder %s21, 0
    %p104 = por %p102, %p103
    %s106 = sadd.s32 %s105, 1
    %p109 = scmp.eq.s32.totalorder %s15, 1
    %p110 = scmp.ne.s32.totalorder %s105, %s107
    %p111 = scmp.eq.s32.totalorder %s15, 0
    %p112 = por %p110, %p111
    %p113 = scmp.ne.s32.totalorder %s105, %s107
    %p114 = scmp.eq.s32.totalorder %s20, 1
    %p115 = por %p113, %p114
    %p116 = scmp.ne.s32.totalorder %s107, %s108
    %p117 = scmp.eq.s32.totalorder %s20, 0
    %p118 = por %p116, %p117
    %p119 = scmp.ne.s32.totalorder %s107, %s108
    %p120 = scmp.eq.s32.totalorder %s21, 1
    %p121 = por %p119, %p120
    %p123 = scmp.ne.s32.totalorder %s108, %s122
    %p124 = scmp.eq.s32.totalorder %s21, 0
    %p125 = por %p123, %p124
    %s127 = sadd.s32 %s126, 1
    %p130 = scmp.eq.s32.totalorder %s15, 1
    %p131 = scmp.ne.s32.totalorder %s126, %s128
    %p132 = scmp.eq.s32.totalorder %s15, 0
    %p133 = por %p131, %p132
    %p134 = scmp.ne.s32.totalorder %s126, %s128
    %p135 = scmp.eq.s32.totalorder %s20, 1
    %p136 = por %p134, %p135
    %p137 = scmp.ne.s32.totalorder %s128, %s129
    %p138 = scmp.eq.s32.totalorder %s20, 0
    %p139 = por %p137, %p138
    %p140 = scmp.ne.s32.totalorder %s128, %s129
    %p141 = scmp.eq.s32.totalorder %s21, 1
    %p142 = por %p140, %p141
    %p144 = scmp.ne.s32.totalorder %s129, %s143
    %p145 = scmp.eq.s32.totalorder %s21, 0
    %p146 = por %p144, %p145
    %s148 = sadd.s32 %s147, 1
    %p151 = scmp.eq.s32.totalorder %s15, 1
    %p152 = scmp.ne.s32.totalorder %s147, %s149
    %p153 = scmp.eq.s32.totalorder %s15, 0
    %p154 = por %p152, %p153
    %p155 = scmp.ne.s32.totalorder %s147, %s149
    %p156 = scmp.eq.s32.totalorder %s20, 1
    %p157 = por %p155, %p156
    %p158 = scmp.ne.s32.totalorder %s149, %s150
    %p159 = scmp.eq.s32.totalorder %s20, 0
    %p160 = por %p158, %p159
    %p161 = scmp.ne.s32.totalorder %s149, %s150
    %p162 = scmp.eq.s32.totalorder %s21, 1
    %p163 = por %p161, %p162
    %p165 = scmp.ne.s32.totalorder %s150, %s164
    %p166 = scmp.eq.s32.totalorder %s21, 0
    %p167 = por %p165, %p166
    %s169 = sadd.s32 %s168, 1
    %p172 = scmp.eq.s32.totalorder %s15, 1
    %p173 = scmp.ne.s32.totalorder %s168, %s170
    %p174 = scmp.eq.s32.totalorder %s15, 0
    %p175 = por %p173, %p174
    %p176 = scmp.ne.s32.totalorder %s168, %s170
    %p177 = scmp.eq.s32.totalorder %s20, 1
    %p178 = por %p176, %p177
    %p179 = scmp.ne.s32.totalorder %s170, %s171
    %p180 = scmp.eq.s32.totalorder %s20, 0
    %p181 = por %p179, %p180
    %p182 = scmp.ne.s32.totalorder %s170, %s171
    %p183 = scmp.eq.s32.totalorder %s21, 1
    %p184 = por %p182, %p183
    %p186 = scmp.ne.s32.totalorder %s171, %s185
    %p187 = scmp.eq.s32.totalorder %s21, 0
    %p188 = por %p186, %p187
    %s190 = sadd.s32 %s189, 1
    %p193 = scmp.eq.s32.totalorder %s15, 1
    %p194 = scmp.ne.s32.totalorder %s189, %s191
    %p195 = scmp.eq.s32.totalorder %s15, 0
    %p196 = por %p194, %p195
    %p197 = scmp.ne.s32.totalorder %s189, %s191
    %p198 = scmp.eq.s32.totalorder %s20, 1
    %p199 = por %p197, %p198
    %p200 = scmp.ne.s32.totalorder %s191, %s192
    %p201 = scmp.eq.s32.totalorder %s20, 0
    %p202 = por %p200, %p201
    %p203 = scmp.ne.s32.totalorder %s191, %s192
    %p204 = scmp.eq.s32.totalorder %s21, 1
    %p205 = por %p203, %p204
    %p207 = scmp.ne.s32.totalorder %s192, %s206
    %p208 = scmp.eq.s32.totalorder %s21, 0
    %p209 = por %p207, %p208
    %s211 = sadd.s32 %s210, 1
    %p214 = scmp.eq.s32.totalorder %s15, 1
    %p215 = scmp.ne.s32.totalorder %s210, %s212
    %p216 = scmp.eq.s32.totalorder %s15, 0
    %p217 = por %p215, %p216
    %p218 = scmp.ne.s32.totalorder %s210, %s212
    %p219 = scmp.eq.s32.totalorder %s20, 1
    %p220 = por %p218, %p219
    %p221 = scmp.ne.s32.totalorder %s212, %s213
    %p222 = scmp.eq.s32.totalorder %s20, 0
    %p223 = por %p221, %p222
    %p224 = scmp.ne.s32.totalorder %s212, %s213
    %p225 = scmp.eq.s32.totalorder %s21, 1
    %p226 = por %p224, %p225
    %p228 = scmp.ne.s32.totalorder %s213, %s227
    %p229 = scmp.eq.s32.totalorder %s21, 0
    %p230 = por %p228, %p229
    %s231 = ssub.s32 %s22, %s34
    %s232 = ssub.s32 %s23, %s30
    %s233 = sor.u32 %s231, %s232
    %p234 = scmp.eq.s32.totalorder %s233, 0
    %s236 = sadd.s32 %s235, 1
    %s237 = scalar_select %p234, %s235, %s236
    %p240 = pneg %p234
    %p241 = scmp.eq.s32.totalorder %s15, 1
    %p242 = por %p240, %p241
    %p243 = scmp.ne.s32.totalorder %s235, %s238
    %p244 = scmp.eq.s32.totalorder %s15, 0
    %p245 = por %p243, %p244
    %p246 = scmp.ne.s32.totalorder %s235, %s238
    %p247 = scmp.eq.s32.totalorder %s20, 1
    %p248 = por %p246, %p247
    %p249 = scmp.ne.s32.totalorder %s238, %s239
    %p250 = scmp.eq.s32.totalorder %s20, 0
    %p251 = por %p249, %p250
    %p252 = scmp.ne.s32.totalorder %s238, %s239
    %p253 = scmp.eq.s32.totalorder %s21, 1
    %p254 = por %p252, %p253
    %p256 = scmp.ne.s32.totalorder %s239, %s255
    %p257 = scmp.eq.s32.totalorder %s21, 0
    %p258 = por %p256, %p257
    %p259 = scmp.le.s32.totalorder 1, %s15
    %p260 = scmp.lt.s32.totalorder %s15, 3
    %p261 = pnand %p259, %p260
    %p262 = pneg %p261
    // Predicated region
    $region9: #{decoder_block_forward.6} parent=5 // pred_check
      _
    $region10: #{decoder_block_forward.6} parent=5 // pred_check_branch
      %264 = sbr.rel (%p261) target = $region12
    $region11: #{decoder_block_forward.6} parent=5 // pred_region
      %s265 = ssub.s32 %s15, 1
      // Predicated region
      $region13: #{decoder_block_forward.6} parent=11 // pred_check
        %p266 = pneg %p76
      $region14: #{decoder_block_forward.6} parent=11 // pred_check_branch
        %268 = sbr.rel (%p266) target = $region16
      $region15: #{decoder_block_forward.6} parent=11 // pred_region
        _
      $region16: #{decoder_block_forward.6} parent=11 // pred_fallthru
        _
      // Predicated region
      $region17: #{decoder_block_forward.6} parent=11 // pred_check
        %p269 = pneg %p97
      $region18: #{decoder_block_forward.6} parent=11 // pred_check_branch
        %271 = sbr.rel (%p269) target = $region20
      $region19: #{decoder_block_forward.6} parent=11 // pred_region
        _
      $region20: #{decoder_block_forward.6} parent=11 // pred_fallthru
        _
      // Predicated region
      $region21: #{decoder_block_forward.6} parent=11 // pred_check
        %p272 = pneg %p118
      $region22: #{decoder_block_forward.6} parent=11 // pred_check_branch
        %274 = sbr.rel (%p272) target = $region24
      $region23: #{decoder_block_forward.6} parent=11 // pred_region
        _
      $region24: #{decoder_block_forward.6} parent=11 // pred_fallthru
        _
      // Predicated region
      $region25: #{decoder_block_forward.6} parent=11 // pred_check
        %p275 = pneg %p139
      $region26: #{decoder_block_forward.6} parent=11 // pred_check_branch
        %277 = sbr.rel (%p275) target = $region28
      $region27: #{decoder_block_forward.6} parent=11 // pred_region
        _
      $region28: #{decoder_block_forward.6} parent=11 // pred_fallthru
        _
      // Predicated region
      $region29: #{decoder_block_forward.6} parent=11 // pred_check
        %p278 = pneg %p160
      $region30: #{decoder_block_forward.6} parent=11 // pred_check_branch
        %280 = sbr.rel (%p278) target = $region32
      $region31: #{decoder_block_forward.6} parent=11 // pred_region
        _
      $region32: #{decoder_block_forward.6} parent=11 // pred_fallthru
        _
      // Predicated region
      $region33: #{decoder_block_forward.6} parent=11 // pred_check
        %p281 = pneg %p181
      $region34: #{decoder_block_forward.6} parent=11 // pred_check_branch
        %283 = sbr.rel (%p281) target = $region36
      $region35: #{decoder_block_forward.6} parent=11 // pred_region
        _
      $region36: #{decoder_block_forward.6} parent=11 // pred_fallthru
        _
      // Predicated region
      $region37: #{decoder_block_forward.6} parent=11 // pred_check
        %p284 = pneg %p202
      $region38: #{decoder_block_forward.6} parent=11 // pred_check_branch
        %286 = sbr.rel (%p284) target = $region40
      $region39: #{decoder_block_forward.6} parent=11 // pred_region
        _
      $region40: #{decoder_block_forward.6} parent=11 // pred_fallthru
        _
      // Predicated region
      $region41: #{decoder_block_forward.6} parent=11 // pred_check
        %p287 = pneg %p223
      $region42: #{decoder_block_forward.6} parent=11 // pred_check_branch
        %289 = sbr.rel (%p287) target = $region44
      $region43: #{decoder_block_forward.6} parent=11 // pred_region
        _
      $region44: #{decoder_block_forward.6} parent=11 // pred_fallthru
        _
    $region12: #{decoder_block_forward.6} parent=5 // pred_fallthru
      _
    %p290 = scmp.lt.s32.totalorder %s15, 2
    // Predicated region
    $region45: #{decoder_block_forward.6} parent=5 // pred_check
      %p291 = pneg %p290
    $region46: #{decoder_block_forward.6} parent=5 // pred_check_branch
      %293 = sbr.rel (%p291) target = $region48
    $region47: #{decoder_block_forward.6} parent=5 // pred_region
      // Predicated region
      $region49: #{decoder_block_forward.6} parent=47 // pred_check
        %p294 = pneg %p49
      $region50: #{decoder_block_forward.6} parent=47 // pred_check_branch
        %296 = sbr.rel (%p294) target = $region52
      $region51: #{decoder_block_forward.6} parent=47 // pred_region
        %p297 = scmp.lt.s32.totalorder %s22, 1
        %s298 = scalar_select %p297, %s22, 1
        %p299 = scmp.lt.s32.totalorder %s23, 0
        %s300 = scalar_select %p299, %s23, 0
        %s301 = smul.addr %s300, 2
        %s302 = smul.addr %s298, 2
        %s303 = sadd.s32 %s301, %s302
        %s304 = smul.addr %s303, 8
        %s305 = scalar_lea.vmem %s0, %s304
      $region52: #{decoder_block_forward.6} parent=47 // pred_fallthru
        _
    $region48: #{decoder_block_forward.6} parent=5 // pred_fallthru
      _
    %p306 = scmp.le.s32.totalorder 1, %s15
    %p307 = scmp.lt.s32.totalorder %s15, 3
    %p308 = pnand %p306, %p307
    %p309 = pneg %p308
    // Predicated region
    $region53: #{decoder_block_forward.6} parent=5 // pred_check
      _
    $region54: #{decoder_block_forward.6} parent=5 // pred_check_branch
      %311 = sbr.rel (%p308) target = $region56
    $region55: #{decoder_block_forward.6} parent=5 // pred_region
      %s312 = ssub.s32 %s15, 1
      %p313 = scmp.lt.s32.totalorder %s24, 1
      %s314 = scalar_select %p313, %s24, 1
      %p315 = scmp.lt.s32.totalorder %s25, 0
      %s316 = scalar_select %p315, %s25, 0
      %s317 = smul.addr %s316, 2
      %s318 = smul.addr %s314, 2
      %s319 = sadd.s32 %s317, %s318
      %s320 = smul.addr %s319, 8
      %s321 = scalar_lea.vmem %s0, %s320
      %p322 = pneg %p55
      %p323 = pneg %p52
      %p324 = pneg %p76
      %p325 = pneg %p73
      %p326 = pneg %p97
      %p327 = pneg %p94
      %p328 = pneg %p118
      %p329 = pneg %p115
      %p330 = pneg %p139
      %p331 = pneg %p136
      %p332 = pneg %p160
      %p333 = pneg %p157
      %p334 = pneg %p181
      %p335 = pneg %p178
      %p336 = pneg %p202
      %p337 = pneg %p199
      %p338 = pneg %p223
      %p339 = pneg %p220
      %p340 = pneg %p251
      %p341 = pneg %p248
      %p342 = scmp.lt.s32.totalorder %s24, 1
      %s343 = scalar_select %p342, %s24, 1
      %p344 = scmp.lt.s32.totalorder %s25, 0
      %s345 = scalar_select %p344, %s25, 0
      %s346 = sadd.s32 %s345, %s343
      %s347 = smul.addr %s346, 8
      %s348 = scalar_lea.vmem %s9, %s347
      %p349 = scmp.lt.s32.totalorder %s24, 1
      %s350 = scalar_select %p349, %s24, 1
      %p351 = scmp.lt.s32.totalorder %s25, 0
      %s352 = scalar_select %p351, %s25, 0
      %s353 = smul.addr %s352, 2
      %s354 = smul.addr %s350, 2
      %s355 = sadd.s32 %s353, %s354
      %s356 = smul.addr %s355, 8
      %s357 = scalar_lea.vmem %s0, %s356
      %p358 = scmp.lt.s32.totalorder %s24, 1
      %s359 = scalar_select %p358, %s24, 1
      %p360 = scmp.lt.s32.totalorder %s25, 0
      %s361 = scalar_select %p360, %s25, 0
      %s362 = sadd.s32 %s361, %s359
      %s363 = smul.addr %s362, 8
      %s364 = scalar_lea.vmem %s9, %s363
      %v365 = vld [vmem:[%s357] sm:$0xff]
      %v366 = vld [vmem:[%s357 + $0x8] sm:$0xff]
      %v367 = vld [vmem:[%s1] sm:$0xff]
      %v368 = vld [vmem:[%s2] sm:$0xff]
      %370 = vset.pattern.permute.xlu0 0
      %371 = vperm.xlu0 %370, %v367
      %v372 = vpop.permute.xlu0 %371
      %v374 = vmul.f32 %v372, %v365
      %v375 = vmul.f32 %v372, %v366
      %v376 = vand.u32 2147483647, %v374
      %vm377 = vcmp.le.f32.partialorder %v376, 0.7853982
      %vm378 = vcmp.lt.s32.totalorder %v374, 0
      %v379 = vand.u32 %v374, 2139095040
      %v380 = vshrl.u32 %v379, 23
      %v381 = vsub.s32 %v380, 127
      %v382 = vand.u32 2147483647, %v374
      %v383 = vand.u32 %v382, 8388607
      %v384 = vor.u32 %v383, 8388608
      %v385 = vsub.s32 0, %v384
      %v386 = vadd.s32 %v381, 1
      %vm387 = vcmp.gt.s32.totalorder %v386, 0
      %v388 = vsel %vm387, %v386, 0
      %v389 = vshrl.u32 %v388, 5
      %v390 = vand.u32 %v388, 31
      %v391 = vsub.s32 32, %v390
      %v392 = vshrl.u32 683565275, %v391
      %v393 = vshll.u32 683565275, %v390
      %v394 = vshrl.u32 2475754826, %v391
      %v395 = vor.u32 %v393, %v394
      %v396 = vshll.u32 2475754826, %v390
      %v397 = vshrl.u32 2131351028, %v391
      %v398 = vor.u32 %v396, %v397
      %v399 = vshll.u32 2131351028, %v390
      %v400 = vshrl.u32 2102212464, %v391
      %v401 = vor.u32 %v399, %v400
      %v402 = vshll.u32 2102212464, %v390
      %v403 = vshrl.u32 920167782, %v391
      %v404 = vor.u32 %v402, %v403
      %v405 = vshll.u32 920167782, %v390
      %v406 = vshrl.u32 1326507024, %v391
      %v407 = vor.u32 %v405, %v406
      %vm408 = vcmp.lt.s32.totalorder %v389, 1
      %vm409 = vcmp.lt.s32.totalorder %v389, 2
      %vm410 = vcmp.lt.s32.totalorder %v389, 3
      %vm411 = vcmp.lt.s32.totalorder %v389, 4
      %v412 = vsel %vm408, %v392, %v395
      %v413 = vsel %vm411, %v401, 2102212464
      %v414 = vsel %vm410, %v398, %v413
      %v415 = vsel %vm409, %v412, %v414
      %v416 = vsel %vm408, %v395, %v398
      %v417 = vsel %vm411, %v404, 920167782
      %v418 = vsel %vm410, %v401, %v417
      %v419 = vsel %vm409, %v416, %v418
      %v420 = vsel %vm408, %v398, %v401
      %v421 = vsel %vm411, %v407, 1326507024
      %v422 = vsel %vm410, %v404, %v421
      %v423 = vsel %vm409, %v420, %v422
      %v424 = vshll.u32 %v384, 8
      %v425 = vand.u32 %v424, 65535
      %v426 = vshrl.u32 %v424, 16
      %v427 = vand.u32 %v423, 65535
      %v428 = vshrl.u32 %v423, 16
      %v429 = vmul.u32 %v425, %v427
      %v430 = vmul.u32 %v425, %v428
      %v431 = vmul.u32 %v426, %v427
      %v432 = vmul.u32 %v426, %v428
      %v433 = vshll.u32 %v430, 16
      %v434 = vshrl.u32 %v430, 16
      %v435 = vshll.u32 %v431, 16
      %v436 = vshrl.u32 %v431, 16
      %vm437 = vc.u32 %v429, %v433
      %v438 = vsel %vm437, 1, 0
      %v439 = vadd.s32 %v429, %v433
      %v440 = vadd.s32 %v432, %v438
      %vm441 = vc.u32 %v439, %v435
      %v442 = vsel %vm441, 1, 0
      %v443 = vadd.s32 %v439, %v435
      %v444 = vadd.s32 %v440, %v442
      %v445 = vadd.s32 %v444, %v434
      %v446 = vadd.s32 %v445, %v436
      %v447 = vand.u32 %v424, 65535
      %v448 = vshrl.u32 %v424, 16
      %v449 = vand.u32 %v419, 65535
      %v450 = vshrl.u32 %v419, 16
      %v451 = vmul.u32 %v447, %v449
      %v452 = vmul.u32 %v447, %v450
      %v453 = vmul.u32 %v448, %v449
      %v454 = vmul.u32 %v448, %v450
      %v455 = vshll.u32 %v452, 16
      %v456 = vshrl.u32 %v452, 16
      %v457 = vshll.u32 %v453, 16
      %v458 = vshrl.u32 %v453, 16
      %vm459 = vc.u32 %v451, %v455
      %v460 = vsel %vm459, 1, 0
      %v461 = vadd.s32 %v451, %v455
      %v462 = vadd.s32 %v454, %v460
      %vm463 = vc.u32 %v461, %v457
      %v464 = vsel %vm463, 1, 0
      %v465 = vadd.s32 %v461, %v457
      %v466 = vadd.s32 %v462, %v464
      %v467 = vadd.s32 %v466, %v456
      %v468 = vadd.s32 %v467, %v458
      %v469 = vmul.u32 %v424, %v415
      %v470 = vadd.s32 %v446, %v465
      %vm471 = vc.u32 %v446, %v465
      %v472 = vadd.s32 %v468, 1
      %v473 = vsel %vm471, %v472, %v468
      %v474 = vadd.s32 %v469, %v473
      %v475 = vadd.s32 %v474, 536870912
      %v476 = vshrl.u32 %v475, 30
      %v477 = vshll.u32 %v476, 30
      %v478 = vsub.s32 %v474, %v477
      %vm479 = vcmp.lt.s32.totalorder %v478, 0
      %v480 = vsub.s32 0, %v478
      %v481 = vsel %vm479, %v480, %v478
      %v482 = vclz %v481
      %v483 = vsub.s32 %v482, 2
      %vm484 = vcmp.gt.s32.totalorder 0, %v483
      %v485 = vsel %vm484, 0, %v483
      %v486 = vsub.s32 32, %v485
      %v487 = vshll.u32 %v478, %v485
      %v488 = vshrl.u32 %v470, %v486
      %v489 = vor.u32 %v487, %v488
      %v490 = vsub.s32 4294967266, %v485
      %v491 = vadd.s32 %v490, 127
      %v492 = vshll.u32 %v491, 23
      %v493 = vor.u32 4788187, %v492
      %v494 = vand.u32 2147483647, %v493
      %v496 = vcvt.s32.f32 %v489
      %v497 = vmul.f32 %v496, %v494
      %v498 = vxor.u32 %v497, 2147483648
      %v499 = vsel %vm378, %v498, %v497
      %v500 = vsub.s32 4, %v476
      %v501 = vsel %vm378, %v500, %v476
      %v502 = vsel %vm377, %v374, %v499
      %v503 = vsel %vm377, 0, %v501
      %v504 = vmul.f32 %v502, %v502
      %v505 = vmul.f32 %v504, -0.001358992
      %v506 = vadd.f32 %v505, 0.041655596
      %v507 = vmul.f32 %v504, %v506
      %v508 = vadd.f32 %v507, -0.4999988
      %v509 = vmul.f32 %v504, %v508
      %v510 = vadd.f32 1.0, %v509
      %v511 = vmul.f32 %v502, %v502
      %v512 = vmul.f32 %v511, -0.00019511016
      %v513 = vadd.f32 %v512, 0.008332121
      %v514 = vmul.f32 %v511, %v513
      %v515 = vadd.f32 %v514, -0.16666654
      %v516 = vmul.f32 %v511, %v515
      %v517 = vadd.f32 %v516, 1.0
      %v518 = vmul.f32 %v517, %v502
      %vm519 = vweird.f32 %v374
      %v520 = vadd.s32 %v503, 3
      %v521 = vand.u32 %v520, 3
      %vm522 = vcmp.lt.s32.totalorder %v521, 2
      %vm523 = vcmp.eq.s32.totalorder %v521, 0
      %v524 = vxor.u32 %v518, 2147483648
      %v525 = vsel %vm523, %v510, %v524
      %vm526 = vcmp.eq.s32.totalorder %v521, 2
      %v527 = vxor.u32 %v510, 2147483648
      %v528 = vsel %vm526, %v527, %v518
      %v529 = vsel %vm522, %v525, %v528
      %v530 = vsel %vm519, nan, %v529
      %v531 = vand.u32 2147483647, %v375
      %vm532 = vcmp.le.f32.partialorder %v531, 0.7853982
      %vm533 = vcmp.lt.s32.totalorder %v375, 0
      %v534 = vand.u32 %v375, 2139095040
      %v535 = vshrl.u32 %v534, 23
      %v536 = vsub.s32 %v535, 127
      %v537 = vand.u32 2147483647, %v375
      %v538 = vand.u32 %v537, 8388607
      %v539 = vor.u32 %v538, 8388608
      %v540 = vsub.s32 0, %v539
      %v541 = vadd.s32 %v536, 1
      %vm542 = vcmp.gt.s32.totalorder %v541, 0
      %v543 = vsel %vm542, %v541, 0
      %v544 = vshrl.u32 %v543, 5
      %v545 = vand.u32 %v543, 31
      %v546 = vsub.s32 32, %v545
      %v547 = vshrl.u32 683565275, %v546
      %v548 = vshll.u32 683565275, %v545
      %v549 = vshrl.u32 2475754826, %v546
      %v550 = vor.u32 %v548, %v549
      %v551 = vshll.u32 2475754826, %v545
      %v552 = vshrl.u32 2131351028, %v546
      %v553 = vor.u32 %v551, %v552
      %v554 = vshll.u32 2131351028, %v545
      %v555 = vshrl.u32 2102212464, %v546
      %v556 = vor.u32 %v554, %v555
      %v557 = vshll.u32 2102212464, %v545
      %v558 = vshrl.u32 920167782, %v546
      %v559 = vor.u32 %v557, %v558
      %v560 = vshll.u32 920167782, %v545
      %v561 = vshrl.u32 1326507024, %v546
      %v562 = vor.u32 %v560, %v561
      %vm563 = vcmp.lt.s32.totalorder %v544, 1
      %vm564 = vcmp.lt.s32.totalorder %v544, 2
      %vm565 = vcmp.lt.s32.totalorder %v544, 3
      %vm566 = vcmp.lt.s32.totalorder %v544, 4
      %v567 = vsel %vm563, %v547, %v550
      %v568 = vsel %vm566, %v556, 2102212464
      %v569 = vsel %vm565, %v553, %v568
      %v570 = vsel %vm564, %v567, %v569
      %v571 = vsel %vm563, %v550, %v553
      %v572 = vsel %vm566, %v559, 920167782
      %v573 = vsel %vm565, %v556, %v572
      %v574 = vsel %vm564, %v571, %v573
      %v575 = vsel %vm563, %v553, %v556
      %v576 = vsel %vm566, %v562, 1326507024
      %v577 = vsel %vm565, %v559, %v576
      %v578 = vsel %vm564, %v575, %v577
      %v579 = vshll.u32 %v539, 8
      %v580 = vand.u32 %v579, 65535
      %v581 = vshrl.u32 %v579, 16
      %v582 = vand.u32 %v578, 65535
      %v583 = vshrl.u32 %v578, 16
      %v584 = vmul.u32 %v580, %v582
      %v585 = vmul.u32 %v580, %v583
      %v586 = vmul.u32 %v581, %v582
      %v587 = vmul.u32 %v581, %v583
      %v588 = vshll.u32 %v585, 16
      %v589 = vshrl.u32 %v585, 16
      %v590 = vshll.u32 %v586, 16
      %v591 = vshrl.u32 %v586, 16
      %vm592 = vc.u32 %v584, %v588
      %v593 = vsel %vm592, 1, 0
      %v594 = vadd.s32 %v584, %v588
      %v595 = vadd.s32 %v587, %v593
      %vm596 = vc.u32 %v594, %v590
      %v597 = vsel %vm596, 1, 0
      %v598 = vadd.s32 %v594, %v590
      %v599 = vadd.s32 %v595, %v597
      %v600 = vadd.s32 %v599, %v589
      %v601 = vadd.s32 %v600, %v591
      %v602 = vand.u32 %v579, 65535
      %v603 = vshrl.u32 %v579, 16
      %v604 = vand.u32 %v574, 65535
      %v605 = vshrl.u32 %v574, 16
      %v606 = vmul.u32 %v602, %v604
      %v607 = vmul.u32 %v602, %v605
      %v608 = vmul.u32 %v603, %v604
      %v609 = vmul.u32 %v603, %v605
      %v610 = vshll.u32 %v607, 16
      %v611 = vshrl.u32 %v607, 16
      %v612 = vshll.u32 %v608, 16
      %v613 = vshrl.u32 %v608, 16
      %vm614 = vc.u32 %v606, %v610
      %v615 = vsel %vm614, 1, 0
      %v616 = vadd.s32 %v606, %v610
      %v617 = vadd.s32 %v609, %v615
      %vm618 = vc.u32 %v616, %v612
      %v619 = vsel %vm618, 1, 0
      %v620 = vadd.s32 %v616, %v612
      %v621 = vadd.s32 %v617, %v619
      %v622 = vadd.s32 %v621, %v611
      %v623 = vadd.s32 %v622, %v613
      %v624 = vmul.u32 %v579, %v570
      %v625 = vadd.s32 %v601, %v620
      %vm626 = vc.u32 %v601, %v620
      %v627 = vadd.s32 %v623, 1
      %v628 = vsel %vm626, %v627, %v623
      %v629 = vadd.s32 %v624, %v628
      %v630 = vadd.s32 %v629, 536870912
      %v631 = vshrl.u32 %v630, 30
      %v632 = vshll.u32 %v631, 30
      %v633 = vsub.s32 %v629, %v632
      %vm634 = vcmp.lt.s32.totalorder %v633, 0
      %v635 = vsub.s32 0, %v633
      %v636 = vsel %vm634, %v635, %v633
      %v637 = vclz %v636
      %v638 = vsub.s32 %v637, 2
      %vm639 = vcmp.gt.s32.totalorder 0, %v638
      %v640 = vsel %vm639, 0, %v638
      %v641 = vsub.s32 32, %v640
      %v642 = vshll.u32 %v633, %v640
      %v643 = vshrl.u32 %v625, %v641
      %v644 = vor.u32 %v642, %v643
      %v645 = vsub.s32 4294967266, %v640
      %v646 = vadd.s32 %v645, 127
      %v647 = vshll.u32 %v646, 23
      %v648 = vor.u32 4788187, %v647
      %v649 = vand.u32 2147483647, %v648
      %v651 = vcvt.s32.f32 %v644
      %v652 = vmul.f32 %v651, %v649
      %v653 = vxor.u32 %v652, 2147483648
      %v654 = vsel %vm533, %v653, %v652
      %v655 = vsub.s32 4, %v631
      %v656 = vsel %vm533, %v655, %v631
      %v657 = vsel %vm532, %v375, %v654
      %v658 = vsel %vm532, 0, %v656
      %v659 = vmul.f32 %v657, %v657
      %v660 = vmul.f32 %v659, -0.001358992
      %v661 = vadd.f32 %v660, 0.041655596
      %v662 = vmul.f32 %v659, %v661
      %v663 = vadd.f32 %v662, -0.4999988
      %v664 = vmul.f32 %v659, %v663
      %v665 = vadd.f32 1.0, %v664
      %v666 = vmul.f32 %v657, %v657
      %v667 = vmul.f32 %v666, -0.00019511016
      %v668 = vadd.f32 %v667, 0.008332121
      %v669 = vmul.f32 %v666, %v668
      %v670 = vadd.f32 %v669, -0.16666654
      %v671 = vmul.f32 %v666, %v670
      %v672 = vadd.f32 %v671, 1.0
      %v673 = vmul.f32 %v672, %v657
      %vm674 = vweird.f32 %v375
      %v675 = vadd.s32 %v658, 3
      %v676 = vand.u32 %v675, 3
      %vm677 = vcmp.lt.s32.totalorder %v676, 2
      %vm678 = vcmp.eq.s32.totalorder %v676, 0
      %v679 = vxor.u32 %v673, 2147483648
      %v680 = vsel %vm678, %v665, %v679
      %vm681 = vcmp.eq.s32.totalorder %v676, 2
      %v682 = vxor.u32 %v665, 2147483648
      %v683 = vsel %vm681, %v682, %v673
      %v684 = vsel %vm677, %v680, %v683
      %v685 = vsel %vm674, nan, %v684
      %v686 = vmul.f32 %v530, %v530
      %v687 = vmul.f32 %v685, %v685
      %689 = vset.pattern.permute.xlu0 0
      %690 = vperm.xlu0 %689, %v368
      %v691 = vpop.permute.xlu0 %690
      %v693 = vmul.f32 %v691, %v686
      %v694 = vmul.f32 %v691, %v687
      %v695 = vadd.f32 %v365, %v693
      %v696 = vadd.f32 %v366, %v694
      %699 = vrot.lane.b32.xlu0 %v695, 125
      %v700 = vpop.permute.xlu0 %699
      %701 = vrot.lane.b32.xlu0 %v696, 125
      %v702 = vpop.permute.xlu0 %701
      %vm703 = vcmask 1022976
      %v704 = vsel %vm703, %v700, %v702
      %706 = vrot.lane.b32.xlu0 %v695, 122
      %v707 = vpop.permute.xlu0 %706
      %708 = vrot.lane.b32.xlu0 %v696, 122
      %v709 = vpop.permute.xlu0 %708
      %vm710 = vcmask 998400
      %v711 = vsel %vm710, %v707, %v709
      %713 = vrot.lane.b32.xlu0 %v695, 119
      %v714 = vpop.permute.xlu0 %713
      %715 = vrot.lane.b32.xlu0 %v696, 119
      %v716 = vpop.permute.xlu0 %715
      %vm717 = vcmask 973824
      %v718 = vsel %vm717, %v714, %v716
      %720 = vrot.lane.b32.xlu0 %v695, 116
      %v721 = vpop.permute.xlu0 %720
      %722 = vrot.lane.b32.xlu0 %v696, 116
      %v723 = vpop.permute.xlu0 %722
      %vm724 = vcmask 949248
      %v725 = vsel %vm724, %v721, %v723
      %727 = vrot.lane.b32.xlu0 %v695, 113
      %v728 = vpop.permute.xlu0 %727
      %729 = vrot.lane.b32.xlu0 %v696, 113
      %v730 = vpop.permute.xlu0 %729
      %vm731 = vcmask 924672
      %v732 = vsel %vm731, %v728, %v730
      %734 = vrot.lane.b32.xlu0 %v695, 110
      %v735 = vpop.permute.xlu0 %734
      %736 = vrot.lane.b32.xlu0 %v696, 110
      %v737 = vpop.permute.xlu0 %736
      %vm738 = vcmask 900096
      %v739 = vsel %vm738, %v735, %v737
      %v741 = vld [vmem:[%s3] sm:$0xff]
      %v742 = vld [vmem:[%s4] sm:$0xff]
      %744 = vset.pattern.permute.xlu0 0
      %745 = vperm.xlu0 %744, %v742
      %v746 = vpop.permute.xlu0 %745
      %vm748 = vcmask 457728
      %v750 = vsel %vm748, %v741, 0
      %752 = vmatpush.msra.mxu0 0.0
      %753 = vmatpush.msra.mxu0 0.0
      %754 = vmatpush.msra.mxu0 0.0
      %755 = vmatpush.msra.mxu0 0.0
      %756 = vmatpush.msra.mxu0 0.0
      %757 = vmatpush.msra.mxu0 0.0
      %758 = vmatpush.msra.mxu0 0.0
      %759 = vmatpush.msra.mxu0 0.0
      %760 = vmatpush.msra.mxu0 0.0
      %761 = vmatpush.msra.mxu0 %v739
      %762 = vmatpush.msra.mxu0 %v732
      %763 = vmatpush.msra.mxu0 %v725
      %764 = vmatpush.msra.mxu0 %v718
      %765 = vmatpush.msra.mxu0 %v711
      %766 = vmatpush.msra.mxu0 %v704
      %767 = vmatpush.msra.mxu0 %v695
      %768 = vmatmul.f32.gmra.mxu0 %v750
      %v769 = vpop.f32.mrf.mxu0
      %v770 = vadd.f32 %v746, %v769
      %771 = vdwg.mxu0
      %v772 = vld [vmem:[%s5] sm:$0xff]
      %v773 = vld [vmem:[%s6] sm:$0xff]
      %775 = vset.pattern.permute.xlu0 0
      %776 = vperm.xlu0 %775, %v772
      %v777 = vpop.permute.xlu0 %776
      %v779 = vmul.f32 %v777, %v770
      %v780 = vand.u32 2147483647, %v779
      %vm781 = vcmp.le.f32.partialorder %v780, 0.7853982
      %vm782 = vcmp.lt.s32.totalorder %v779, 0
      %v783 = vand.u32 %v779, 2139095040
      %v784 = vshrl.u32 %v783, 23
      %v785 = vsub.s32 %v784, 127
      %v786 = vand.u32 2147483647, %v779
      %v787 = vand.u32 %v786, 8388607
      %v788 = vor.u32 %v787, 8388608
      %v789 = vsub.s32 0, %v788
      %v790 = vadd.s32 %v785, 1
      %vm791 = vcmp.gt.s32.totalorder %v790, 0
      %v792 = vsel %vm791, %v790, 0
      %v793 = vshrl.u32 %v792, 5
      %v794 = vand.u32 %v792, 31
      %v795 = vsub.s32 32, %v794
      %v796 = vshrl.u32 683565275, %v795
      %v797 = vshll.u32 683565275, %v794
      %v798 = vshrl.u32 2475754826, %v795
      %v799 = vor.u32 %v797, %v798
      %v800 = vshll.u32 2475754826, %v794
      %v801 = vshrl.u32 2131351028, %v795
      %v802 = vor.u32 %v800, %v801
      %v803 = vshll.u32 2131351028, %v794
      %v804 = vshrl.u32 2102212464, %v795
      %v805 = vor.u32 %v803, %v804
      %v806 = vshll.u32 2102212464, %v794
      %v807 = vshrl.u32 920167782, %v795
      %v808 = vor.u32 %v806, %v807
      %v809 = vshll.u32 920167782, %v794
      %v810 = vshrl.u32 1326507024, %v795
      %v811 = vor.u32 %v809, %v810
      %vm812 = vcmp.lt.s32.totalorder %v793, 1
      %vm813 = vcmp.lt.s32.totalorder %v793, 2
      %vm814 = vcmp.lt.s32.totalorder %v793, 3
      %vm815 = vcmp.lt.s32.totalorder %v793, 4
      %v816 = vsel %vm812, %v796, %v799
      %v817 = vsel %vm815, %v805, 2102212464
      %v818 = vsel %vm814, %v802, %v817
      %v819 = vsel %vm813, %v816, %v818
      %v820 = vsel %vm812, %v799, %v802
      %v821 = vsel %vm815, %v808, 920167782
      %v822 = vsel %vm814, %v805, %v821
      %v823 = vsel %vm813, %v820, %v822
      %v824 = vsel %vm812, %v802, %v805
      %v825 = vsel %vm815, %v811, 1326507024
      %v826 = vsel %vm814, %v808, %v825
      %v827 = vsel %vm813, %v824, %v826
      %v828 = vshll.u32 %v788, 8
      %v829 = vand.u32 %v828, 65535
      %v830 = vshrl.u32 %v828, 16
      %v831 = vand.u32 %v827, 65535
      %v832 = vshrl.u32 %v827, 16
      %v833 = vmul.u32 %v829, %v831
      %v834 = vmul.u32 %v829, %v832
      %v835 = vmul.u32 %v830, %v831
      %v836 = vmul.u32 %v830, %v832
      %v837 = vshll.u32 %v834, 16
      %v838 = vshrl.u32 %v834, 16
      %v839 = vshll.u32 %v835, 16
      %v840 = vshrl.u32 %v835, 16
      %vm841 = vc.u32 %v833, %v837
      %v842 = vsel %vm841, 1, 0
      %v843 = vadd.s32 %v833, %v837
      %v844 = vadd.s32 %v836, %v842
      %vm845 = vc.u32 %v843, %v839
      %v846 = vsel %vm845, 1, 0
      %v847 = vadd.s32 %v843, %v839
      %v848 = vadd.s32 %v844, %v846
      %v849 = vadd.s32 %v848, %v838
      %v850 = vadd.s32 %v849, %v840
      %v851 = vand.u32 %v828, 65535
      %v852 = vshrl.u32 %v828, 16
      %v853 = vand.u32 %v823, 65535
      %v854 = vshrl.u32 %v823, 16
      %v855 = vmul.u32 %v851, %v853
      %v856 = vmul.u32 %v851, %v854
      %v857 = vmul.u32 %v852, %v853
      %v858 = vmul.u32 %v852, %v854
      %v859 = vshll.u32 %v856, 16
      %v860 = vshrl.u32 %v856, 16
      %v861 = vshll.u32 %v857, 16
      %v862 = vshrl.u32 %v857, 16
      %vm863 = vc.u32 %v855, %v859
      %v864 = vsel %vm863, 1, 0
      %v865 = vadd.s32 %v855, %v859
      %v866 = vadd.s32 %v858, %v864
      %vm867 = vc.u32 %v865, %v861
      %v868 = vsel %vm867, 1, 0
      %v869 = vadd.s32 %v865, %v861
      %v870 = vadd.s32 %v866, %v868
      %v871 = vadd.s32 %v870, %v860
      %v872 = vadd.s32 %v871, %v862
      %v873 = vmul.u32 %v828, %v819
      %v874 = vadd.s32 %v850, %v869
      %vm875 = vc.u32 %v850, %v869
      %v876 = vadd.s32 %v872, 1
      %v877 = vsel %vm875, %v876, %v872
      %v878 = vadd.s32 %v873, %v877
      %v879 = vadd.s32 %v878, 536870912
      %v880 = vshrl.u32 %v879, 30
      %v881 = vshll.u32 %v880, 30
      %v882 = vsub.s32 %v878, %v881
      %vm883 = vcmp.lt.s32.totalorder %v882, 0
      %v884 = vsub.s32 0, %v882
      %v885 = vsel %vm883, %v884, %v882
      %v886 = vclz %v885
      %v887 = vsub.s32 %v886, 2
      %vm888 = vcmp.gt.s32.totalorder 0, %v887
      %v889 = vsel %vm888, 0, %v887
      %v890 = vsub.s32 32, %v889
      %v891 = vshll.u32 %v882, %v889
      %v892 = vshrl.u32 %v874, %v890
      %v893 = vor.u32 %v891, %v892
      %v894 = vsub.s32 4294967266, %v889
      %v895 = vadd.s32 %v894, 127
      %v896 = vshll.u32 %v895, 23
      %v897 = vor.u32 4788187, %v896
      %v898 = vand.u32 2147483647, %v897
      %v900 = vcvt.s32.f32 %v893
      %v901 = vmul.f32 %v900, %v898
      %v902 = vxor.u32 %v901, 2147483648
      %v903 = vsel %vm782, %v902, %v901
      %v904 = vsub.s32 4, %v880
      %v905 = vsel %vm782, %v904, %v880
      %v906 = vsel %vm781, %v779, %v903
      %v907 = vsel %vm781, 0, %v905
      %v908 = vmul.f32 %v906, %v906
      %v909 = vmul.f32 %v908, -0.001358992
      %v910 = vadd.f32 %v909, 0.041655596
      %v911 = vmul.f32 %v908, %v910
      %v912 = vadd.f32 %v911, -0.4999988
      %v913 = vmul.f32 %v908, %v912
      %v914 = vadd.f32 1.0, %v913
      %v915 = vmul.f32 %v906, %v906
      %v916 = vmul.f32 %v915, -0.00019511016
      %v917 = vadd.f32 %v916, 0.008332121
      %v918 = vmul.f32 %v915, %v917
      %v919 = vadd.f32 %v918, -0.16666654
      %v920 = vmul.f32 %v915, %v919
      %v921 = vadd.f32 %v920, 1.0
      %v922 = vmul.f32 %v921, %v906
      %vm923 = vweird.f32 %v779
      %v924 = vadd.s32 %v907, 3
      %v925 = vand.u32 %v924, 3
      %vm926 = vcmp.lt.s32.totalorder %v925, 2
      %vm927 = vcmp.eq.s32.totalorder %v925, 0
      %v928 = vxor.u32 %v922, 2147483648
      %v929 = vsel %vm927, %v914, %v928
      %vm930 = vcmp.eq.s32.totalorder %v925, 2
      %v931 = vxor.u32 %v914, 2147483648
      %v932 = vsel %vm930, %v931, %v922
      %v933 = vsel %vm926, %v929, %v932
      %v934 = vsel %vm923, nan, %v933
      %v935 = vmul.f32 %v934, %v934
      %937 = vset.pattern.permute.xlu0 0
      %938 = vperm.xlu0 %937, %v773
      %v939 = vpop.permute.xlu0 %938
      %v941 = vmul.f32 %v939, %v935
      %v942 = vadd.f32 %v770, %v941
      %v943 = vld [vmem:[%s7] sm:$0xff]
      %v944 = vld [vmem:[%s8] sm:$0xff]
      %946 = vset.pattern.permute.xlu0 0
      %947 = vperm.xlu0 %946, %v944
      %v948 = vpop.permute.xlu0 %947
      %vm950 = vcmask 64512
      %v952 = vsel %vm950, %v943, 0
      %954 = vmatpush.msra.mxu0 0.0
      %955 = vmatpush.msra.mxu0 0.0
      %956 = vmatpush.msra.mxu0 0.0
      %957 = vmatpush.msra.mxu0 0.0
      %958 = vmatpush.msra.mxu0 0.0
      %959 = vmatpush.msra.mxu0 0.0
      %960 = vmatpush.msra.mxu0 0.0
      %961 = vmatpush.msra.mxu0 0.0
      %962 = vmatpush.msra.mxu0 0.0
      %963 = vmatpush.msra.mxu0 0.0
      %964 = vmatpush.msra.mxu0 0.0
      %965 = vmatpush.msra.mxu0 0.0
      %966 = vmatpush.msra.mxu0 0.0
      %967 = vmatpush.msra.mxu0 0.0
      %968 = vmatpush.msra.mxu0 0.0
      %969 = vmatpush.msra.mxu0 %v942
      %970 = vmatmul.f32.gmra.mxu0 %v952
      %v971 = vpop.f32.mrf.mxu0
      %v972 = vadd.f32 %v948, %v971
      %973 = vdwg.mxu0
      %975 = vrot.lane.b32.xlu0 %v972, 9
      %v976 = vpop.permute.xlu0 %975
      %v978 = vadd.f32 %v365, %v976
      %v979 = vadd.f32 %v366, %v976
      %982 = vrot.lane.b32.xlu0 %v978, 119
      %v983 = vpop.permute.xlu0 %982
      %984 = vrot.lane.b32.xlu0 %v979, 119
      %v985 = vpop.permute.xlu0 %984
      %v986 = vsel %vm717, %v983, %v985
      %988 = vst [vmem:[%s364] sm:$0xff] %v986
      %p989 = scmp.lt.s32.totalorder %s24, 1
      %s990 = scalar_select %p989, %s24, 1
      %p991 = scmp.lt.s32.totalorder %s25, 0
      %s992 = scalar_select %p991, %s25, 0
      %s993 = sadd.s32 %s992, %s990
      %s994 = smul.addr %s993, 8
      %s995 = scalar_lea.vmem %s9, %s994
      // Predicated region
      $region57: #{decoder_block_forward.6} parent=55 // pred_check
        %p996 = pneg %p248
      $region58: #{decoder_block_forward.6} parent=55 // pred_check_branch
        %998 = sbr.rel (%p996) target = $region60
      $region59: #{decoder_block_forward.6} parent=55 // pred_region
        _
      $region60: #{decoder_block_forward.6} parent=55 // pred_fallthru
        _
    $region56: #{decoder_block_forward.6} parent=5 // pred_fallthru
      _
    %p999 = scmp.le.s32.totalorder 2, %s15
    // Predicated region
    $region61: #{decoder_block_forward.6} parent=5 // pred_check
      %p1000 = pneg %p999
    $region62: #{decoder_block_forward.6} parent=5 // pred_check_branch
      %1002 = sbr.rel (%p1000) target = $region64
    $region63: #{decoder_block_forward.6} parent=5 // pred_region
      %s1003 = ssub.s32 %s15, 2
      // Predicated region
      $region65: #{decoder_block_forward.6} parent=63 // pred_check
        %p1004 = pneg %p254
      $region66: #{decoder_block_forward.6} parent=63 // pred_check_branch
        %1006 = sbr.rel (%p1004) target = $region68
      $region67: #{decoder_block_forward.6} parent=63 // pred_region
        %p1007 = scmp.lt.s32.totalorder %s26, 1
        %s1008 = scalar_select %p1007, %s26, 1
        %p1009 = scmp.lt.s32.totalorder %s27, 0
        %s1010 = scalar_select %p1009, %s27, 0
        %s1011 = sadd.s32 %s1010, %s1008
        %s1012 = smul.addr %s1011, 8
        %s1013 = scalar_lea.vmem %s9, %s1012
      $region68: #{decoder_block_forward.6} parent=63 // pred_fallthru
        _
    $region64: #{decoder_block_forward.6} parent=5 // pred_fallthru
      _
  $region6: #{decoder_block_forward.6} parent=0 // loop_footer
    %s19 = sadd.s32 1, %s15
  $region7: #{decoder_block_forward.6} parent=0 // loop_footer_branch
    %14 = sbr.rel target = $region3
  $region8: #{decoder_block_forward.6} parent=0 // loop_exit
    _

// kernel: decoder_block_forward.7
$region0: #{decoder_block_forward.7}
  #allocation0 [shape = 'u32[]', space=smem, size = 0x4, offset = 0x4, fixed_abs, tag = 'smem constant byte address 0x4 - core index']
  #allocation1 [shape = 'u32[72,128]{1,0:T(1,128)}', space=vmem, size = 0x9000, scoped, tag = 'internal scratch']
  %s0 = inlined_call_operand.vmem [shape: f32[2,1,8,182], index: 0, kind: input, shape index: {}]
  %s1 = inlined_call_operand.vmem [shape: f32[8,1], index: 1, kind: input, shape index: {}]
  %s2 = inlined_call_operand.vmem [shape: f32[8,1], index: 2, kind: input, shape index: {}]
  %s3 = inlined_call_operand.vmem [shape: f32[8,56], index: 3, kind: input, shape index: {}]
  %s4 = inlined_call_operand.vmem [shape: f32[8,1], index: 4, kind: input, shape index: {}]
  %s5 = inlined_call_operand.vmem [shape: f32[8,1], index: 5, kind: input, shape index: {}]
  %s6 = inlined_call_operand.vmem [shape: f32[8,1], index: 6, kind: input, shape index: {}]
  %s7 = inlined_call_operand.vmem [shape: f32[8,8], index: 7, kind: input, shape index: {}]
  %s8 = inlined_call_operand.vmem [shape: f32[8,1], index: 8, kind: input, shape index: {}]
  %s9 = inlined_call_operand.hbm [shape: f32[2,8,128], index: 9, kind: output, shape index: {}]
  %s10 = sld [smem:[#allocation0]]
  $region69: #{decoder_block_forward.7} parent=0
    _
  %s12 = ssub.s32 1, %s10
  %s13 = scalar_select 0, %s12, %s10
  $region1: #{decoder_block_forward.7} parent=0
    #allocation2 [shape = 'u8[8192]{0}', space=vmem, size = 0x2000, scoped, tag = 'output window, operand 0']
    #allocation3 [shape = 's32[2]{0}', space=sflag, size = 0x8, scoped, tag = 'scoped memory for decoder_block_forward.7']
    %14 = vsyncpa [#allocation3], 0
    %s15 = scalar_lea.sflag [#allocation3], 1
    %16 = vsyncpa %s15, 0
    loop: start=0, step=1, limit=4
    $region2: #{decoder_block_forward.7} parent=1 // loop_pre_header
      _
    $region3: #{decoder_block_forward.7} parent=1 // loop_header
      %s18 = sphi 0, %s22
      %p19 = scmp.ge.s32.totalorder %s18, 4
      %s25 = sphi 0, %s37
      %s26 = sphi 0, %s33
      %s27 = sphi 0, %s25
      %s28 = sphi 0, %s26
      %s29 = sphi 0, %s27
      %s30 = sphi 0, %s28
      %s42 = sphi 0, %s44
      %s45 = sphi 0, %s42
      %s46 = sphi 0, %s45
      %s62 = sphi 0, %s46
      %s66 = sphi 0, %s66
      %s68 = sphi 0, %s66
      %s69 = sphi 0, %s68
      %s83 = sphi 0, %s69
      %s87 = sphi 0, %s87
      %s89 = sphi 0, %s87
      %s90 = sphi 0, %s89
      %s104 = sphi 0, %s90
      %s108 = sphi 0, %s108
      %s110 = sphi 0, %s108
      %s111 = sphi 0, %s110
      %s125 = sphi 0, %s111
      %s129 = sphi 0, %s129
      %s131 = sphi 0, %s129
      %s132 = sphi 0, %s131
      %s146 = sphi 0, %s132
      %s150 = sphi 0, %s150
      %s152 = sphi 0, %s150
      %s153 = sphi 0, %s152
      %s167 = sphi 0, %s153
      %s171 = sphi 0, %s171
      %s173 = sphi 0, %s171
      %s174 = sphi 0, %s173
      %s188 = sphi 0, %s174
      %s192 = sphi 0, %s192
      %s194 = sphi 0, %s192
      %s195 = sphi 0, %s194
      %s209 = sphi 0, %s195
      %s213 = sphi 0, %s213
      %s215 = sphi 0, %s213
      %s216 = sphi 0, %s215
      %s230 = sphi 0, %s216
      %s238 = sphi 0, %s240
      %s241 = sphi 0, %s238
      %s242 = sphi 0, %s241
      %s258 = sphi 0, %s242
    $region4: #{decoder_block_forward.7} parent=1 // loop_header_branch
      %21 = sbr.rel (%p19) target = $region8
    $region5: #{decoder_block_forward.7} parent=1 // loop_body
      %s23 = ssub.s32 %s18, 1
      %s24 = ssub.s32 %s18, 2
      %s31 = sadd.s32 1, %s26
      %p32 = scmp.ge.s32.totalorder %s31, 1
      %s33 = scalar_select %p32, 0, %s31
      %s34 = sadd.s32 1, %s25
      %s35 = scalar_select %p32, %s34, %s25
      %p36 = scmp.ge.s32.totalorder %s35, 2
      %s37 = scalar_select %p36, 0, %s35
      %s38 = ssub.s32 %s25, %s37
      %s39 = ssub.s32 %s26, %s33
      %s40 = sor.u32 %s38, %s39
      %p41 = scmp.eq.s32.totalorder %s40, 0
      %s43 = sadd.s32 %s42, 1
      %s44 = scalar_select %p41, %s42, %s43
      %p47 = pneg %p41
      %p48 = scmp.eq.s32.totalorder %s18, 1
      %p49 = por %p47, %p48
      %p50 = scmp.ne.s32.totalorder %s42, %s45
      %p51 = scmp.eq.s32.totalorder %s18, 0
      %p52 = por %p50, %p51
      %p53 = scmp.ne.s32.totalorder %s42, %s45
      %p54 = scmp.eq.s32.totalorder %s23, 1
      %p55 = por %p53, %p54
      %p56 = scmp.ne.s32.totalorder %s45, %s46
      %p57 = scmp.eq.s32.totalorder %s23, 0
      %p58 = por %p56, %p57
      %p59 = scmp.ne.s32.totalorder %s45, %s46
      %p60 = scmp.eq.s32.totalorder %s24, 1
      %p61 = por %p59, %p60
      %p63 = scmp.ne.s32.totalorder %s46, %s62
      %p64 = scmp.eq.s32.totalorder %s24, 0
      %p65 = por %p63, %p64
      %s67 = sadd.s32 %s66, 1
      %p70 = scmp.eq.s32.totalorder %s18, 1
      %p71 = scmp.ne.s32.totalorder %s66, %s68
      %p72 = scmp.eq.s32.totalorder %s18, 0
      %p73 = por %p71, %p72
      %p74 = scmp.ne.s32.totalorder %s66, %s68
      %p75 = scmp.eq.s32.totalorder %s23, 1
      %p76 = por %p74, %p75
      %p77 = scmp.ne.s32.totalorder %s68, %s69
      %p78 = scmp.eq.s32.totalorder %s23, 0
      %p79 = por %p77, %p78
      %p80 = scmp.ne.s32.totalorder %s68, %s69
      %p81 = scmp.eq.s32.totalorder %s24, 1
      %p82 = por %p80, %p81
      %p84 = scmp.ne.s32.totalorder %s69, %s83
      %p85 = scmp.eq.s32.totalorder %s24, 0
      %p86 = por %p84, %p85
      %s88 = sadd.s32 %s87, 1
      %p91 = scmp.eq.s32.totalorder %s18, 1
      %p92 = scmp.ne.s32.totalorder %s87, %s89
      %p93 = scmp.eq.s32.totalorder %s18, 0
      %p94 = por %p92, %p93
      %p95 = scmp.ne.s32.totalorder %s87, %s89
      %p96 = scmp.eq.s32.totalorder %s23, 1
      %p97 = por %p95, %p96
      %p98 = scmp.ne.s32.totalorder %s89, %s90
      %p99 = scmp.eq.s32.totalorder %s23, 0
      %p100 = por %p98, %p99
      %p101 = scmp.ne.s32.totalorder %s89, %s90
      %p102 = scmp.eq.s32.totalorder %s24, 1
      %p103 = por %p101, %p102
      %p105 = scmp.ne.s32.totalorder %s90, %s104
      %p106 = scmp.eq.s32.totalorder %s24, 0
      %p107 = por %p105, %p106
      %s109 = sadd.s32 %s108, 1
      %p112 = scmp.eq.s32.totalorder %s18, 1
      %p113 = scmp.ne.s32.totalorder %s108, %s110
      %p114 = scmp.eq.s32.totalorder %s18, 0
      %p115 = por %p113, %p114
      %p116 = scmp.ne.s32.totalorder %s108, %s110
      %p117 = scmp.eq.s32.totalorder %s23, 1
      %p118 = por %p116, %p117
      %p119 = scmp.ne.s32.totalorder %s110, %s111
      %p120 = scmp.eq.s32.totalorder %s23, 0
      %p121 = por %p119, %p120
      %p122 = scmp.ne.s32.totalorder %s110, %s111
      %p123 = scmp.eq.s32.totalorder %s24, 1
      %p124 = por %p122, %p123
      %p126 = scmp.ne.s32.totalorder %s111, %s125
      %p127 = scmp.eq.s32.totalorder %s24, 0
      %p128 = por %p126, %p127
      %s130 = sadd.s32 %s129, 1
      %p133 = scmp.eq.s32.totalorder %s18, 1
      %p134 = scmp.ne.s32.totalorder %s129, %s131
      %p135 = scmp.eq.s32.totalorder %s18, 0
      %p136 = por %p134, %p135
      %p137 = scmp.ne.s32.totalorder %s129, %s131
      %p138 = scmp.eq.s32.totalorder %s23, 1
      %p139 = por %p137, %p138
      %p140 = scmp.ne.s32.totalorder %s131, %s132
      %p141 = scmp.eq.s32.totalorder %s23, 0
      %p142 = por %p140, %p141
      %p143 = scmp.ne.s32.totalorder %s131, %s132
      %p144 = scmp.eq.s32.totalorder %s24, 1
      %p145 = por %p143, %p144
      %p147 = scmp.ne.s32.totalorder %s132, %s146
      %p148 = scmp.eq.s32.totalorder %s24, 0
      %p149 = por %p147, %p148
      %s151 = sadd.s32 %s150, 1
      %p154 = scmp.eq.s32.totalorder %s18, 1
      %p155 = scmp.ne.s32.totalorder %s150, %s152
      %p156 = scmp.eq.s32.totalorder %s18, 0
      %p157 = por %p155, %p156
      %p158 = scmp.ne.s32.totalorder %s150, %s152
      %p159 = scmp.eq.s32.totalorder %s23, 1
      %p160 = por %p158, %p159
      %p161 = scmp.ne.s32.totalorder %s152, %s153
      %p162 = scmp.eq.s32.totalorder %s23, 0
      %p163 = por %p161, %p162
      %p164 = scmp.ne.s32.totalorder %s152, %s153
      %p165 = scmp.eq.s32.totalorder %s24, 1
      %p166 = por %p164, %p165
      %p168 = scmp.ne.s32.totalorder %s153, %s167
      %p169 = scmp.eq.s32.totalorder %s24, 0
      %p170 = por %p168, %p169
      %s172 = sadd.s32 %s171, 1
      %p175 = scmp.eq.s32.totalorder %s18, 1
      %p176 = scmp.ne.s32.totalorder %s171, %s173
      %p177 = scmp.eq.s32.totalorder %s18, 0
      %p178 = por %p176, %p177
      %p179 = scmp.ne.s32.totalorder %s171, %s173
      %p180 = scmp.eq.s32.totalorder %s23, 1
      %p181 = por %p179, %p180
      %p182 = scmp.ne.s32.totalorder %s173, %s174
      %p183 = scmp.eq.s32.totalorder %s23, 0
      %p184 = por %p182, %p183
      %p185 = scmp.ne.s32.totalorder %s173, %s174
      %p186 = scmp.eq.s32.totalorder %s24, 1
      %p187 = por %p185, %p186
      %p189 = scmp.ne.s32.totalorder %s174, %s188
      %p190 = scmp.eq.s32.totalorder %s24, 0
      %p191 = por %p189, %p190
      %s193 = sadd.s32 %s192, 1
      %p196 = scmp.eq.s32.totalorder %s18, 1
      %p197 = scmp.ne.s32.totalorder %s192, %s194
      %p198 = scmp.eq.s32.totalorder %s18, 0
      %p199 = por %p197, %p198
      %p200 = scmp.ne.s32.totalorder %s192, %s194
      %p201 = scmp.eq.s32.totalorder %s23, 1
      %p202 = por %p200, %p201
      %p203 = scmp.ne.s32.totalorder %s194, %s195
      %p204 = scmp.eq.s32.totalorder %s23, 0
      %p205 = por %p203, %p204
      %p206 = scmp.ne.s32.totalorder %s194, %s195
      %p207 = scmp.eq.s32.totalorder %s24, 1
      %p208 = por %p206, %p207
      %p210 = scmp.ne.s32.totalorder %s195, %s209
      %p211 = scmp.eq.s32.totalorder %s24, 0
      %p212 = por %p210, %p211
      %s214 = sadd.s32 %s213, 1
      %p217 = scmp.eq.s32.totalorder %s18, 1
      %p218 = scmp.ne.s32.totalorder %s213, %s215
      %p219 = scmp.eq.s32.totalorder %s18, 0
      %p220 = por %p218, %p219
      %p221 = scmp.ne.s32.totalorder %s213, %s215
      %p222 = scmp.eq.s32.totalorder %s23, 1
      %p223 = por %p221, %p222
      %p224 = scmp.ne.s32.totalorder %s215, %s216
      %p225 = scmp.eq.s32.totalorder %s23, 0
      %p226 = por %p224, %p225
      %p227 = scmp.ne.s32.totalorder %s215, %s216
      %p228 = scmp.eq.s32.totalorder %s24, 1
      %p229 = por %p227, %p228
      %p231 = scmp.ne.s32.totalorder %s216, %s230
      %p232 = scmp.eq.s32.totalorder %s24, 0
      %p233 = por %p231, %p232
      %s234 = ssub.s32 %s25, %s37
      %s235 = ssub.s32 %s26, %s33
      %s236 = sor.u32 %s234, %s235
      %p237 = scmp.eq.s32.totalorder %s236, 0
      %s239 = sadd.s32 %s238, 1
      %s240 = scalar_select %p237, %s238, %s239
      %p243 = pneg %p237
      %p244 = scmp.eq.s32.totalorder %s18, 1
      %p245 = por %p243, %p244
      %p246 = scmp.ne.s32.totalorder %s238, %s241
      %p247 = scmp.eq.s32.totalorder %s18, 0
      %p248 = por %p246, %p247
      %p249 = scmp.ne.s32.totalorder %s238, %s241
      %p250 = scmp.eq.s32.totalorder %s23, 1
      %p251 = por %p249, %p250
      %p252 = scmp.ne.s32.totalorder %s241, %s242
      %p253 = scmp.eq.s32.totalorder %s23, 0
      %p254 = por %p252, %p253
      %p255 = scmp.ne.s32.totalorder %s241, %s242
      %p256 = scmp.eq.s32.totalorder %s24, 1
      %p257 = por %p255, %p256
      %p259 = scmp.ne.s32.totalorder %s242, %s258
      %p260 = scmp.eq.s32.totalorder %s24, 0
      %p261 = por %p259, %p260
      %p262 = scmp.le.s32.totalorder 1, %s18
      %p263 = scmp.lt.s32.totalorder %s18, 3
      %p264 = pnand %p262, %p263
      %p265 = pneg %p264
      // Predicated region
      $region9: #{decoder_block_forward.7} parent=5 // pred_check
        _
      $region10: #{decoder_block_forward.7} parent=5 // pred_check_branch
        %267 = sbr.rel (%p264) target = $region12
      $region11: #{decoder_block_forward.7} parent=5 // pred_region
        %s268 = ssub.s32 %s18, 1
        // Predicated region
        $region13: #{decoder_block_forward.7} parent=11 // pred_check
          %p269 = pneg %p79
        $region14: #{decoder_block_forward.7} parent=11 // pred_check_branch
          %271 = sbr.rel (%p269) target = $region16
        $region15: #{decoder_block_forward.7} parent=11 // pred_region
          _
        $region16: #{decoder_block_forward.7} parent=11 // pred_fallthru
          _
        // Predicated region
        $region17: #{decoder_block_forward.7} parent=11 // pred_check
          %p272 = pneg %p100
        $region18: #{decoder_block_forward.7} parent=11 // pred_check_branch
          %274 = sbr.rel (%p272) target = $region20
        $region19: #{decoder_block_forward.7} parent=11 // pred_region
          _
        $region20: #{decoder_block_forward.7} parent=11 // pred_fallthru
          _
        // Predicated region
        $region21: #{decoder_block_forward.7} parent=11 // pred_check
          %p275 = pneg %p121
        $region22: #{decoder_block_forward.7} parent=11 // pred_check_branch
          %277 = sbr.rel (%p275) target = $region24
        $region23: #{decoder_block_forward.7} parent=11 // pred_region
          _
        $region24: #{decoder_block_forward.7} parent=11 // pred_fallthru
          _
        // Predicated region
        $region25: #{decoder_block_forward.7} parent=11 // pred_check
          %p278 = pneg %p142
        $region26: #{decoder_block_forward.7} parent=11 // pred_check_branch
          %280 = sbr.rel (%p278) target = $region28
        $region27: #{decoder_block_forward.7} parent=11 // pred_region
          _
        $region28: #{decoder_block_forward.7} parent=11 // pred_fallthru
          _
        // Predicated region
        $region29: #{decoder_block_forward.7} parent=11 // pred_check
          %p281 = pneg %p163
        $region30: #{decoder_block_forward.7} parent=11 // pred_check_branch
          %283 = sbr.rel (%p281) target = $region32
        $region31: #{decoder_block_forward.7} parent=11 // pred_region
          _
        $region32: #{decoder_block_forward.7} parent=11 // pred_fallthru
          _
        // Predicated region
        $region33: #{decoder_block_forward.7} parent=11 // pred_check
          %p284 = pneg %p184
        $region34: #{decoder_block_forward.7} parent=11 // pred_check_branch
          %286 = sbr.rel (%p284) target = $region36
        $region35: #{decoder_block_forward.7} parent=11 // pred_region
          _
        $region36: #{decoder_block_forward.7} parent=11 // pred_fallthru
          _
        // Predicated region
        $region37: #{decoder_block_forward.7} parent=11 // pred_check
          %p287 = pneg %p205
        $region38: #{decoder_block_forward.7} parent=11 // pred_check_branch
          %289 = sbr.rel (%p287) target = $region40
        $region39: #{decoder_block_forward.7} parent=11 // pred_region
          _
        $region40: #{decoder_block_forward.7} parent=11 // pred_fallthru
          _
        // Predicated region
        $region41: #{decoder_block_forward.7} parent=11 // pred_check
          %p290 = pneg %p226
        $region42: #{decoder_block_forward.7} parent=11 // pred_check_branch
          %292 = sbr.rel (%p290) target = $region44
        $region43: #{decoder_block_forward.7} parent=11 // pred_region
          _
        $region44: #{decoder_block_forward.7} parent=11 // pred_fallthru
          _
      $region12: #{decoder_block_forward.7} parent=5 // pred_fallthru
        _
      %p293 = scmp.lt.s32.totalorder %s18, 2
      // Predicated region
      $region45: #{decoder_block_forward.7} parent=5 // pred_check
        %p294 = pneg %p293
      $region46: #{decoder_block_forward.7} parent=5 // pred_check_branch
        %296 = sbr.rel (%p294) target = $region48
      $region47: #{decoder_block_forward.7} parent=5 // pred_region
        // Predicated region
        $region49: #{decoder_block_forward.7} parent=47 // pred_check
          %p297 = pneg %p52
        $region50: #{decoder_block_forward.7} parent=47 // pred_check_branch
          %299 = sbr.rel (%p297) target = $region52
        $region51: #{decoder_block_forward.7} parent=47 // pred_region
          %p300 = scmp.lt.s32.totalorder %s25, 1
          %s301 = scalar_select %p300, %s25, 1
          %p302 = scmp.lt.s32.totalorder %s26, 0
          %s303 = scalar_select %p302, %s26, 0
          %s304 = smul.addr %s303, 2
          %s305 = smul.addr %s301, 2
          %s306 = sadd.s32 %s304, %s305
          %s307 = smul.addr %s306, 8
          %s308 = scalar_lea.vmem %s0, %s307
        $region52: #{decoder_block_forward.7} parent=47 // pred_fallthru
          _
      $region48: #{decoder_block_forward.7} parent=5 // pred_fallthru
        _
      %p309 = scmp.le.s32.totalorder 1, %s18
      %p310 = scmp.lt.s32.totalorder %s18, 3
      %p311 = pnand %p309, %p310
      %p312 = pneg %p311
      // Predicated region
      $region53: #{decoder_block_forward.7} parent=5 // pred_check
        _
      $region54: #{decoder_block_forward.7} parent=5 // pred_check_branch
        %314 = sbr.rel (%p311) target = $region56
      $region55: #{decoder_block_forward.7} parent=5 // pred_region
        %s315 = ssub.s32 %s18, 1
        %p316 = scmp.lt.s32.totalorder %s27, 1
        %s317 = scalar_select %p316, %s27, 1
        %p318 = scmp.lt.s32.totalorder %s28, 0
        %s319 = scalar_select %p318, %s28, 0
        %s320 = smul.addr %s319, 2
        %s321 = smul.addr %s317, 2
        %s322 = sadd.s32 %s320, %s321
        %s323 = smul.addr %s322, 8
        %s324 = scalar_lea.vmem %s0, %s323
        %p325 = pneg %p58
        %p326 = pneg %p55
        %p327 = pneg %p79
        %p328 = pneg %p76
        %p329 = pneg %p100
        %p330 = pneg %p97
        %p331 = pneg %p121
        %p332 = pneg %p118
        %p333 = pneg %p142
        %p334 = pneg %p139
        %p335 = pneg %p163
        %p336 = pneg %p160
        %p337 = pneg %p184
        %p338 = pneg %p181
        %p339 = pneg %p205
        %p340 = pneg %p202
        %p341 = pneg %p226
        %p342 = pneg %p223
        %p343 = pneg %p254
        %p344 = pneg %p251
        %s345 = sand.u32 %s241, 1
        %s346 = scalar_lea.sflag [#allocation3], %s345
        %s347 = sand.u32 %s241, 1
        %s348 = smul.addr %s347, 8
        %s349 = scalar_lea.vmem [#allocation2], %s348
        %p350 = scmp.lt.s32.totalorder %s27, 1
        %s351 = scalar_select %p350, %s27, 1
        %p352 = scmp.lt.s32.totalorder %s28, 0
        %s353 = scalar_select %p352, %s28, 0
        %s354 = smul.addr %s353, 2
        %s355 = smul.addr %s351, 2
        %s356 = sadd.s32 %s354, %s355
        %s357 = smul.addr %s356, 8
        %s358 = scalar_lea.vmem %s0, %s357
        %v359 = vld [vmem:[%s358] sm:$0xff]
        %v360 = vld [vmem:[%s358 + $0x8] sm:$0xff]
        %v361 = vld [vmem:[%s1] sm:$0xff]
        %v362 = vld [vmem:[%s2] sm:$0xff]
        %364 = vset.pattern.permute.xlu0 0
        %365 = vperm.xlu0 %364, %v361
        %v366 = vpop.permute.xlu0 %365
        %v368 = vmul.f32 %v366, %v359
        %v369 = vmul.f32 %v366, %v360
        %v370 = vand.u32 2147483647, %v368
        %vm371 = vcmp.le.f32.partialorder %v370, 0.7853982
        %vm372 = vcmp.lt.s32.totalorder %v368, 0
        %v373 = vand.u32 %v368, 2139095040
        %v374 = vshrl.u32 %v373, 23
        %v375 = vsub.s32 %v374, 127
        %v376 = vand.u32 2147483647, %v368
        %v377 = vand.u32 %v376, 8388607
        %v378 = vor.u32 %v377, 8388608
        %v379 = vsub.s32 0, %v378
        %v380 = vadd.s32 %v375, 1
        %vm381 = vcmp.gt.s32.totalorder %v380, 0
        %v382 = vsel %vm381, %v380, 0
        %v383 = vshrl.u32 %v382, 5
        %v384 = vand.u32 %v382, 31
        %v385 = vsub.s32 32, %v384
        %v386 = vshrl.u32 683565275, %v385
        %v387 = vshll.u32 683565275, %v384
        %v388 = vshrl.u32 2475754826, %v385
        %v389 = vor.u32 %v387, %v388
        %v390 = vshll.u32 2475754826, %v384
        %v391 = vshrl.u32 2131351028, %v385
        %v392 = vor.u32 %v390, %v391
        %v393 = vshll.u32 2131351028, %v384
        %v394 = vshrl.u32 2102212464, %v385
        %v395 = vor.u32 %v393, %v394
        %v396 = vshll.u32 2102212464, %v384
        %v397 = vshrl.u32 920167782, %v385
        %v398 = vor.u32 %v396, %v397
        %v399 = vshll.u32 920167782, %v384
        %v400 = vshrl.u32 1326507024, %v385
        %v401 = vor.u32 %v399, %v400
        %vm402 = vcmp.lt.s32.totalorder %v383, 1
        %vm403 = vcmp.lt.s32.totalorder %v383, 2
        %vm404 = vcmp.lt.s32.totalorder %v383, 3
        %vm405 = vcmp.lt.s32.totalorder %v383, 4
        %v406 = vsel %vm402, %v386, %v389
        %v407 = vsel %vm405, %v395, 2102212464
        %v408 = vsel %vm404, %v392, %v407
        %v409 = vsel %vm403, %v406, %v408
        %v410 = vsel %vm402, %v389, %v392
        %v411 = vsel %vm405, %v398, 920167782
        %v412 = vsel %vm404, %v395, %v411
        %v413 = vsel %vm403, %v410, %v412
        %v414 = vsel %vm402, %v392, %v395
        %v415 = vsel %vm405, %v401, 1326507024
        %v416 = vsel %vm404, %v398, %v415
        %v417 = vsel %vm403, %v414, %v416
        %v418 = vshll.u32 %v378, 8
        %v419 = vand.u32 %v418, 65535
        %v420 = vshrl.u32 %v418, 16
        %v421 = vand.u32 %v417, 65535
        %v422 = vshrl.u32 %v417, 16
        %v423 = vmul.u32 %v419, %v421
        %v424 = vmul.u32 %v419, %v422
        %v425 = vmul.u32 %v420, %v421
        %v426 = vmul.u32 %v420, %v422
        %v427 = vshll.u32 %v424, 16
        %v428 = vshrl.u32 %v424, 16
        %v429 = vshll.u32 %v425, 16
        %v430 = vshrl.u32 %v425, 16
        %vm431 = vc.u32 %v423, %v427
        %v432 = vsel %vm431, 1, 0
        %v433 = vadd.s32 %v423, %v427
        %v434 = vadd.s32 %v426, %v432
        %vm435 = vc.u32 %v433, %v429
        %v436 = vsel %vm435, 1, 0
        %v437 = vadd.s32 %v433, %v429
        %v438 = vadd.s32 %v434, %v436
        %v439 = vadd.s32 %v438, %v428
        %v440 = vadd.s32 %v439, %v430
        %v441 = vand.u32 %v418, 65535
        %v442 = vshrl.u32 %v418, 16
        %v443 = vand.u32 %v413, 65535
        %v444 = vshrl.u32 %v413, 16
        %v445 = vmul.u32 %v441, %v443
        %v446 = vmul.u32 %v441, %v444
        %v447 = vmul.u32 %v442, %v443
        %v448 = vmul.u32 %v442, %v444
        %v449 = vshll.u32 %v446, 16
        %v450 = vshrl.u32 %v446, 16
        %v451 = vshll.u32 %v447, 16
        %v452 = vshrl.u32 %v447, 16
        %vm453 = vc.u32 %v445, %v449
        %v454 = vsel %vm453, 1, 0
        %v455 = vadd.s32 %v445, %v449
        %v456 = vadd.s32 %v448, %v454
        %vm457 = vc.u32 %v455, %v451
        %v458 = vsel %vm457, 1, 0
        %v459 = vadd.s32 %v455, %v451
        %v460 = vadd.s32 %v456, %v458
        %v461 = vadd.s32 %v460, %v450
        %v462 = vadd.s32 %v461, %v452
        %v463 = vmul.u32 %v418, %v409
        %v464 = vadd.s32 %v440, %v459
        %vm465 = vc.u32 %v440, %v459
        %v466 = vadd.s32 %v462, 1
        %v467 = vsel %vm465, %v466, %v462
        %v468 = vadd.s32 %v463, %v467
        %v469 = vadd.s32 %v468, 536870912
        %v470 = vshrl.u32 %v469, 30
        %v471 = vshll.u32 %v470, 30
        %v472 = vsub.s32 %v468, %v471
        %vm473 = vcmp.lt.s32.totalorder %v472, 0
        %v474 = vsub.s32 0, %v472
        %v475 = vsel %vm473, %v474, %v472
        %v476 = vclz %v475
        %v477 = vsub.s32 %v476, 2
        %vm478 = vcmp.gt.s32.totalorder 0, %v477
        %v479 = vsel %vm478, 0, %v477
        %v480 = vsub.s32 32, %v479
        %v481 = vshll.u32 %v472, %v479
        %v482 = vshrl.u32 %v464, %v480
        %v483 = vor.u32 %v481, %v482
        %v484 = vsub.s32 4294967266, %v479
        %v485 = vadd.s32 %v484, 127
        %v486 = vshll.u32 %v485, 23
        %v487 = vor.u32 4788187, %v486
        %v488 = vand.u32 2147483647, %v487
        %v490 = vcvt.s32.f32 %v483
        %v491 = vmul.f32 %v490, %v488
        %v492 = vxor.u32 %v491, 2147483648
        %v493 = vsel %vm372, %v492, %v491
        %v494 = vsub.s32 4, %v470
        %v495 = vsel %vm372, %v494, %v470
        %v496 = vsel %vm371, %v368, %v493
        %v497 = vsel %vm371, 0, %v495
        %v498 = vmul.f32 %v496, %v496
        %v499 = vmul.f32 %v498, -0.001358992
        %v500 = vadd.f32 %v499, 0.041655596
        %v501 = vmul.f32 %v498, %v500
        %v502 = vadd.f32 %v501, -0.4999988
        %v503 = vmul.f32 %v498, %v502
        %v504 = vadd.f32 1.0, %v503
        %v505 = vmul.f32 %v496, %v496
        %v506 = vmul.f32 %v505, -0.00019511016
        %v507 = vadd.f32 %v506, 0.008332121
        %v508 = vmul.f32 %v505, %v507
        %v509 = vadd.f32 %v508, -0.16666654
        %v510 = vmul.f32 %v505, %v509
        %v511 = vadd.f32 %v510, 1.0
        %v512 = vmul.f32 %v511, %v496
        %vm513 = vweird.f32 %v368
        %v514 = vadd.s32 %v497, 3
        %v515 = vand.u32 %v514, 3
        %vm516 = vcmp.lt.s32.totalorder %v515, 2
        %vm517 = vcmp.eq.s32.totalorder %v515, 0
        %v518 = vxor.u32 %v512, 2147483648
        %v519 = vsel %vm517, %v504, %v518
        %vm520 = vcmp.eq.s32.totalorder %v515, 2
        %v521 = vxor.u32 %v504, 2147483648
        %v522 = vsel %vm520, %v521, %v512
        %v523 = vsel %vm516, %v519, %v522
        %v524 = vsel %vm513, nan, %v523
        %v525 = vand.u32 2147483647, %v369
        %vm526 = vcmp.le.f32.partialorder %v525, 0.7853982
        %vm527 = vcmp.lt.s32.totalorder %v369, 0
        %v528 = vand.u32 %v369, 2139095040
        %v529 = vshrl.u32 %v528, 23
        %v530 = vsub.s32 %v529, 127
        %v531 = vand.u32 2147483647, %v369
        %v532 = vand.u32 %v531, 8388607
        %v533 = vor.u32 %v532, 8388608
        %v534 = vsub.s32 0, %v533
        %v535 = vadd.s32 %v530, 1
        %vm536 = vcmp.gt.s32.totalorder %v535, 0
        %v537 = vsel %vm536, %v535, 0
        %v538 = vshrl.u32 %v537, 5
        %v539 = vand.u32 %v537, 31
        %v540 = vsub.s32 32, %v539
        %v541 = vshrl.u32 683565275, %v540
        %v542 = vshll.u32 683565275, %v539
        %v543 = vshrl.u32 2475754826, %v540
        %v544 = vor.u32 %v542, %v543
        %v545 = vshll.u32 2475754826, %v539
        %v546 = vshrl.u32 2131351028, %v540
        %v547 = vor.u32 %v545, %v546
        %v548 = vshll.u32 2131351028, %v539
        %v549 = vshrl.u32 2102212464, %v540
        %v550 = vor.u32 %v548, %v549
        %v551 = vshll.u32 2102212464, %v539
        %v552 = vshrl.u32 920167782, %v540
        %v553 = vor.u32 %v551, %v552
        %v554 = vshll.u32 920167782, %v539
        %v555 = vshrl.u32 1326507024, %v540
        %v556 = vor.u32 %v554, %v555
        %vm557 = vcmp.lt.s32.totalorder %v538, 1
        %vm558 = vcmp.lt.s32.totalorder %v538, 2
        %vm559 = vcmp.lt.s32.totalorder %v538, 3
        %vm560 = vcmp.lt.s32.totalorder %v538, 4
        %v561 = vsel %vm557, %v541, %v544
        %v562 = vsel %vm560, %v550, 2102212464
        %v563 = vsel %vm559, %v547, %v562
        %v564 = vsel %vm558, %v561, %v563
        %v565 = vsel %vm557, %v544, %v547
        %v566 = vsel %vm560, %v553, 920167782
        %v567 = vsel %vm559, %v550, %v566
        %v568 = vsel %vm558, %v565, %v567
        %v569 = vsel %vm557, %v547, %v550
        %v570 = vsel %vm560, %v556, 1326507024
        %v571 = vsel %vm559, %v553, %v570
        %v572 = vsel %vm558, %v569, %v571
        %v573 = vshll.u32 %v533, 8
        %v574 = vand.u32 %v573, 65535
        %v575 = vshrl.u32 %v573, 16
        %v576 = vand.u32 %v572, 65535
        %v577 = vshrl.u32 %v572, 16
        %v578 = vmul.u32 %v574, %v576
        %v579 = vmul.u32 %v574, %v577
        %v580 = vmul.u32 %v575, %v576
        %v581 = vmul.u32 %v575, %v577
        %v582 = vshll.u32 %v579, 16
        %v583 = vshrl.u32 %v579, 16
        %v584 = vshll.u32 %v580, 16
        %v585 = vshrl.u32 %v580, 16
        %vm586 = vc.u32 %v578, %v582
        %v587 = vsel %vm586, 1, 0
        %v588 = vadd.s32 %v578, %v582
        %v589 = vadd.s32 %v581, %v587
        %vm590 = vc.u32 %v588, %v584
        %v591 = vsel %vm590, 1, 0
        %v592 = vadd.s32 %v588, %v584
        %v593 = vadd.s32 %v589, %v591
        %v594 = vadd.s32 %v593, %v583
        %v595 = vadd.s32 %v594, %v585
        %v596 = vand.u32 %v573, 65535
        %v597 = vshrl.u32 %v573, 16
        %v598 = vand.u32 %v568, 65535
        %v599 = vshrl.u32 %v568, 16
        %v600 = vmul.u32 %v596, %v598
        %v601 = vmul.u32 %v596, %v599
        %v602 = vmul.u32 %v597, %v598
        %v603 = vmul.u32 %v597, %v599
        %v604 = vshll.u32 %v601, 16
        %v605 = vshrl.u32 %v601, 16
        %v606 = vshll.u32 %v602, 16
        %v607 = vshrl.u32 %v602, 16
        %vm608 = vc.u32 %v600, %v604
        %v609 = vsel %vm608, 1, 0
        %v610 = vadd.s32 %v600, %v604
        %v611 = vadd.s32 %v603, %v609
        %vm612 = vc.u32 %v610, %v606
        %v613 = vsel %vm612, 1, 0
        %v614 = vadd.s32 %v610, %v606
        %v615 = vadd.s32 %v611, %v613
        %v616 = vadd.s32 %v615, %v605
        %v617 = vadd.s32 %v616, %v607
        %v618 = vmul.u32 %v573, %v564
        %v619 = vadd.s32 %v595, %v614
        %vm620 = vc.u32 %v595, %v614
        %v621 = vadd.s32 %v617, 1
        %v622 = vsel %vm620, %v621, %v617
        %v623 = vadd.s32 %v618, %v622
        %v624 = vadd.s32 %v623, 536870912
        %v625 = vshrl.u32 %v624, 30
        %v626 = vshll.u32 %v625, 30
        %v627 = vsub.s32 %v623, %v626
        %vm628 = vcmp.lt.s32.totalorder %v627, 0
        %v629 = vsub.s32 0, %v627
        %v630 = vsel %vm628, %v629, %v627
        %v631 = vclz %v630
        %v632 = vsub.s32 %v631, 2
        %vm633 = vcmp.gt.s32.totalorder 0, %v632
        %v634 = vsel %vm633, 0, %v632
        %v635 = vsub.s32 32, %v634
        %v636 = vshll.u32 %v627, %v634
        %v637 = vshrl.u32 %v619, %v635
        %v638 = vor.u32 %v636, %v637
        %v639 = vsub.s32 4294967266, %v634
        %v640 = vadd.s32 %v639, 127
        %v641 = vshll.u32 %v640, 23
        %v642 = vor.u32 4788187, %v641
        %v643 = vand.u32 2147483647, %v642
        %v645 = vcvt.s32.f32 %v638
        %v646 = vmul.f32 %v645, %v643
        %v647 = vxor.u32 %v646, 2147483648
        %v648 = vsel %vm527, %v647, %v646
        %v649 = vsub.s32 4, %v625
        %v650 = vsel %vm527, %v649, %v625
        %v651 = vsel %vm526, %v369, %v648
        %v652 = vsel %vm526, 0, %v650
        %v653 = vmul.f32 %v651, %v651
        %v654 = vmul.f32 %v653, -0.001358992
        %v655 = vadd.f32 %v654, 0.041655596
        %v656 = vmul.f32 %v653, %v655
        %v657 = vadd.f32 %v656, -0.4999988
        %v658 = vmul.f32 %v653, %v657
        %v659 = vadd.f32 1.0, %v658
        %v660 = vmul.f32 %v651, %v651
        %v661 = vmul.f32 %v660, -0.00019511016
        %v662 = vadd.f32 %v661, 0.008332121
        %v663 = vmul.f32 %v660, %v662
        %v664 = vadd.f32 %v663, -0.16666654
        %v665 = vmul.f32 %v660, %v664
        %v666 = vadd.f32 %v665, 1.0
        %v667 = vmul.f32 %v666, %v651
        %vm668 = vweird.f32 %v369
        %v669 = vadd.s32 %v652, 3
        %v670 = vand.u32 %v669, 3
        %vm671 = vcmp.lt.s32.totalorder %v670, 2
        %vm672 = vcmp.eq.s32.totalorder %v670, 0
        %v673 = vxor.u32 %v667, 2147483648
        %v674 = vsel %vm672, %v659, %v673
        %vm675 = vcmp.eq.s32.totalorder %v670, 2
        %v676 = vxor.u32 %v659, 2147483648
        %v677 = vsel %vm675, %v676, %v667
        %v678 = vsel %vm671, %v674, %v677
        %v679 = vsel %vm668, nan, %v678
        %v680 = vmul.f32 %v524, %v524
        %v681 = vmul.f32 %v679, %v679
        %683 = vset.pattern.permute.xlu0 0
        %684 = vperm.xlu0 %683, %v362
        %v685 = vpop.permute.xlu0 %684
        %v687 = vmul.f32 %v685, %v680
        %v688 = vmul.f32 %v685, %v681
        %v689 = vadd.f32 %v359, %v687
        %v690 = vadd.f32 %v360, %v688
        %693 = vrot.lane.b32.xlu0 %v689, 119
        %v694 = vpop.permute.xlu0 %693
        %695 = vrot.lane.b32.xlu0 %v690, 119
        %v696 = vpop.permute.xlu0 %695
        %vm697 = vcmask 973824
        %v698 = vsel %vm697, %v694, %v696
        %700 = vrot.lane.b32.xlu0 %v689, 110
        %v701 = vpop.permute.xlu0 %700
        %702 = vrot.lane.b32.xlu0 %v690, 110
        %v703 = vpop.permute.xlu0 %702
        %vm704 = vcmask 900096
        %v705 = vsel %vm704, %v701, %v703
        %707 = vrot.lane.b32.xlu0 %v689, 101
        %v708 = vpop.permute.xlu0 %707
        %709 = vrot.lane.b32.xlu0 %v690, 101
        %v710 = vpop.permute.xlu0 %709
        %vm711 = vcmask 826368
        %v712 = vsel %vm711, %v708, %v710
        %714 = vrot.lane.b32.xlu0 %v689, 92
        %v715 = vpop.permute.xlu0 %714
        %716 = vrot.lane.b32.xlu0 %v690, 92
        %v717 = vpop.permute.xlu0 %716
        %vm718 = vcmask 752640
        %v719 = vsel %vm718, %v715, %v717
        %721 = vrot.lane.b32.xlu0 %v689, 83
        %v722 = vpop.permute.xlu0 %721
        %723 = vrot.lane.b32.xlu0 %v690, 83
        %v724 = vpop.permute.xlu0 %723
        %vm725 = vcmask 678912
        %v726 = vsel %vm725, %v722, %v724
        %728 = vrot.lane.b32.xlu0 %v689, 74
        %v729 = vpop.permute.xlu0 %728
        %730 = vrot.lane.b32.xlu0 %v690, 74
        %v731 = vpop.permute.xlu0 %730
        %vm732 = vcmask 605184
        %v733 = vsel %vm732, %v729, %v731
        %v735 = vld [vmem:[%s3] sm:$0xff]
        %v736 = vld [vmem:[%s4] sm:$0xff]
        %738 = vset.pattern.permute.xlu0 0
        %739 = vperm.xlu0 %738, %v736
        %v740 = vpop.permute.xlu0 %739
        %vm742 = vcmask 457728
        %v744 = vsel %vm742, %v735, 0
        %746 = vmatpush.msra.mxu0 0.0
        %747 = vmatpush.msra.mxu0 0.0
        %748 = vmatpush.msra.mxu0 0.0
        %749 = vmatpush.msra.mxu0 0.0
        %750 = vmatpush.msra.mxu0 0.0
        %751 = vmatpush.msra.mxu0 0.0
        %752 = vmatpush.msra.mxu0 0.0
        %753 = vmatpush.msra.mxu0 0.0
        %754 = vmatpush.msra.mxu0 0.0
        %755 = vmatpush.msra.mxu0 %v733
        %756 = vmatpush.msra.mxu0 %v726
        %757 = vmatpush.msra.mxu0 %v719
        %758 = vmatpush.msra.mxu0 %v712
        %759 = vmatpush.msra.mxu0 %v705
        %760 = vmatpush.msra.mxu0 %v698
        %761 = vmatpush.msra.mxu0 %v689
        %762 = vmatmul.f32.gmra.mxu0 %v744
        %v763 = vpop.f32.mrf.mxu0
        %v764 = vadd.f32 %v740, %v763
        %765 = vdwg.mxu0
        %v766 = vld [vmem:[%s5] sm:$0xff]
        %v767 = vld [vmem:[%s6] sm:$0xff]
        %769 = vset.pattern.permute.xlu0 0
        %770 = vperm.xlu0 %769, %v766
        %v771 = vpop.permute.xlu0 %770
        %v773 = vmul.f32 %v771, %v764
        %v774 = vand.u32 2147483647, %v773
        %vm775 = vcmp.le.f32.partialorder %v774, 0.7853982
        %vm776 = vcmp.lt.s32.totalorder %v773, 0
        %v777 = vand.u32 %v773, 2139095040
        %v778 = vshrl.u32 %v777, 23
        %v779 = vsub.s32 %v778, 127
        %v780 = vand.u32 2147483647, %v773
        %v781 = vand.u32 %v780, 8388607
        %v782 = vor.u32 %v781, 8388608
        %v783 = vsub.s32 0, %v782
        %v784 = vadd.s32 %v779, 1
        %vm785 = vcmp.gt.s32.totalorder %v784, 0
        %v786 = vsel %vm785, %v784, 0
        %v787 = vshrl.u32 %v786, 5
        %v788 = vand.u32 %v786, 31
        %v789 = vsub.s32 32, %v788
        %v790 = vshrl.u32 683565275, %v789
        %v791 = vshll.u32 683565275, %v788
        %v792 = vshrl.u32 2475754826, %v789
        %v793 = vor.u32 %v791, %v792
        %v794 = vshll.u32 2475754826, %v788
        %v795 = vshrl.u32 2131351028, %v789
        %v796 = vor.u32 %v794, %v795
        %v797 = vshll.u32 2131351028, %v788
        %v798 = vshrl.u32 2102212464, %v789
        %v799 = vor.u32 %v797, %v798
        %v800 = vshll.u32 2102212464, %v788
        %v801 = vshrl.u32 920167782, %v789
        %v802 = vor.u32 %v800, %v801
        %v803 = vshll.u32 920167782, %v788
        %v804 = vshrl.u32 1326507024, %v789
        %v805 = vor.u32 %v803, %v804
        %vm806 = vcmp.lt.s32.totalorder %v787, 1
        %vm807 = vcmp.lt.s32.totalorder %v787, 2
        %vm808 = vcmp.lt.s32.totalorder %v787, 3
        %vm809 = vcmp.lt.s32.totalorder %v787, 4
        %v810 = vsel %vm806, %v790, %v793
        %v811 = vsel %vm809, %v799, 2102212464
        %v812 = vsel %vm808, %v796, %v811
        %v813 = vsel %vm807, %v810, %v812
        %v814 = vsel %vm806, %v793, %v796
        %v815 = vsel %vm809, %v802, 920167782
        %v816 = vsel %vm808, %v799, %v815
        %v817 = vsel %vm807, %v814, %v816
        %v818 = vsel %vm806, %v796, %v799
        %v819 = vsel %vm809, %v805, 1326507024
        %v820 = vsel %vm808, %v802, %v819
        %v821 = vsel %vm807, %v818, %v820
        %v822 = vshll.u32 %v782, 8
        %v823 = vand.u32 %v822, 65535
        %v824 = vshrl.u32 %v822, 16
        %v825 = vand.u32 %v821, 65535
        %v826 = vshrl.u32 %v821, 16
        %v827 = vmul.u32 %v823, %v825
        %v828 = vmul.u32 %v823, %v826
        %v829 = vmul.u32 %v824, %v825
        %v830 = vmul.u32 %v824, %v826
        %v831 = vshll.u32 %v828, 16
        %v832 = vshrl.u32 %v828, 16
        %v833 = vshll.u32 %v829, 16
        %v834 = vshrl.u32 %v829, 16
        %vm835 = vc.u32 %v827, %v831
        %v836 = vsel %vm835, 1, 0
        %v837 = vadd.s32 %v827, %v831
        %v838 = vadd.s32 %v830, %v836
        %vm839 = vc.u32 %v837, %v833
        %v840 = vsel %vm839, 1, 0
        %v841 = vadd.s32 %v837, %v833
        %v842 = vadd.s32 %v838, %v840
        %v843 = vadd.s32 %v842, %v832
        %v844 = vadd.s32 %v843, %v834
        %v845 = vand.u32 %v822, 65535
        %v846 = vshrl.u32 %v822, 16
        %v847 = vand.u32 %v817, 65535
        %v848 = vshrl.u32 %v817, 16
        %v849 = vmul.u32 %v845, %v847
        %v850 = vmul.u32 %v845, %v848
        %v851 = vmul.u32 %v846, %v847
        %v852 = vmul.u32 %v846, %v848
        %v853 = vshll.u32 %v850, 16
        %v854 = vshrl.u32 %v850, 16
        %v855 = vshll.u32 %v851, 16
        %v856 = vshrl.u32 %v851, 16
        %vm857 = vc.u32 %v849, %v853
        %v858 = vsel %vm857, 1, 0
        %v859 = vadd.s32 %v849, %v853
        %v860 = vadd.s32 %v852, %v858
        %vm861 = vc.u32 %v859, %v855
        %v862 = vsel %vm861, 1, 0
        %v863 = vadd.s32 %v859, %v855
        %v864 = vadd.s32 %v860, %v862
        %v865 = vadd.s32 %v864, %v854
        %v866 = vadd.s32 %v865, %v856
        %v867 = vmul.u32 %v822, %v813
        %v868 = vadd.s32 %v844, %v863
        %vm869 = vc.u32 %v844, %v863
        %v870 = vadd.s32 %v866, 1
        %v871 = vsel %vm869, %v870, %v866
        %v872 = vadd.s32 %v867, %v871
        %v873 = vadd.s32 %v872, 536870912
        %v874 = vshrl.u32 %v873, 30
        %v875 = vshll.u32 %v874, 30
        %v876 = vsub.s32 %v872, %v875
        %vm877 = vcmp.lt.s32.totalorder %v876, 0
        %v878 = vsub.s32 0, %v876
        %v879 = vsel %vm877, %v878, %v876
        %v880 = vclz %v879
        %v881 = vsub.s32 %v880, 2
        %vm882 = vcmp.gt.s32.totalorder 0, %v881
        %v883 = vsel %vm882, 0, %v881
        %v884 = vsub.s32 32, %v883
        %v885 = vshll.u32 %v876, %v883
        %v886 = vshrl.u32 %v868, %v884
        %v887 = vor.u32 %v885, %v886
        %v888 = vsub.s32 4294967266, %v883
        %v889 = vadd.s32 %v888, 127
        %v890 = vshll.u32 %v889, 23
        %v891 = vor.u32 4788187, %v890
        %v892 = vand.u32 2147483647, %v891
        %v894 = vcvt.s32.f32 %v887
        %v895 = vmul.f32 %v894, %v892
        %v896 = vxor.u32 %v895, 2147483648
        %v897 = vsel %vm776, %v896, %v895
        %v898 = vsub.s32 4, %v874
        %v899 = vsel %vm776, %v898, %v874
        %v900 = vsel %vm775, %v773, %v897
        %v901 = vsel %vm775, 0, %v899
        %v902 = vmul.f32 %v900, %v900
        %v903 = vmul.f32 %v902, -0.001358992
        %v904 = vadd.f32 %v903, 0.041655596
        %v905 = vmul.f32 %v902, %v904
        %v906 = vadd.f32 %v905, -0.4999988
        %v907 = vmul.f32 %v902, %v906
        %v908 = vadd.f32 1.0, %v907
        %v909 = vmul.f32 %v900, %v900
        %v910 = vmul.f32 %v909, -0.00019511016
        %v911 = vadd.f32 %v910, 0.008332121
        %v912 = vmul.f32 %v909, %v911
        %v913 = vadd.f32 %v912, -0.16666654
        %v914 = vmul.f32 %v909, %v913
        %v915 = vadd.f32 %v914, 1.0
        %v916 = vmul.f32 %v915, %v900
        %vm917 = vweird.f32 %v773
        %v918 = vadd.s32 %v901, 3
        %v919 = vand.u32 %v918, 3
        %vm920 = vcmp.lt.s32.totalorder %v919, 2
        %vm921 = vcmp.eq.s32.totalorder %v919, 0
        %v922 = vxor.u32 %v916, 2147483648
        %v923 = vsel %vm921, %v908, %v922
        %vm924 = vcmp.eq.s32.totalorder %v919, 2
        %v925 = vxor.u32 %v908, 2147483648
        %v926 = vsel %vm924, %v925, %v916
        %v927 = vsel %vm920, %v923, %v926
        %v928 = vsel %vm917, nan, %v927
        %v929 = vmul.f32 %v928, %v928
        %931 = vset.pattern.permute.xlu0 0
        %932 = vperm.xlu0 %931, %v767
        %v933 = vpop.permute.xlu0 %932
        %v935 = vmul.f32 %v933, %v929
        %v936 = vadd.f32 %v764, %v935
        %v937 = vld [vmem:[%s7] sm:$0xff]
        %v938 = vld [vmem:[%s8] sm:$0xff]
        %940 = vset.pattern.permute.xlu0 0
        %941 = vperm.xlu0 %940, %v938
        %v942 = vpop.permute.xlu0 %941
        %vm944 = vcmask 64512
        %v946 = vsel %vm944, %v937, 0
        %948 = vmatpush.msra.mxu0 0.0
        %949 = vmatpush.msra.mxu0 0.0
        %950 = vmatpush.msra.mxu0 0.0
        %951 = vmatpush.msra.mxu0 0.0
        %952 = vmatpush.msra.mxu0 0.0
        %953 = vmatpush.msra.mxu0 0.0
        %954 = vmatpush.msra.mxu0 0.0
        %955 = vmatpush.msra.mxu0 0.0
        %956 = vmatpush.msra.mxu0 0.0
        %957 = vmatpush.msra.mxu0 0.0
        %958 = vmatpush.msra.mxu0 0.0
        %959 = vmatpush.msra.mxu0 0.0
        %960 = vmatpush.msra.mxu0 0.0
        %961 = vmatpush.msra.mxu0 0.0
        %962 = vmatpush.msra.mxu0 0.0
        %963 = vmatpush.msra.mxu0 %v936
        %964 = vmatmul.f32.gmra.mxu0 %v946
        %v965 = vpop.f32.mrf.mxu0
        %v966 = vadd.f32 %v942, %v965
        %967 = vdwg.mxu0
        %969 = vrot.lane.b32.xlu0 %v966, 27
        %v970 = vpop.permute.xlu0 %969
        %v972 = vadd.f32 %v359, %v970
        %v973 = vadd.f32 %v360, %v970
        %976 = vrot.lane.b32.xlu0 %v972, 101
        %v977 = vpop.permute.xlu0 %976
        %978 = vrot.lane.b32.xlu0 %v973, 101
        %v979 = vpop.permute.xlu0 %978
        %v980 = vsel %vm711, %v977, %v979
        %982 = vst [vmem:[%s349] sm:$0xff] %v980
        %s983 = sand.u32 %s241, 1
        %s984 = scalar_lea.sflag [#allocation3], %s983
        %s985 = sand.u32 %s241, 1
        %s986 = smul.addr %s985, 8
        %s987 = scalar_lea.vmem [#allocation2], %s986
        // Predicated region
        $region57: #{decoder_block_forward.7} parent=55 // pred_check
          %p988 = pneg %p251
        $region58: #{decoder_block_forward.7} parent=55 // pred_check_branch
          %990 = sbr.rel (%p988) target = $region60
        $region59: #{decoder_block_forward.7} parent=55 // pred_region
          %992 = vsyncadd %s984, 0
          %s993 = sadd.s32 %s28, %s27
          %s994 = smul.addr %s993, 8
          %s995 = scalar_lea.hbm %s9, %s994
          %s997 = sshll.u32 %s987, 4
          %s998 = int_to_ptr.vmem [resolvable:$true] %s997
          %s999 = sshll.u32 %s995, 4
          %s1000 = int_to_ptr.hbm [resolvable:$true] %s999
          %1002 = dma.vmem_to_hbm [thread:$0]  %s998, 128, %s1000, %s984
        $region60: #{decoder_block_forward.7} parent=55 // pred_fallthru
          _
      $region56: #{decoder_block_forward.7} parent=5 // pred_fallthru
        _
      %p1003 = scmp.le.s32.totalorder 2, %s18
      // Predicated region
      $region61: #{decoder_block_forward.7} parent=5 // pred_check
        %p1004 = pneg %p1003
      $region62: #{decoder_block_forward.7} parent=5 // pred_check_branch
        %1006 = sbr.rel (%p1004) target = $region64
      $region63: #{decoder_block_forward.7} parent=5 // pred_region
        %s1007 = ssub.s32 %s18, 2
        // Predicated region
        $region65: #{decoder_block_forward.7} parent=63 // pred_check
          %p1008 = pneg %p257
        $region66: #{decoder_block_forward.7} parent=63 // pred_check_branch
          %1010 = sbr.rel (%p1008) target = $region68
        $region67: #{decoder_block_forward.7} parent=63 // pred_region
          %s1011 = sand.u32 %s242, 1
          %s1012 = scalar_lea.sflag [#allocation3], %s1011
          %s1013 = sand.u32 %s242, 1
          %s1014 = smul.addr %s1013, 8
          %s1015 = scalar_lea.vmem [#allocation2], %s1014
          %1017 = dma.done %s1012, 128
        $region68: #{decoder_block_forward.7} parent=63 // pred_fallthru
          _
      $region64: #{decoder_block_forward.7} parent=5 // pred_fallthru
        _
    $region6: #{decoder_block_forward.7} parent=1 // loop_footer
      %s22 = sadd.s32 1, %s18
    $region7: #{decoder_block_forward.7} parent=1 // loop_footer_branch
      %17 = sbr.rel target = $region3
    $region8: #{decoder_block_forward.7} parent=1 // loop_exit
      _
    %1018 = vsyncpa [#allocation3], 1
    %s1019 = scalar_lea.sflag [#allocation3], 1
    %1020 = vsyncpa %s1019, 1

</llo_original>
